<compile_context>
chip_gen: v7x
topology: tpu7x:2x2x1
jax: 0.10.0
libtpu: 0.0.40
codegen_flags: <defaults>
</compile_context>

<pallas_src>
import math
import functools

import jax
import jax.numpy as jnp
from jax.experimental import pallas as pl
from jax.experimental.pallas import tpu as pltpu

LRELU_ALPHA = 0.2
LRELU_GAIN = math.sqrt(2.0)  # bias_act 'lrelu' def_gain


# -----------------------------------------------------------------------------
# Kernel 1: minibatch-std feature (vectorized grouped mean/var reduction).
#   x_ref: (G, M, D)  -- batch element n = g*M + m sits at [g, m, :], D = H*W*C
#   o_ref: (M, 1)     -- per-group std feature (mbstd_num_channels == 1)
# -----------------------------------------------------------------------------
def _mbstd_kernel(x_ref, o_ref):
    x = x_ref[...]                                      # (G, M, D)
    mu = jnp.mean(x, axis=0, keepdims=True)             # (1, M, D)
    var = jnp.mean((x - mu) ** 2, axis=0)               # (M, D)
    std = jnp.sqrt(var + 1e-8)
    o_ref[...] = jnp.mean(std, axis=-1, keepdims=True)  # (M, 1)


# -----------------------------------------------------------------------------
# Kernel 2: 3x3 SAME conv (stride 1) + mbstd-channel contribution + bias +
#           lrelu * sqrt(2).  One grid step processes B_TILE images (NHWC).
# -----------------------------------------------------------------------------
def _conv3x3_lrelu_kernel(x_ref, feat_ref, w_ref, mb_ref, b_ref, o_ref,
                          xpad_ref, *, H, W, Cin, Cout, B, weight_gain):
    HW = H * W
    # Zero-pad into the VMEM halo scratch.  Done every step: scratch contents
    # are not guaranteed fresh, and `pl.when(pid == 0)` would be unsafe when
    # the "parallel" batch axis is megacore-sharded (v7x).
    xpad_ref[...] = jnp.zeros((B, H + 2, W + 2, Cin), jnp.float32)
    xpad_ref[:, 1:H + 1, 1:W + 1, :] = x_ref[...]
    xp = xpad_ref[...]                                  # (B, H+2, W+2, Cin)

    # 9 tap matmuls, M = B*H*W rows, K = Cin (mbstd channel excluded so K
    # stays MXU-aligned at real sizes).
    acc = jnp.zeros((B * HW, Cout), jnp.float32)
    for dy in range(3):
        for dx in range(3):
            patch = xp[:, dy:dy + H, dx:dx + W, :].reshape(B * HW, Cin)
            acc = acc + jnp.dot(patch.astype(w_ref.dtype), w_ref[dy, dx],
                                preferred_element_type=jnp.float32)
    acc = acc.reshape(B, HW, Cout)

    # mbstd channel: constant value per image -> its conv output is
    # feat[b] * (per-pixel sum of the in-bounds taps of that channel's weights)
    acc = acc + feat_ref[...].reshape(B, 1, 1) * mb_ref[...][None, :, :]

    acc = acc * weight_gain + b_ref[...][None, :, :]
    acc = jnp.where(acc >= 0.0, acc, LRELU_ALPHA * acc) * LRELU_GAIN
    o_ref[...] = acc.astype(o_ref.dtype)


# -----------------------------------------------------------------------------
# Kernel 3: FC(+bias+lrelu) fused with the linear 'out' layer and the cmap
#           projection.  Grid tiles the FC contraction (K) with an f32 VMEM
#           accumulator; both matmuls contract on the weight's in-features
#           axis (no host-side transpose of the weights).
# -----------------------------------------------------------------------------
def _fc_out_cmap_kernel(x_ref, fcw_ref, fcb_ref, outw_ref, outb_ref, cmap_ref,
                        o_ref, acc_ref, *, fc_gain, out_gain, inv_sqrt_cmap):
    @pl.when(pl.program_id(0) == 0)
    def _():
        acc_ref[...] = jnp.zeros_like(acc_ref)

    acc_ref[...] += jax.lax.dot_general(
        x_ref[...].astype(fcw_ref.dtype), fcw_ref[...],
        dimension_numbers=(((1,), (1,)), ((), ())),
        preferred_element_type=jnp.float32)

    @pl.when(pl.program_id(0) == pl.num_programs(0) - 1)
    def _():
        h = acc_ref[...] * fc_gain + fcb_ref[...]
        h = jnp.where(h >= 0.0, h, LRELU_ALPHA * h) * LRELU_GAIN
        z = jax.lax.dot_general(
            h.astype(outw_ref.dtype), outw_ref[...],
            dimension_numbers=(((1,), (1,)), ((), ())),
            preferred_element_type=jnp.float32)
        z = z * out_gain + outb_ref[...]
        o_ref[...] = jnp.sum(z * cmap_ref[...], axis=1,
                             keepdims=True) * inv_sqrt_cmap


# -----------------------------------------------------------------------------
# Tiling helpers
# -----------------------------------------------------------------------------
def _pick_batch_tile(n, hw, target_rows=256):
    """Smallest divisor of n giving >= target_rows MXU rows; keeps the
    (B_TILE, 1) feat block layout-legal (B_TILE == n or multiple of 8)."""
    for d in range(1, n + 1):
        if n % d == 0 and d * hw >= target_rows and (d == n or d % 8 == 0):
            return d
    return n


def _pick_k_tile(k, max_tile=2048):
    """Largest divisor of k <= max_tile, preferring lane-aligned (x128)."""
    if k <= max_tile:
        return k
    best = 1
    for t in range(max_tile, 0, -1):
        if k % t == 0:
            if t % 128 == 0:
                return t
            best = max(best, t)
    return best


# -----------------------------------------------------------------------------
# Wrapper (glue is weight-only or free reshapes; one NCHW->NHWC transpose)
# -----------------------------------------------------------------------------
def discriminator_epilogue(x, img, cmap, params, *, in_channels, resolution,
                           cmap_dim, mbstd_group_size=4, mbstd_num_channels=1,
                           param_dtype=jnp.float32, batch_tile=None):
    del img  # architecture='resnet' -> no fromrgb skip branch
    assert mbstd_num_channels == 1
    assert cmap_dim > 0
    N, C, H, W = x.shape
    assert C == in_channels and H == resolution and W == resolution
    x = x.astype(jnp.float32)

    # --- MinibatchStdLayer ----------------------------------------------------
    G = min(mbstd_group_size, N)
    assert N % G == 0, "batch size must be divisible by the mbstd group size"
    M = N // G

    x_nhwc = jnp.transpose(x, (0, 2, 3, 1))             # (N, H, W, C)
    x_grouped = x_nhwc.reshape(G, M, H * W * C)         # free reshape
    feat_m = pl.pallas_call(
        _mbstd_kernel,
        out_shape=jax.ShapeDtypeStruct((M, 1), jnp.float32),
    )(x_grouped)
    feat = jnp.tile(feat_m, (G, 1))                     # (N, 1): feat of n % M

    # --- Conv2dLayer(kernel=3, act='lrelu') -----------------------------------
    Cin, Cout = in_channels, in_channels
    conv_w = params["conv_w"].astype(param_dtype)       # (Cout, Cin+1, 3, 3)
    w_hwio = jnp.transpose(conv_w, (2, 3, 1, 0))        # (3, 3, Cin+1, Cout)
    w_main = w_hwio[:, :, :Cin, :]                      # (3, 3, Cin, Cout)
    w_mb = w_hwio[:, :, Cin, :].astype(jnp.float32)     # (3, 3, Cout)

    # Per-output-pixel sum of the mbstd-channel taps that land inside the
    # image (SAME zero padding).  Weight-only, tiny.
    ones = jnp.pad(jnp.ones((H, W), jnp.float32), 1)    # (H+2, W+2)
    mb_map = jnp.zeros((H, W, Cout), jnp.float32)
    for dy in range(3):
        for dx in range(3):
            mb_map = mb_map + (ones[dy:dy + H, dx:dx + W, None]
                               * w_mb[dy, dx][None, None, :])
    mb_map = mb_map.reshape(H * W, Cout)

    conv_gain = 1.0 / math.sqrt((Cin + mbstd_num_channels) * 9)
    HW = H * W
    B_TILE = batch_tile if batch_tile is not None else _pick_batch_tile(N, HW)
    assert N % B_TILE == 0

    h = pl.pallas_call(
        functools.partial(_conv3x3_lrelu_kernel, H=H, W=W, Cin=Cin, Cout=Cout,
                          B=B_TILE, weight_gain=conv_gain),
        out_shape=jax.ShapeDtypeStruct((N, HW, Cout), jnp.float32),
        grid=(N // B_TILE,),
        in_specs=[
            pl.BlockSpec((B_TILE, H, W, Cin), lambda b: (b, 0, 0, 0)),
            pl.BlockSpec((B_TILE, 1), lambda b: (b, 0)),
            pl.BlockSpec((3, 3, Cin, Cout), lambda b: (0, 0, 0, 0)),
            pl.BlockSpec((HW, Cout), lambda b: (0, 0)),
            pl.BlockSpec((1, Cout), lambda b: (0, 0)),
        ],
        out_specs=pl.BlockSpec((B_TILE, HW, Cout), lambda b: (b, 0, 0)),
        scratch_shapes=[pltpu.VMEM((B_TILE, H + 2, W + 2, Cin), jnp.float32)],
        compiler_params=pltpu.CompilerParams(
            dimension_semantics=("parallel",)),
    )(x_nhwc, feat, w_main, mb_map,
      params["conv_b"].astype(jnp.float32)[None, :])

    # --- FullyConnectedLayer(fc, lrelu) + FullyConnectedLayer(out) + cmap -----
    K = HW * Cout
    h_flat = h.reshape(N, K)                            # free row-major reshape
    OutF = in_channels
    fc_w = params["fc_w"].astype(param_dtype)           # (OutF, C*H*W) CHW order
    # Reorder columns (weight-only) into the NHWC-flatten order of h_flat.
    fc_w_hwc = fc_w.reshape(OutF, Cout, H, W).transpose(0, 2, 3, 1).reshape(OutF, K)
    out_w = params["out_w"].astype(param_dtype)         # (cmap_dim, OutF)

    fc_gain = 1.0 / math.sqrt(K)
    out_gain = 1.0 / math.sqrt(OutF)
    TK = _pick_k_tile(K)

    out = pl.pallas_call(
        functools.partial(_fc_out_cmap_kernel, fc_gain=fc_gain,
                          out_gain=out_gain,
                          inv_sqrt_cmap=1.0 / math.sqrt(cmap_dim)),
        out_shape=jax.ShapeDtypeStruct((N, 1), jnp.float32),
        grid=(K // TK,),
        in_specs=[
            pl.BlockSpec((N, TK), lambda k: (0, k)),
            pl.BlockSpec((OutF, TK), lambda k: (0, k)),
            pl.BlockSpec((1, OutF), lambda k: (0, 0)),
            pl.BlockSpec((cmap_dim, OutF), lambda k: (0, 0)),
            pl.BlockSpec((1, cmap_dim), lambda k: (0, 0)),
            pl.BlockSpec((N, cmap_dim), lambda k: (0, 0)),
        ],
        out_specs=pl.BlockSpec((N, 1), lambda k: (0, 0)),
        scratch_shapes=[pltpu.VMEM((N, OutF), jnp.float32)],
        compiler_params=pltpu.CompilerParams(
            dimension_semantics=("arbitrary",)),
    )(h_flat, fc_w_hwc, params["fc_b"].astype(jnp.float32)[None, :],
      out_w, params["out_b"].astype(jnp.float32)[None, :],
      cmap.astype(jnp.float32))
    return out


# -----------------------------------------------------------------------------
# Pure-JAX reference (mirrors the PyTorch forward) for correctness checking
# -----------------------------------------------------------------------------
def reference(x, cmap, params, in_channels, resolution, cmap_dim,
              mbstd_group_size=4):
    N, C, H, W = x.shape
    G = min(mbstd_group_size, N)
    M = N // G
    y = x.reshape(G, M, 1, C, H, W)
    y = y - y.mean(axis=0)
    y = (y ** 2).mean(axis=0)
    y = jnp.sqrt(y + 1e-8)
    y = y.mean(axis=(2, 3, 4))
    y = y.reshape(M, 1, 1, 1)
    y = jnp.tile(y, (G, 1, H, W))
    x = jnp.concatenate([x, y], axis=1)
    Cin = C + 1
    w = params["conv_w"] * (1.0 / math.sqrt(Cin * 9))
    h = jax.lax.conv_general_dilated(x, w, (1, 1), "SAME",
                                     dimension_numbers=("NCHW", "OIHW", "NCHW"))
    h = h + params["conv_b"][None, :, None, None]
    h = jnp.where(h >= 0, h, 0.2 * h) * math.sqrt(2.0)
    h = h.reshape(N, -1)
    wf = params["fc_w"] * (1.0 / math.sqrt(in_channels * resolution ** 2))
    h = h @ wf.T + params["fc_b"][None, :]
    h = jnp.where(h >= 0, h, 0.2 * h) * math.sqrt(2.0)
    wo = params["out_w"] * (1.0 / math.sqrt(in_channels))
    o = h @ wo.T + params["out_b"][None, :]
    return jnp.sum(o * cmap, axis=1, keepdims=True) * (1.0 / math.sqrt(cmap_dim))


if __name__ == "__main__":
    key = jax.random.PRNGKey(0)
    N, in_channels, resolution, img_channels, cmap_dim = 4, 8, 8, 3, 16
    ks = jax.random.split(key, 9)

    x = jax.random.normal(ks[0], (N, in_channels, resolution, resolution),
                          jnp.float32)
    img = jax.random.normal(ks[1], (N, img_channels, resolution, resolution),
                            jnp.float32)  # unused (resnet architecture)
    cmap = jax.random.normal(ks[2], (N, cmap_dim), jnp.float32)

    params = {
        "conv_w": jax.random.normal(ks[3], (in_channels, in_channels + 1, 3, 3),
                                    jnp.float32),
        "conv_b": 0.1 * jax.random.normal(ks[4], (in_channels,), jnp.float32),
        "fc_w": jax.random.normal(ks[5], (in_channels,
                                          in_channels * resolution ** 2),
                                  jnp.float32),
        "fc_b": 0.1 * jax.random.normal(ks[6], (in_channels,), jnp.float32),
        "out_w": jax.random.normal(ks[7], (cmap_dim, in_channels), jnp.float32),
        "out_b": 0.1 * jax.random.normal(ks[8], (cmap_dim,), jnp.float32),
    }

    fwd = jax.jit(functools.partial(discriminator_epilogue,
                                    in_channels=in_channels,
                                    resolution=resolution,
                                    cmap_dim=cmap_dim))
    out = fwd(x, img, cmap, params)
    out = jax.block_until_ready(out)

    ref = reference(x, cmap, params, in_channels, resolution, cmap_dim)
    assert out.shape == (N, 1) and out.dtype == jnp.float32
    assert jnp.allclose(out, ref, rtol=1e-4, atol=1e-4), (out, ref)
    print("KERNEL_OK")
</pallas_src>

<mosaic_0001>
module attributes {stable_mosaic.version = 11 : i64} {
  func.func @_mbstd_kernel(%arg0: memref<4x1x512xf32, #tpu.memory_space<vmem>>, %arg1: memref<1x1xf32, #tpu.memory_space<vmem>>) attributes {dimension_semantics = [], scalar_prefetch = 0 : i64, scratch_operands = 0 : i64, tpu.core_type = #tpu.core_type<tc>} {
    %c0 = arith.constant 0 : index
    %c0_0 = arith.constant 0 : index
    %c0_1 = arith.constant 0 : index
    %0 = vector.load %arg0[%c0, %c0_0, %c0_1] : memref<4x1x512xf32, #tpu.memory_space<vmem>>, vector<4x1x512xf32>
    %cst = arith.constant dense<0.000000e+00> : vector<1x512xf32>
    %1 = vector.multi_reduction <add>, %0, %cst [0] : vector<4x1x512xf32> to vector<1x512xf32>
    %2 = vector.shape_cast %1 : vector<1x512xf32> to vector<1x1x512xf32>
    %cst_2 = arith.constant 4.000000e+00 : f32
    %3 = vector.broadcast %cst_2 : f32 to vector<1x1x512xf32>
    %4 = arith.divf %2, %3 : vector<1x1x512xf32>
    %5 = vector.broadcast %4 : vector<1x1x512xf32> to vector<4x1x512xf32>
    %6 = arith.subf %0, %5 : vector<4x1x512xf32>
    %7 = arith.mulf %6, %6 : vector<4x1x512xf32>
    %cst_3 = arith.constant dense<0.000000e+00> : vector<1x512xf32>
    %8 = vector.multi_reduction <add>, %7, %cst_3 [0] : vector<4x1x512xf32> to vector<1x512xf32>
    %cst_4 = arith.constant 4.000000e+00 : f32
    %9 = vector.broadcast %cst_4 : f32 to vector<1x512xf32>
    %10 = arith.divf %8, %9 : vector<1x512xf32>
    %cst_5 = arith.constant 9.99999993E-9 : f32
    %11 = vector.broadcast %cst_5 : f32 to vector<1x512xf32>
    %12 = arith.addf %10, %11 : vector<1x512xf32>
    %13 = math.sqrt %12 : vector<1x512xf32>
    %cst_6 = arith.constant dense<0.000000e+00> : vector<1xf32>
    %14 = vector.multi_reduction <add>, %13, %cst_6 [1] : vector<1x512xf32> to vector<1xf32>
    %15 = vector.shape_cast %14 : vector<1xf32> to vector<1x1xf32>
    %cst_7 = arith.constant 5.120000e+02 : f32
    %16 = vector.broadcast %cst_7 : f32 to vector<1x1xf32>
    %17 = arith.divf %15, %16 : vector<1x1xf32>
    %c0_8 = arith.constant 0 : index
    %c0_9 = arith.constant 0 : index
    %18 = vector.load %arg1[%c0_8, %c0_9] : memref<1x1xf32, #tpu.memory_space<vmem>>, vector<1x1xf32>
    tpu.vector_store %arg1[%c0_8, %c0_9], %17 {strides = array<i32>} : memref<1x1xf32, #tpu.memory_space<vmem>>, vector<1x1xf32>,
    return
  }
}

module attributes {stable_mosaic.version = 11 : i64} {
  func.func @_conv3x3_lrelu_kernel(%arg0: i32, %arg1: memref<4x8x8x8xf32, #tpu.memory_space<vmem>>, %arg2: memref<4x1xf32, #tpu.memory_space<vmem>>, %arg3: memref<3x3x8x8xf32, #tpu.memory_space<vmem>>, %arg4: memref<64x8xf32, #tpu.memory_space<vmem>>, %arg5: memref<1x8xf32, #tpu.memory_space<vmem>>, %arg6: memref<4x64x8xf32, #tpu.memory_space<vmem>>, %arg7: memref<4x10x10x8xf32, #tpu.memory_space<vmem>>) attributes {dimension_semantics = [#tpu.dimension_semantics<parallel>], iteration_bounds = array<i64: 1>, scalar_prefetch = 0 : i64, scratch_operands = 1 : i64, tpu.core_type = #tpu.core_type<tc>, window_params = [{transform_indices = @transform_0, window_bounds = array<i64: 4, 8, 8, 8>}, {transform_indices = @transform_1, window_bounds = array<i64: 4, 1>}, {pipeline_mode = #tpu.pipeline_mode<synchronous>, transform_indices = @transform_2, window_bounds = array<i64: 3, 3, 8, 8>}, {pipeline_mode = #tpu.pipeline_mode<synchronous>, transform_indices = @transform_3, window_bounds = array<i64: 64, 8>}, {pipeline_mode = #tpu.pipeline_mode<synchronous>, transform_indices = @transform_4, window_bounds = array<i64: 1, 8>}, {transform_indices = @transform_5, window_bounds = array<i64: 4, 64, 8>}]} {
    %cst = arith.constant 0.000000e+00 : f32
    %0 = vector.broadcast %cst : f32 to vector<4x10x10x8xf32>
    %c0 = arith.constant 0 : index
    %c0_0 = arith.constant 0 : index
    %c0_1 = arith.constant 0 : index
    %c0_2 = arith.constant 0 : index
    %1 = vector.load %arg7[%c0, %c0_0, %c0_1, %c0_2] : memref<4x10x10x8xf32, #tpu.memory_space<vmem>>, vector<4x10x10x8xf32>
    tpu.vector_store %arg7[%c0, %c0_0, %c0_1, %c0_2], %0 {strides = array<i32>} : memref<4x10x10x8xf32, #tpu.memory_space<vmem>>, vector<4x10x10x8xf32>,
    %c0_3 = arith.constant 0 : index
    %c0_4 = arith.constant 0 : index
    %c0_5 = arith.constant 0 : index
    %c0_6 = arith.constant 0 : index
    %2 = vector.load %arg1[%c0_3, %c0_4, %c0_5, %c0_6] : memref<4x8x8x8xf32, #tpu.memory_space<vmem>>, vector<4x8x8x8xf32>
    %c0_7 = arith.constant 0 : index
    %c1 = arith.constant 1 : index
    %c1_8 = arith.constant 1 : index
    %c0_9 = arith.constant 0 : index
    %3 = vector.load %arg7[%c0_7, %c1, %c1_8, %c0_9] : memref<4x10x10x8xf32, #tpu.memory_space<vmem>>, vector<4x8x8x8xf32>
    tpu.vector_store %arg7[%c0_7, %c1, %c1_8, %c0_9], %2 {strides = array<i32>} : memref<4x10x10x8xf32, #tpu.memory_space<vmem>>, vector<4x8x8x8xf32>,
    %c0_10 = arith.constant 0 : index
    %c0_11 = arith.constant 0 : index
    %c0_12 = arith.constant 0 : index
    %c0_13 = arith.constant 0 : index
    %4 = vector.load %arg7[%c0_10, %c0_11, %c0_12, %c0_13] : memref<4x10x10x8xf32, #tpu.memory_space<vmem>>, vector<4x10x10x8xf32>
    %cst_14 = arith.constant 0.000000e+00 : f32
    %5 = vector.broadcast %cst_14 : f32 to vector<256x8xf32>
    %6 = vector.extract_strided_slice %4 {offsets = [0, 0, 0, 0], sizes = [4, 8, 8, 8], strides = [1, 1, 1, 1]} : vector<4x10x10x8xf32> to vector<4x8x8x8xf32>
    %7 = vector.shape_cast %6 : vector<4x8x8x8xf32> to vector<256x8xf32>
    %c0_15 = arith.constant 0 : index
    %c0_16 = arith.constant 0 : index
    %c0_17 = arith.constant 0 : index
    %c0_18 = arith.constant 0 : index
    %8 = vector.load %arg3[%c0_15, %c0_16, %c0_17, %c0_18] : memref<3x3x8x8xf32, #tpu.memory_space<vmem>>, vector<1x1x8x8xf32>
    %9 = vector.shape_cast %8 : vector<1x1x8x8xf32> to vector<8x8xf32>
    %cst_19 = arith.constant dense<0.000000e+00> : vector<256x8xf32>
    %10 = tpu.matmul %7, %9, %cst_19 {dimension_numbers = #tpu.dot_dimension_numbers<[1], [0], [0], [1], [0, 0, 1, 1], [], []>} : vector<256x8xf32>, vector<8x8xf32>, vector<256x8xf32> -> vector<256x8xf32>
    %11 = arith.addf %5, %10 : vector<256x8xf32>
    %12 = vector.extract_strided_slice %4 {offsets = [0, 0, 1, 0], sizes = [4, 8, 8, 8], strides = [1, 1, 1, 1]} : vector<4x10x10x8xf32> to vector<4x8x8x8xf32>
    %13 = vector.shape_cast %12 : vector<4x8x8x8xf32> to vector<256x8xf32>
    %c0_20 = arith.constant 0 : index
    %c1_21 = arith.constant 1 : index
    %c0_22 = arith.constant 0 : index
    %c0_23 = arith.constant 0 : index
    %14 = vector.load %arg3[%c0_20, %c1_21, %c0_22, %c0_23] : memref<3x3x8x8xf32, #tpu.memory_space<vmem>>, vector<1x1x8x8xf32>
    %15 = vector.shape_cast %14 : vector<1x1x8x8xf32> to vector<8x8xf32>
    %cst_24 = arith.constant dense<0.000000e+00> : vector<256x8xf32>
    %16 = tpu.matmul %13, %15, %cst_24 {dimension_numbers = #tpu.dot_dimension_numbers<[1], [0], [0], [1], [0, 0, 1, 1], [], []>} : vector<256x8xf32>, vector<8x8xf32>, vector<256x8xf32> -> vector<256x8xf32>
    %17 = arith.addf %11, %16 : vector<256x8xf32>
    %18 = vector.extract_strided_slice %4 {offsets = [0, 0, 2, 0], sizes = [4, 8, 8, 8], strides = [1, 1, 1, 1]} : vector<4x10x10x8xf32> to vector<4x8x8x8xf32>
    %19 = vector.shape_cast %18 : vector<4x8x8x8xf32> to vector<256x8xf32>
    %c0_25 = arith.constant 0 : index
    %c2 = arith.constant 2 : index
    %c0_26 = arith.constant 0 : index
    %c0_27 = arith.constant 0 : index
    %20 = vector.load %arg3[%c0_25, %c2, %c0_26, %c0_27] : memref<3x3x8x8xf32, #tpu.memory_space<vmem>>, vector<1x1x8x8xf32>
    %21 = vector.shape_cast %20 : vector<1x1x8x8xf32> to vector<8x8xf32>
    %cst_28 = arith.constant dense<0.000000e+00> : vector<256x8xf32>
    %22 = tpu.matmul %19, %21, %cst_28 {dimension_numbers = #tpu.dot_dimension_numbers<[1], [0], [0], [1], [0, 0, 1, 1], [], []>} : vector<256x8xf32>, vector<8x8xf32>, vector<256x8xf32> -> vector<256x8xf32>
    %23 = arith.addf %17, %22 : vector<256x8xf32>
    %24 = vector.extract_strided_slice %4 {offsets = [0, 1, 0, 0], sizes = [4, 8, 8, 8], strides = [1, 1, 1, 1]} : vector<4x10x10x8xf32> to vector<4x8x8x8xf32>
    %25 = vector.shape_cast %24 : vector<4x8x8x8xf32> to vector<256x8xf32>
    %c1_29 = arith.constant 1 : index
    %c0_30 = arith.constant 0 : index
    %c0_31 = arith.constant 0 : index
    %c0_32 = arith.constant 0 : index
    %26 = vector.load %arg3[%c1_29, %c0_30, %c0_31, %c0_32] : memref<3x3x8x8xf32, #tpu.memory_space<vmem>>, vector<1x1x8x8xf32>
    %27 = vector.shape_cast %26 : vector<1x1x8x8xf32> to vector<8x8xf32>
    %cst_33 = arith.constant dense<0.000000e+00> : vector<256x8xf32>
    %28 = tpu.matmul %25, %27, %cst_33 {dimension_numbers = #tpu.dot_dimension_numbers<[1], [0], [0], [1], [0, 0, 1, 1], [], []>} : vector<256x8xf32>, vector<8x8xf32>, vector<256x8xf32> -> vector<256x8xf32>
    %29 = arith.addf %23, %28 : vector<256x8xf32>
    %30 = vector.extract_strided_slice %4 {offsets = [0, 1, 1, 0], sizes = [4, 8, 8, 8], strides = [1, 1, 1, 1]} : vector<4x10x10x8xf32> to vector<4x8x8x8xf32>
    %31 = vector.shape_cast %30 : vector<4x8x8x8xf32> to vector<256x8xf32>
    %c1_34 = arith.constant 1 : index
    %c1_35 = arith.constant 1 : index
    %c0_36 = arith.constant 0 : index
    %c0_37 = arith.constant 0 : index
    %32 = vector.load %arg3[%c1_34, %c1_35, %c0_36, %c0_37] : memref<3x3x8x8xf32, #tpu.memory_space<vmem>>, vector<1x1x8x8xf32>
    %33 = vector.shape_cast %32 : vector<1x1x8x8xf32> to vector<8x8xf32>
    %cst_38 = arith.constant dense<0.000000e+00> : vector<256x8xf32>
    %34 = tpu.matmul %31, %33, %cst_38 {dimension_numbers = #tpu.dot_dimension_numbers<[1], [0], [0], [1], [0, 0, 1, 1], [], []>} : vector<256x8xf32>, vector<8x8xf32>, vector<256x8xf32> -> vector<256x8xf32>
    %35 = arith.addf %29, %34 : vector<256x8xf32>
    %36 = vector.extract_strided_slice %4 {offsets = [0, 1, 2, 0], sizes = [4, 8, 8, 8], strides = [1, 1, 1, 1]} : vector<4x10x10x8xf32> to vector<4x8x8x8xf32>
    %37 = vector.shape_cast %36 : vector<4x8x8x8xf32> to vector<256x8xf32>
    %c1_39 = arith.constant 1 : index
    %c2_40 = arith.constant 2 : index
    %c0_41 = arith.constant 0 : index
    %c0_42 = arith.constant 0 : index
    %38 = vector.load %arg3[%c1_39, %c2_40, %c0_41, %c0_42] : memref<3x3x8x8xf32, #tpu.memory_space<vmem>>, vector<1x1x8x8xf32>
    %39 = vector.shape_cast %38 : vector<1x1x8x8xf32> to vector<8x8xf32>
    %cst_43 = arith.constant dense<0.000000e+00> : vector<256x8xf32>
    %40 = tpu.matmul %37, %39, %cst_43 {dimension_numbers = #tpu.dot_dimension_numbers<[1], [0], [0], [1], [0, 0, 1, 1], [], []>} : vector<256x8xf32>, vector<8x8xf32>, vector<256x8xf32> -> vector<256x8xf32>
    %41 = arith.addf %35, %40 : vector<256x8xf32>
    %42 = vector.extract_strided_slice %4 {offsets = [0, 2, 0, 0], sizes = [4, 8, 8, 8], strides = [1, 1, 1, 1]} : vector<4x10x10x8xf32> to vector<4x8x8x8xf32>
    %43 = vector.shape_cast %42 : vector<4x8x8x8xf32> to vector<256x8xf32>
    %c2_44 = arith.constant 2 : index
    %c0_45 = arith.constant 0 : index
    %c0_46 = arith.constant 0 : index
    %c0_47 = arith.constant 0 : index
    %44 = vector.load %arg3[%c2_44, %c0_45, %c0_46, %c0_47] : memref<3x3x8x8xf32, #tpu.memory_space<vmem>>, vector<1x1x8x8xf32>
    %45 = vector.shape_cast %44 : vector<1x1x8x8xf32> to vector<8x8xf32>
    %cst_48 = arith.constant dense<0.000000e+00> : vector<256x8xf32>
    %46 = tpu.matmul %43, %45, %cst_48 {dimension_numbers = #tpu.dot_dimension_numbers<[1], [0], [0], [1], [0, 0, 1, 1], [], []>} : vector<256x8xf32>, vector<8x8xf32>, vector<256x8xf32> -> vector<256x8xf32>
    %47 = arith.addf %41, %46 : vector<256x8xf32>
    %48 = vector.extract_strided_slice %4 {offsets = [0, 2, 1, 0], sizes = [4, 8, 8, 8], strides = [1, 1, 1, 1]} : vector<4x10x10x8xf32> to vector<4x8x8x8xf32>
    %49 = vector.shape_cast %48 : vector<4x8x8x8xf32> to vector<256x8xf32>
    %c2_49 = arith.constant 2 : index
    %c1_50 = arith.constant 1 : index
    %c0_51 = arith.constant 0 : index
    %c0_52 = arith.constant 0 : index
    %50 = vector.load %arg3[%c2_49, %c1_50, %c0_51, %c0_52] : memref<3x3x8x8xf32, #tpu.memory_space<vmem>>, vector<1x1x8x8xf32>
    %51 = vector.shape_cast %50 : vector<1x1x8x8xf32> to vector<8x8xf32>
    %cst_53 = arith.constant dense<0.000000e+00> : vector<256x8xf32>
    %52 = tpu.matmul %49, %51, %cst_53 {dimension_numbers = #tpu.dot_dimension_numbers<[1], [0], [0], [1], [0, 0, 1, 1], [], []>} : vector<256x8xf32>, vector<8x8xf32>, vector<256x8xf32> -> vector<256x8xf32>
    %53 = arith.addf %47, %52 : vector<256x8xf32>
    %54 = vector.extract_strided_slice %4 {offsets = [0, 2, 2, 0], sizes = [4, 8, 8, 8], strides = [1, 1, 1, 1]} : vector<4x10x10x8xf32> to vector<4x8x8x8xf32>
    %55 = vector.shape_cast %54 : vector<4x8x8x8xf32> to vector<256x8xf32>
    %c2_54 = arith.constant 2 : index
    %c2_55 = arith.constant 2 : index
    %c0_56 = arith.constant 0 : index
    %c0_57 = arith.constant 0 : index
    %56 = vector.load %arg3[%c2_54, %c2_55, %c0_56, %c0_57] : memref<3x3x8x8xf32, #tpu.memory_space<vmem>>, vector<1x1x8x8xf32>
    %57 = vector.shape_cast %56 : vector<1x1x8x8xf32> to vector<8x8xf32>
    %cst_58 = arith.constant dense<0.000000e+00> : vector<256x8xf32>
    %58 = tpu.matmul %55, %57, %cst_58 {dimension_numbers = #tpu.dot_dimension_numbers<[1], [0], [0], [1], [0, 0, 1, 1], [], []>} : vector<256x8xf32>, vector<8x8xf32>, vector<256x8xf32> -> vector<256x8xf32>
    %59 = arith.addf %53, %58 : vector<256x8xf32>
    %60 = vector.shape_cast %59 : vector<256x8xf32> to vector<4x64x8xf32>
    %c0_59 = arith.constant 0 : index
    %c0_60 = arith.constant 0 : index
    %61 = vector.load %arg2[%c0_59, %c0_60] : memref<4x1xf32, #tpu.memory_space<vmem>>, vector<4x1xf32>
    %62 = vector.shape_cast %61 : vector<4x1xf32> to vector<4x1x1xf32>
    %c0_61 = arith.constant 0 : index
    %c0_62 = arith.constant 0 : index
    %63 = vector.load %arg4[%c0_61, %c0_62] : memref<64x8xf32, #tpu.memory_space<vmem>>, vector<64x8xf32>
    %64 = vector.shape_cast %63 : vector<64x8xf32> to vector<1x64x8xf32>
    %65 = vector.broadcast %62 : vector<4x1x1xf32> to vector<4x64x8xf32>
    %66 = vector.broadcast %64 : vector<1x64x8xf32> to vector<4x64x8xf32>
    %67 = arith.mulf %65, %66 : vector<4x64x8xf32>
    %68 = arith.addf %60, %67 : vector<4x64x8xf32>
    %cst_63 = arith.constant 0.111111112 : f32
    %69 = vector.broadcast %cst_63 : f32 to vector<4x64x8xf32>
    %70 = arith.mulf %68, %69 : vector<4x64x8xf32>
    %c0_64 = arith.constant 0 : index
    %c0_65 = arith.constant 0 : index
    %71 = vector.load %arg5[%c0_64, %c0_65] : memref<1x8xf32, #tpu.memory_space<vmem>>, vector<1x8xf32>
    %72 = vector.shape_cast %71 : vector<1x8xf32> to vector<1x1x8xf32>
    %73 = vector.broadcast %72 : vector<1x1x8xf32> to vector<4x64x8xf32>
    %74 = arith.addf %70, %73 : vector<4x64x8xf32>
    %cst_66 = arith.constant 0.000000e+00 : f32
    %75 = vector.broadcast %cst_66 : f32 to vector<4x64x8xf32>
    %76 = arith.cmpf oge, %74, %75 : vector<4x64x8xf32>
    %cst_67 = arith.constant 2.000000e-01 : f32
    %77 = vector.broadcast %cst_67 : f32 to vector<4x64x8xf32>
    %78 = arith.mulf %77, %74 : vector<4x64x8xf32>
    %79 = arith.select %76, %74, %78 : vector<4x64x8xi1>, vector<4x64x8xf32>
    %cst_68 = arith.constant 1.41421354 : f32
    %80 = vector.broadcast %cst_68 : f32 to vector<4x64x8xf32>
    %81 = arith.mulf %79, %80 : vector<4x64x8xf32>
    %c0_69 = arith.constant 0 : index
    %c0_70 = arith.constant 0 : index
    %c0_71 = arith.constant 0 : index
    %82 = vector.load %arg6[%c0_69, %c0_70, %c0_71] : memref<4x64x8xf32, #tpu.memory_space<vmem>>, vector<4x64x8xf32>
    tpu.vector_store %arg6[%c0_69, %c0_70, %c0_71], %81 {strides = array<i32>} : memref<4x64x8xf32, #tpu.memory_space<vmem>>, vector<4x64x8xf32>,
    return
  }
  func.func @transform_0(%arg0: i32) -> (i32, i32, i32, i32) {
    %c0_i32 = arith.constant 0 : i32
    %c0_i32_0 = arith.constant 0 : i32
    %c0_i32_1 = arith.constant 0 : i32
    %c0_i32_2 = arith.constant 0 : i32
    return %arg0, %c0_i32, %c0_i32_0, %c0_i32_1 : i32, i32, i32, i32
  }
  func.func @transform_1(%arg0: i32) -> (i32, i32) {
    %c0_i32 = arith.constant 0 : i32
    %c0_i32_0 = arith.constant 0 : i32
    return %arg0, %c0_i32 : i32, i32
  }
  func.func @transform_2(%arg0: i32) -> (i32, i32, i32, i32) {
    %c0_i32 = arith.constant 0 : i32
    %c0_i32_0 = arith.constant 0 : i32
    %c0_i32_1 = arith.constant 0 : i32
    %c0_i32_2 = arith.constant 0 : i32
    %c0_i32_3 = arith.constant 0 : i32
    return %c0_i32, %c0_i32_0, %c0_i32_1, %c0_i32_2 : i32, i32, i32, i32
  }
  func.func @transform_3(%arg0: i32) -> (i32, i32) {
    %c0_i32 = arith.constant 0 : i32
    %c0_i32_0 = arith.constant 0 : i32
    %c0_i32_1 = arith.constant 0 : i32
    return %c0_i32, %c0_i32_0 : i32, i32
  }
  func.func @transform_4(%arg0: i32) -> (i32, i32) {
    %c0_i32 = arith.constant 0 : i32
    %c0_i32_0 = arith.constant 0 : i32
    %c0_i32_1 = arith.constant 0 : i32
    return %c0_i32, %c0_i32_0 : i32, i32
  }
  func.func @transform_5(%arg0: i32) -> (i32, i32, i32) {
    %c0_i32 = arith.constant 0 : i32
    %c0_i32_0 = arith.constant 0 : i32
    %c0_i32_1 = arith.constant 0 : i32
    return %arg0, %c0_i32, %c0_i32_0 : i32, i32, i32
  }
}

module attributes {stable_mosaic.version = 11 : i64} {
  func.func @_fc_out_cmap_kernel(%arg0: i32, %arg1: memref<4x512xf32, #tpu.memory_space<vmem>>, %arg2: memref<8x512xf32, #tpu.memory_space<vmem>>, %arg3: memref<1x8xf32, #tpu.memory_space<vmem>>, %arg4: memref<16x8xf32, #tpu.memory_space<vmem>>, %arg5: memref<1x16xf32, #tpu.memory_space<vmem>>, %arg6: memref<4x16xf32, #tpu.memory_space<vmem>>, %arg7: memref<4x1xf32, #tpu.memory_space<vmem>>, %arg8: memref<4x8xf32, #tpu.memory_space<vmem>>) attributes {dimension_semantics = [#tpu.dimension_semantics<arbitrary>], iteration_bounds = array<i64: 1>, scalar_prefetch = 0 : i64, scratch_operands = 1 : i64, tpu.core_type = #tpu.core_type<tc>, window_params = [{transform_indices = @transform_0, window_bounds = array<i64: 4, 512>}, {transform_indices = @transform_1, window_bounds = array<i64: 8, 512>}, {pipeline_mode = #tpu.pipeline_mode<synchronous>, transform_indices = @transform_2, window_bounds = array<i64: 1, 8>}, {pipeline_mode = #tpu.pipeline_mode<synchronous>, transform_indices = @transform_3, window_bounds = array<i64: 16, 8>}, {pipeline_mode = #tpu.pipeline_mode<synchronous>, transform_indices = @transform_4, window_bounds = array<i64: 1, 16>}, {pipeline_mode = #tpu.pipeline_mode<synchronous>, transform_indices = @transform_5, window_bounds = array<i64: 4, 16>}, {pipeline_mode = #tpu.pipeline_mode<synchronous>, transform_indices = @transform_6, window_bounds = array<i64: 4, 1>}]} {
    %c0_i32 = arith.constant 0 : i32
    %0 = arith.cmpi eq, %arg0, %c0_i32 : i32
    %1 = arith.extui %0 : i1 to i32
    %c0_i32_0 = arith.constant 0 : i32
    %2 = arith.cmpi ne, %1, %c0_i32_0 : i32
    scf.if %2 {
      %cst_10 = arith.constant 0.000000e+00 : f32
      %12 = vector.broadcast %cst_10 : f32 to vector<4x8xf32>
      %c0_11 = arith.constant 0 : index
      %c0_12 = arith.constant 0 : index
      %13 = vector.load %arg8[%c0_11, %c0_12] : memref<4x8xf32, #tpu.memory_space<vmem>>, vector<4x8xf32>
      tpu.vector_store %arg8[%c0_11, %c0_12], %12 {strides = array<i32>} : memref<4x8xf32, #tpu.memory_space<vmem>>, vector<4x8xf32>,
    } else {
    }
    %c0 = arith.constant 0 : index
    %c0_1 = arith.constant 0 : index
    %3 = vector.load %arg8[%c0, %c0_1] : memref<4x8xf32, #tpu.memory_space<vmem>>, vector<4x8xf32>
    %c0_2 = arith.constant 0 : index
    %c0_3 = arith.constant 0 : index
    %4 = vector.load %arg1[%c0_2, %c0_3] : memref<4x512xf32, #tpu.memory_space<vmem>>, vector<4x512xf32>
    %c0_4 = arith.constant 0 : index
    %c0_5 = arith.constant 0 : index
    %5 = vector.load %arg2[%c0_4, %c0_5] : memref<8x512xf32, #tpu.memory_space<vmem>>, vector<8x512xf32>
    %cst = arith.constant dense<0.000000e+00> : vector<4x8xf32>
    %6 = tpu.matmul %4, %5, %cst {dimension_numbers = #tpu.dot_dimension_numbers<[1], [1], [0], [0], [0, 0, 1, 0], [], []>} : vector<4x512xf32>, vector<8x512xf32>, vector<4x8xf32> -> vector<4x8xf32>
    %7 = arith.addf %3, %6 : vector<4x8xf32>
    %c0_6 = arith.constant 0 : index
    %c0_7 = arith.constant 0 : index
    %8 = vector.load %arg8[%c0_6, %c0_7] : memref<4x8xf32, #tpu.memory_space<vmem>>, vector<4x8xf32>
    tpu.vector_store %arg8[%c0_6, %c0_7], %7 {strides = array<i32>} : memref<4x8xf32, #tpu.memory_space<vmem>>, vector<4x8xf32>,
    %c0_i32_8 = arith.constant 0 : i32
    %9 = arith.cmpi eq, %arg0, %c0_i32_8 : i32
    %10 = arith.extui %9 : i1 to i32
    %c0_i32_9 = arith.constant 0 : i32
    %11 = arith.cmpi ne, %10, %c0_i32_9 : i32
    scf.if %11 {
      %c0_10 = arith.constant 0 : index
      %c0_11 = arith.constant 0 : index
      %12 = vector.load %arg8[%c0_10, %c0_11] : memref<4x8xf32, #tpu.memory_space<vmem>>, vector<4x8xf32>
      %cst_12 = arith.constant 0.0441941731 : f32
      %13 = vector.broadcast %cst_12 : f32 to vector<4x8xf32>
      %14 = arith.mulf %12, %13 : vector<4x8xf32>
      %c0_13 = arith.constant 0 : index
      %c0_14 = arith.constant 0 : index
      %15 = vector.load %arg3[%c0_13, %c0_14] : memref<1x8xf32, #tpu.memory_space<vmem>>, vector<1x8xf32>
      %16 = vector.broadcast %15 : vector<1x8xf32> to vector<4x8xf32>
      %17 = arith.addf %14, %16 : vector<4x8xf32>
      %cst_15 = arith.constant 0.000000e+00 : f32
      %18 = vector.broadcast %cst_15 : f32 to vector<4x8xf32>
      %19 = arith.cmpf oge, %17, %18 : vector<4x8xf32>
      %cst_16 = arith.constant 2.000000e-01 : f32
      %20 = vector.broadcast %cst_16 : f32 to vector<4x8xf32>
      %21 = arith.mulf %20, %17 : vector<4x8xf32>
      %22 = arith.select %19, %17, %21 : vector<4x8xi1>, vector<4x8xf32>
      %cst_17 = arith.constant 1.41421354 : f32
      %23 = vector.broadcast %cst_17 : f32 to vector<4x8xf32>
      %24 = arith.mulf %22, %23 : vector<4x8xf32>
      %c0_18 = arith.constant 0 : index
      %c0_19 = arith.constant 0 : index
      %25 = vector.load %arg4[%c0_18, %c0_19] : memref<16x8xf32, #tpu.memory_space<vmem>>, vector<16x8xf32>
      %cst_20 = arith.constant dense<0.000000e+00> : vector<4x16xf32>
      %26 = tpu.matmul %24, %25, %cst_20 {dimension_numbers = #tpu.dot_dimension_numbers<[1], [1], [0], [0], [0, 0, 1, 0], [], []>} : vector<4x8xf32>, vector<16x8xf32>, vector<4x16xf32> -> vector<4x16xf32>
      %cst_21 = arith.constant 0.353553385 : f32
      %27 = vector.broadcast %cst_21 : f32 to vector<4x16xf32>
      %28 = arith.mulf %26, %27 : vector<4x16xf32>
      %c0_22 = arith.constant 0 : index
      %c0_23 = arith.constant 0 : index
      %29 = vector.load %arg5[%c0_22, %c0_23] : memref<1x16xf32, #tpu.memory_space<vmem>>, vector<1x16xf32>
      %30 = vector.broadcast %29 : vector<1x16xf32> to vector<4x16xf32>
      %31 = arith.addf %28, %30 : vector<4x16xf32>
      %c0_24 = arith.constant 0 : index
      %c0_25 = arith.constant 0 : index
      %32 = vector.load %arg6[%c0_24, %c0_25] : memref<4x16xf32, #tpu.memory_space<vmem>>, vector<4x16xf32>
      %33 = arith.mulf %31, %32 : vector<4x16xf32>
      %cst_26 = arith.constant dense<0.000000e+00> : vector<4xf32>
      %34 = vector.multi_reduction <add>, %33, %cst_26 [1] : vector<4x16xf32> to vector<4xf32>
      %35 = vector.shape_cast %34 : vector<4xf32> to vector<4x1xf32>
      %cst_27 = arith.constant 2.500000e-01 : f32
      %36 = vector.broadcast %cst_27 : f32 to vector<4x1xf32>
      %37 = arith.mulf %35, %36 : vector<4x1xf32>
      %c0_28 = arith.constant 0 : index
      %c0_29 = arith.constant 0 : index
      %38 = vector.load %arg7[%c0_28, %c0_29] : memref<4x1xf32, #tpu.memory_space<vmem>>, vector<4x1xf32>
      tpu.vector_store %arg7[%c0_28, %c0_29], %37 {strides = array<i32>} : memref<4x1xf32, #tpu.memory_space<vmem>>, vector<4x1xf32>,
    } else {
    }
    return
  }
  func.func @transform_0(%arg0: i32) -> (i32, i32) {
    %c0_i32 = arith.constant 0 : i32
    %c0_i32_0 = arith.constant 0 : i32
    return %c0_i32, %arg0 : i32, i32
  }
  func.func @transform_1(%arg0: i32) -> (i32, i32) {
    %c0_i32 = arith.constant 0 : i32
    %c0_i32_0 = arith.constant 0 : i32
    return %c0_i32, %arg0 : i32, i32
  }
  func.func @transform_2(%arg0: i32) -> (i32, i32) {
    %c0_i32 = arith.constant 0 : i32
    %c0_i32_0 = arith.constant 0 : i32
    %c0_i32_1 = arith.constant 0 : i32
    return %c0_i32, %c0_i32_0 : i32, i32
  }
  func.func @transform_3(%arg0: i32) -> (i32, i32) {
    %c0_i32 = arith.constant 0 : i32
    %c0_i32_0 = arith.constant 0 : i32
    %c0_i32_1 = arith.constant 0 : i32
    return %c0_i32, %c0_i32_0 : i32, i32
  }
  func.func @transform_4(%arg0: i32) -> (i32, i32) {
    %c0_i32 = arith.constant 0 : i32
    %c0_i32_0 = arith.constant 0 : i32
    %c0_i32_1 = arith.constant 0 : i32
    return %c0_i32, %c0_i32_0 : i32, i32
  }
  func.func @transform_5(%arg0: i32) -> (i32, i32) {
    %c0_i32 = arith.constant 0 : i32
    %c0_i32_0 = arith.constant 0 : i32
    %c0_i32_1 = arith.constant 0 : i32
    return %c0_i32, %c0_i32_0 : i32, i32
  }
  func.func @transform_6(%arg0: i32) -> (i32, i32) {
    %c0_i32 = arith.constant 0 : i32
    %c0_i32_0 = arith.constant 0 : i32
    %c0_i32_1 = arith.constant 0 : i32
    return %c0_i32, %c0_i32_0 : i32, i32
  }
}

</mosaic_0001>

<llo_original>
// kernel: discriminator_epilogue.3
$region0: #{discriminator_epilogue.3}
  #allocation0 [shape = 'u32[]', space=smem, size = 0x4, offset = 0x4, fixed_abs, tag = 'smem constant byte address 0x4 - core index']
  #allocation1 [shape = 'u32[144,128]{1,0:T(1,128)}', space=vmem, size = 0x12000, scoped, tag = 'internal scratch']
  %s0 = inlined_call_operand.vmem [shape: f32[4,1,512], index: 0, kind: input, shape index: {}]
  %s1 = inlined_call_operand.hbm [shape: f32[1,1], index: 1, kind: output, shape index: {}]
  %s2 = sld [smem:[#allocation0]]
  $region14: #{discriminator_epilogue.3} parent=0
    _
  %s4 = ssub.s32 1, %s2
  %s5 = scalar_select 0, %s4, %s2
  $region1: #{discriminator_epilogue.3} parent=0
    #allocation2 [shape = 'u8[512]{0}', space=vmem, size = 0x400, scoped, tag = 'output window, operand 0, single buffered']
    #allocation3 [shape = 's32[1]{0}', space=sflag, size = 0x4, scoped, tag = 'scoped memory for discriminator_epilogue.3']
    %6 = vsyncpa [#allocation3], 0
    // Predicated region
    $region2: #{discriminator_epilogue.3} parent=1 // pred_check
      _
    $region3: #{discriminator_epilogue.3} parent=1 // pred_check_branch
      %8 = sbr.rel (0) target = $region5
    $region4: #{discriminator_epilogue.3} parent=1 // pred_region
      _
    $region5: #{discriminator_epilogue.3} parent=1 // pred_fallthru
      _
    %v9 = vld [vmem:[%s0] sm:$0xf]
    %v10 = vld [vmem:[%s0 + $0x4] sm:$0xf]
    %v11 = vld [vmem:[%s0 + $0x8] sm:$0xf]
    %v12 = vld [vmem:[%s0 + $0xc] sm:$0xf]
    %v17 = vlaneseq
    %v18 = vshrl.u32 %v17, 7
    %v19 = vsub.s32 0, %v18
    %v20 = vrot.slane %v9, %v19
    %v21 = vlaneseq
    %v22 = vshrl.u32 %v21, 7
    %v23 = vsub.s32 1, %v22
    %v24 = vrot.slane %v9, %v23
    %v25 = vlaneseq
    %v26 = vshrl.u32 %v25, 7
    %v27 = vsub.s32 2, %v26
    %v28 = vrot.slane %v9, %v27
    %v29 = vlaneseq
    %v30 = vshrl.u32 %v29, 7
    %v31 = vsub.s32 3, %v30
    %v32 = vrot.slane %v9, %v31
    %v33 = vlaneseq
    %v34 = vshrl.u32 %v33, 7
    %v35 = vsub.s32 0, %v34
    %v36 = vrot.slane %v10, %v35
    %v37 = vlaneseq
    %v38 = vshrl.u32 %v37, 7
    %v39 = vsub.s32 1, %v38
    %v40 = vrot.slane %v10, %v39
    %v41 = vlaneseq
    %v42 = vshrl.u32 %v41, 7
    %v43 = vsub.s32 2, %v42
    %v44 = vrot.slane %v10, %v43
    %v45 = vlaneseq
    %v46 = vshrl.u32 %v45, 7
    %v47 = vsub.s32 3, %v46
    %v48 = vrot.slane %v10, %v47
    %v49 = vlaneseq
    %v50 = vshrl.u32 %v49, 7
    %v51 = vsub.s32 0, %v50
    %v52 = vrot.slane %v11, %v51
    %v53 = vlaneseq
    %v54 = vshrl.u32 %v53, 7
    %v55 = vsub.s32 1, %v54
    %v56 = vrot.slane %v11, %v55
    %v57 = vlaneseq
    %v58 = vshrl.u32 %v57, 7
    %v59 = vsub.s32 2, %v58
    %v60 = vrot.slane %v11, %v59
    %v61 = vlaneseq
    %v62 = vshrl.u32 %v61, 7
    %v63 = vsub.s32 3, %v62
    %v64 = vrot.slane %v11, %v63
    %v65 = vlaneseq
    %v66 = vshrl.u32 %v65, 7
    %v67 = vsub.s32 0, %v66
    %v68 = vrot.slane %v12, %v67
    %v69 = vlaneseq
    %v70 = vshrl.u32 %v69, 7
    %v71 = vsub.s32 1, %v70
    %v72 = vrot.slane %v12, %v71
    %v73 = vlaneseq
    %v74 = vshrl.u32 %v73, 7
    %v75 = vsub.s32 2, %v74
    %v76 = vrot.slane %v12, %v75
    %v77 = vlaneseq
    %v78 = vshrl.u32 %v77, 7
    %v79 = vsub.s32 3, %v78
    %v80 = vrot.slane %v12, %v79
    %vm97 = vcmask 1040384
    %v98 = vsel %vm97, %v20, 0.0
    %v99 = vsel %vm97, %v36, 0.0
    %v100 = vadd.f32 %v98, %v99
    %v101 = vsel %vm97, %v52, 0.0
    %v102 = vadd.f32 %v100, %v101
    %v103 = vsel %vm97, %v68, 0.0
    %v104 = vadd.f32 %v102, %v103
    %v105 = vsel %vm97, %v24, 0.0
    %v106 = vsel %vm97, %v40, 0.0
    %v107 = vadd.f32 %v105, %v106
    %v108 = vsel %vm97, %v56, 0.0
    %v109 = vadd.f32 %v107, %v108
    %v110 = vsel %vm97, %v72, 0.0
    %v111 = vadd.f32 %v109, %v110
    %v112 = vsel %vm97, %v28, 0.0
    %v113 = vsel %vm97, %v44, 0.0
    %v114 = vadd.f32 %v112, %v113
    %v115 = vsel %vm97, %v60, 0.0
    %v116 = vadd.f32 %v114, %v115
    %v117 = vsel %vm97, %v76, 0.0
    %v118 = vadd.f32 %v116, %v117
    %v119 = vsel %vm97, %v32, 0.0
    %v120 = vsel %vm97, %v48, 0.0
    %v121 = vadd.f32 %v119, %v120
    %v122 = vsel %vm97, %v64, 0.0
    %v123 = vadd.f32 %v121, %v122
    %v124 = vsel %vm97, %v80, 0.0
    %v125 = vadd.f32 %v123, %v124
    %v126 = vrcp.pop 4.0
    %v127 = vmul.f32 %v104, %v126
    %v128 = vmul.f32 %v111, %v126
    %v129 = vmul.f32 %v118, %v126
    %v130 = vmul.f32 %v125, %v126
    %v135 = vcombine.low %v127, %v128
    %v136 = vcombine.low %v129, %v130
    %v138 = vunpack.c.l.s4 1966171168
    %v139 = vunpack.c.0.s8 %v138
    %v140 = vlaneseq
    %v141 = vshrl.u32 %v140, 7
    %v142 = vsub.s32 %v139, %v141
    %v143 = vrot.slane %v135, %v142
    %v145 = vunpack.c.l.s4 1966171168
    %v146 = vunpack.c.0.s8 %v145
    %v147 = vlaneseq
    %v148 = vshrl.u32 %v147, 7
    %v149 = vsub.s32 %v146, %v148
    %v150 = vrot.slane %v136, %v149
    %v151 = vcombine.low %v143, %v150
    %v153 = vunpack.c.l.s4 1966171168
    %v154 = vunpack.c.0.s8 %v153
    %v155 = vlaneseq
    %v156 = vshrl.u32 %v155, 7
    %v157 = vsub.s32 %v154, %v156
    %v158 = vrot.slane %v151, %v157
    %v160 = vsub.f32 %v9, %v158
    %v161 = vsub.f32 %v10, %v158
    %v162 = vsub.f32 %v11, %v158
    %v163 = vsub.f32 %v12, %v158
    %v164 = vmul.f32 %v160, %v160
    %v165 = vmul.f32 %v161, %v161
    %v166 = vmul.f32 %v162, %v162
    %v167 = vmul.f32 %v163, %v163
    %v172 = vlaneseq
    %v173 = vshrl.u32 %v172, 7
    %v174 = vsub.s32 0, %v173
    %v175 = vrot.slane %v164, %v174
    %v176 = vlaneseq
    %v177 = vshrl.u32 %v176, 7
    %v178 = vsub.s32 1, %v177
    %v179 = vrot.slane %v164, %v178
    %v180 = vlaneseq
    %v181 = vshrl.u32 %v180, 7
    %v182 = vsub.s32 2, %v181
    %v183 = vrot.slane %v164, %v182
    %v184 = vlaneseq
    %v185 = vshrl.u32 %v184, 7
    %v186 = vsub.s32 3, %v185
    %v187 = vrot.slane %v164, %v186
    %v188 = vlaneseq
    %v189 = vshrl.u32 %v188, 7
    %v190 = vsub.s32 0, %v189
    %v191 = vrot.slane %v165, %v190
    %v192 = vlaneseq
    %v193 = vshrl.u32 %v192, 7
    %v194 = vsub.s32 1, %v193
    %v195 = vrot.slane %v165, %v194
    %v196 = vlaneseq
    %v197 = vshrl.u32 %v196, 7
    %v198 = vsub.s32 2, %v197
    %v199 = vrot.slane %v165, %v198
    %v200 = vlaneseq
    %v201 = vshrl.u32 %v200, 7
    %v202 = vsub.s32 3, %v201
    %v203 = vrot.slane %v165, %v202
    %v204 = vlaneseq
    %v205 = vshrl.u32 %v204, 7
    %v206 = vsub.s32 0, %v205
    %v207 = vrot.slane %v166, %v206
    %v208 = vlaneseq
    %v209 = vshrl.u32 %v208, 7
    %v210 = vsub.s32 1, %v209
    %v211 = vrot.slane %v166, %v210
    %v212 = vlaneseq
    %v213 = vshrl.u32 %v212, 7
    %v214 = vsub.s32 2, %v213
    %v215 = vrot.slane %v166, %v214
    %v216 = vlaneseq
    %v217 = vshrl.u32 %v216, 7
    %v218 = vsub.s32 3, %v217
    %v219 = vrot.slane %v166, %v218
    %v220 = vlaneseq
    %v221 = vshrl.u32 %v220, 7
    %v222 = vsub.s32 0, %v221
    %v223 = vrot.slane %v167, %v222
    %v224 = vlaneseq
    %v225 = vshrl.u32 %v224, 7
    %v226 = vsub.s32 1, %v225
    %v227 = vrot.slane %v167, %v226
    %v228 = vlaneseq
    %v229 = vshrl.u32 %v228, 7
    %v230 = vsub.s32 2, %v229
    %v231 = vrot.slane %v167, %v230
    %v232 = vlaneseq
    %v233 = vshrl.u32 %v232, 7
    %v234 = vsub.s32 3, %v233
    %v235 = vrot.slane %v167, %v234
    %v252 = vsel %vm97, %v175, 0.0
    %v253 = vsel %vm97, %v191, 0.0
    %v254 = vadd.f32 %v252, %v253
    %v255 = vsel %vm97, %v207, 0.0
    %v256 = vadd.f32 %v254, %v255
    %v257 = vsel %vm97, %v223, 0.0
    %v258 = vadd.f32 %v256, %v257
    %v259 = vsel %vm97, %v179, 0.0
    %v260 = vsel %vm97, %v195, 0.0
    %v261 = vadd.f32 %v259, %v260
    %v262 = vsel %vm97, %v211, 0.0
    %v263 = vadd.f32 %v261, %v262
    %v264 = vsel %vm97, %v227, 0.0
    %v265 = vadd.f32 %v263, %v264
    %v266 = vsel %vm97, %v183, 0.0
    %v267 = vsel %vm97, %v199, 0.0
    %v268 = vadd.f32 %v266, %v267
    %v269 = vsel %vm97, %v215, 0.0
    %v270 = vadd.f32 %v268, %v269
    %v271 = vsel %vm97, %v231, 0.0
    %v272 = vadd.f32 %v270, %v271
    %v273 = vsel %vm97, %v187, 0.0
    %v274 = vsel %vm97, %v203, 0.0
    %v275 = vadd.f32 %v273, %v274
    %v276 = vsel %vm97, %v219, 0.0
    %v277 = vadd.f32 %v275, %v276
    %v278 = vsel %vm97, %v235, 0.0
    %v279 = vadd.f32 %v277, %v278
    %v280 = vmul.f32 %v258, %v126
    %v281 = vmul.f32 %v265, %v126
    %v282 = vmul.f32 %v272, %v126
    %v283 = vmul.f32 %v279, %v126
    %v284 = vadd.f32 %v280, 1e-08
    %v285 = vadd.f32 %v281, 1e-08
    %v286 = vadd.f32 %v282, 1e-08
    %v287 = vadd.f32 %v283, 1e-08
    %v288 = vrsqrt.pop %v284
    %v289 = vmul.f32 %v284, %v288
    %vm290 = vcmp.eq.f32.partialorder %v284, inf
    %v291 = vsel %vm290, %v284, %v289
    %vm292 = vcmp.eq.f32.partialorder %v284, 0.0
    %v293 = vand.u32 %v284, 2147483648
    %v294 = vsel %vm292, %v293, %v291
    %v295 = vrsqrt.pop %v285
    %v296 = vmul.f32 %v285, %v295
    %vm297 = vcmp.eq.f32.partialorder %v285, inf
    %v298 = vsel %vm297, %v285, %v296
    %vm299 = vcmp.eq.f32.partialorder %v285, 0.0
    %v300 = vand.u32 %v285, 2147483648
    %v301 = vsel %vm299, %v300, %v298
    %v302 = vrsqrt.pop %v286
    %v303 = vmul.f32 %v286, %v302
    %vm304 = vcmp.eq.f32.partialorder %v286, inf
    %v305 = vsel %vm304, %v286, %v303
    %vm306 = vcmp.eq.f32.partialorder %v286, 0.0
    %v307 = vand.u32 %v286, 2147483648
    %v308 = vsel %vm306, %v307, %v305
    %v309 = vrsqrt.pop %v287
    %v310 = vmul.f32 %v287, %v309
    %vm311 = vcmp.eq.f32.partialorder %v287, inf
    %v312 = vsel %vm311, %v287, %v310
    %vm313 = vcmp.eq.f32.partialorder %v287, 0.0
    %v314 = vand.u32 %v287, 2147483648
    %v315 = vsel %vm313, %v314, %v312
    %v316 = vsel %vm97, %v294, 0.0
    %v317 = vsel %vm97, %v301, 0.0
    %v318 = vadd.f32 %v316, %v317
    %v319 = vsel %vm97, %v308, 0.0
    %v320 = vadd.f32 %v318, %v319
    %v321 = vsel %vm97, %v315, 0.0
    %v322 = vadd.f32 %v320, %v321
    %323 = vadd.xlane.f32.xlu0 %v322
    %v324 = vpop.xlane.xlu0 %323
    %v325 = vrcp.pop 512.0
    %v326 = vmul.f32 %v324, %v325
    %vm327 = vcmask 0
    %328 = vst.msk [vmem:[#allocation2] sm:$0x1] %vm327, %v326
    // Predicated region
    $region6: #{discriminator_epilogue.3} parent=1 // pred_check
      _
    $region7: #{discriminator_epilogue.3} parent=1 // pred_check_branch
      %330 = sbr.rel (0) target = $region9
    $region8: #{discriminator_epilogue.3} parent=1 // pred_region
      %s332 = ssub.s32 16, 16
      %333 = vsyncadd [#allocation3], %s332
      %s335 = sshll.u32 [#allocation2], 4
      %s336 = int_to_ptr.vmem [resolvable:$true] %s335
      %338 = dma.vmem_to_hbm [thread:$0]  %s336, 16, %s1, [#allocation3]
    $region9: #{discriminator_epilogue.3} parent=1 // pred_fallthru
      _
    // Predicated region
    $region10: #{discriminator_epilogue.3} parent=1 // pred_check
      _
    $region11: #{discriminator_epilogue.3} parent=1 // pred_check_branch
      %340 = sbr.rel (0) target = $region13
    $region12: #{discriminator_epilogue.3} parent=1 // pred_region
      %341 = dma.done [#allocation3], 16
    $region13: #{discriminator_epilogue.3} parent=1 // pred_fallthru
      _
    %342 = vsyncpa [#allocation3], 1

// kernel: discriminator_epilogue.5
$region0: #{discriminator_epilogue.5}
  #allocation0 [shape = 'u32[]', space=smem, size = 0x4, offset = 0x4, fixed_abs, tag = 'smem constant byte address 0x4 - core index']
  #allocation1 [shape = 'u32[144,128]{1,0:T(1,128)}', space=vmem, size = 0x12000, scoped, tag = 'internal scratch']
  #allocation2 [shape = 'f32[4,8]{1,0:T(4,128)}', space=vmem, size = 0x800, scoped, tag = 'scratch operand']
  %s0 = inlined_call_operand.vmem [shape: f32[4,512], index: 0, kind: input, shape index: {}]
  %s1 = inlined_call_operand.vmem [shape: f32[8,512], index: 1, kind: input, shape index: {}]
  %s2 = inlined_call_operand.vmem [shape: f32[1,8], index: 2, kind: input, shape index: {}]
  %s3 = inlined_call_operand.vmem [shape: f32[16,8], index: 3, kind: input, shape index: {}]
  %s4 = inlined_call_operand.vmem [shape: f32[1,16], index: 4, kind: input, shape index: {}]
  %s5 = inlined_call_operand.vmem [shape: f32[4,16], index: 5, kind: input, shape index: {}]
  %s6 = inlined_call_operand.vmem [shape: f32[4,1], index: 6, kind: output, shape index: {}]
  %s7 = sld [smem:[#allocation0]]
  $region42: #{discriminator_epilogue.5} parent=0
    _
  %s9 = ssub.s32 1, %s7
  %s10 = scalar_select 0, %s9, %s7
  // Predicated region
  $region2: #{discriminator_epilogue.5} parent=0 // pred_check
    _
  $region3: #{discriminator_epilogue.5} parent=0 // pred_check_branch
    %12 = sbr.rel (0) target = $region5
  $region4: #{discriminator_epilogue.5} parent=0 // pred_region
    _
  $region5: #{discriminator_epilogue.5} parent=0 // pred_fallthru
    _
  // Predicated region
  $region6: #{discriminator_epilogue.5} parent=0 // pred_check
    _
  $region7: #{discriminator_epilogue.5} parent=0 // pred_check_branch
    %14 = sbr.rel (0) target = $region9
  $region8: #{discriminator_epilogue.5} parent=0 // pred_region
    _
  $region9: #{discriminator_epilogue.5} parent=0 // pred_fallthru
    _
  // Predicated region
  $region10: #{discriminator_epilogue.5} parent=0 // pred_check
    _
  $region11: #{discriminator_epilogue.5} parent=0 // pred_check_branch
    %16 = sbr.rel (0) target = $region13
  $region12: #{discriminator_epilogue.5} parent=0 // pred_region
    _
  $region13: #{discriminator_epilogue.5} parent=0 // pred_fallthru
    _
  // Predicated region
  $region14: #{discriminator_epilogue.5} parent=0 // pred_check
    _
  $region15: #{discriminator_epilogue.5} parent=0 // pred_check_branch
    %18 = sbr.rel (0) target = $region17
  $region16: #{discriminator_epilogue.5} parent=0 // pred_region
    _
  $region17: #{discriminator_epilogue.5} parent=0 // pred_fallthru
    _
  // Predicated region
  $region18: #{discriminator_epilogue.5} parent=0 // pred_check
    _
  $region19: #{discriminator_epilogue.5} parent=0 // pred_check_branch
    %20 = sbr.rel (0) target = $region21
  $region20: #{discriminator_epilogue.5} parent=0 // pred_region
    _
  $region21: #{discriminator_epilogue.5} parent=0 // pred_fallthru
    _
  // Predicated region
  $region22: #{discriminator_epilogue.5} parent=0 // pred_check
    _
  $region23: #{discriminator_epilogue.5} parent=0 // pred_check_branch
    %22 = sbr.rel (0) target = $region25
  $region24: #{discriminator_epilogue.5} parent=0 // pred_region
    _
  $region25: #{discriminator_epilogue.5} parent=0 // pred_fallthru
    _
  %p23 = scmp.eq.s32.totalorder 0, 0
  // Predicated region
  $region26: #{discriminator_epilogue.5} parent=0 // pred_check
    %p24 = pneg %p23
  $region27: #{discriminator_epilogue.5} parent=0 // pred_check_branch
    %26 = sbr.rel (%p24) target = $region29
  $region28: #{discriminator_epilogue.5} parent=0 // pred_region
    %vm27 = vcmask 60416
    %28 = vst.msk [vmem:[#allocation2] sm:$0xf] %vm27, 0.0
  $region29: #{discriminator_epilogue.5} parent=0 // pred_fallthru
    _
  %v29 = vld [vmem:[#allocation2] sm:$0xf]
  %v30 = vld [vmem:[%s0] sm:$0xff]
  %v31 = vld [vmem:[%s0 + $0x8] sm:$0xff]
  %v32 = vld [vmem:[%s1] sm:$0xff]
  %v33 = vld [vmem:[%s1 + $0x8] sm:$0xff]
  %v34 = vld [vmem:[%s1 + $0x10] sm:$0xff]
  %v35 = vld [vmem:[%s1 + $0x18] sm:$0xff]
  %v38 = vcombine.high %v30, %v30
  %v39 = vcombine.high %v31, %v31
  %42 = vmatprep.subr.mxu0 %v33
  %43 = vmatpush1.xpose.msra.mxu0 %v32
  %44 = vmatprep.subr.mxu0 0.0
  %45 = vmatpush1.xpose.msra.mxu0 0.0
  %46 = vmatprep.subr.mxu0 0.0
  %47 = vmatpush1.xpose.msra.mxu0 0.0
  %48 = vmatprep.subr.mxu0 0.0
  %49 = vmatpush1.xpose.msra.mxu0 0.0
  %50 = vmatprep.subr.mxu0 0.0
  %51 = vmatpush1.xpose.msra.mxu0 0.0
  %52 = vmatprep.subr.mxu0 0.0
  %53 = vmatpush1.xpose.msra.mxu0 0.0
  %54 = vmatprep.subr.mxu0 0.0
  %55 = vmatpush1.xpose.msra.mxu0 0.0
  %56 = vmatprep.subr.mxu0 0.0
  %57 = vmatpush1.xpose.msra.mxu0 0.0
  %58 = vmatprep.subr.mxu0 0.0
  %59 = vmatpush1.xpose.msra.mxu0 0.0
  %60 = vmatprep.subr.mxu0 0.0
  %61 = vmatpush1.xpose.msra.mxu0 0.0
  %62 = vmatprep.subr.mxu0 0.0
  %63 = vmatpush1.xpose.msra.mxu0 0.0
  %64 = vmatprep.subr.mxu0 0.0
  %65 = vmatpush1.xpose.msra.mxu0 0.0
  %66 = vmatprep.subr.mxu0 0.0
  %67 = vmatpush1.xpose.msra.mxu0 0.0
  %68 = vmatprep.subr.mxu0 0.0
  %69 = vmatpush1.xpose.msra.mxu0 0.0
  %70 = vmatprep.subr.mxu0 0.0
  %71 = vmatpush1.xpose.msra.mxu0 0.0
  %72 = vmatprep.subr.mxu0 0.0
  %73 = vmatpush1.xpose.msra.mxu0 0.0
  %74 = vmatprep.subr.mxu0 0.0
  %75 = vmatpush1.xpose.msra.mxu0 0.0
  %76 = vmatprep.subr.mxu0 0.0
  %77 = vmatpush1.xpose.msra.mxu0 0.0
  %78 = vmatprep.subr.mxu0 0.0
  %79 = vmatpush1.xpose.msra.mxu0 0.0
  %80 = vmatprep.subr.mxu0 0.0
  %81 = vmatpush1.xpose.msra.mxu0 0.0
  %82 = vmatprep.subr.mxu0 0.0
  %83 = vmatpush1.xpose.msra.mxu0 0.0
  %84 = vmatprep.subr.mxu0 0.0
  %85 = vmatpush1.xpose.msra.mxu0 0.0
  %86 = vmatprep.subr.mxu0 0.0
  %87 = vmatpush1.xpose.msra.mxu0 0.0
  %88 = vmatprep.subr.mxu0 0.0
  %89 = vmatpush1.xpose.msra.mxu0 0.0
  %90 = vmatprep.subr.mxu0 0.0
  %91 = vmatpush1.xpose.msra.mxu0 0.0
  %92 = vmatprep.subr.mxu0 0.0
  %93 = vmatpush1.xpose.msra.mxu0 0.0
  %94 = vmatprep.subr.mxu0 0.0
  %95 = vmatpush1.xpose.msra.mxu0 0.0
  %96 = vmatprep.subr.mxu0 0.0
  %97 = vmatpush1.xpose.msra.mxu0 0.0
  %98 = vmatprep.subr.mxu0 0.0
  %99 = vmatpush1.xpose.msra.mxu0 0.0
  %100 = vmatprep.subr.mxu0 0.0
  %101 = vmatpush1.xpose.msra.mxu0 0.0
  %102 = vmatprep.subr.mxu0 0.0
  %103 = vmatpush1.xpose.msra.mxu0 0.0
  %104 = vmatprep.subr.mxu0 0.0
  %105 = vmatpush1.xpose.msra.mxu0 0.0
  %106 = vmatprep.mubr.f32.mxu0 %v38
  %107 = vmatmul.mubr.f32.gmra.mrb[0].mxu0 %v30
  %v108 = vpop.f32.mrb[0].mxu0
  %v109 = vadd.f32 0.0, %v108
  %v110 = vpop.f32.mrb[0].mxu0
  %111 = vdwg.mxu0
  %112 = vmatprep.subr.mxu0 %v35
  %113 = vmatpush1.xpose.msra.mxu0 %v34
  %114 = vmatprep.subr.mxu0 0.0
  %115 = vmatpush1.xpose.msra.mxu0 0.0
  %116 = vmatprep.subr.mxu0 0.0
  %117 = vmatpush1.xpose.msra.mxu0 0.0
  %118 = vmatprep.subr.mxu0 0.0
  %119 = vmatpush1.xpose.msra.mxu0 0.0
  %120 = vmatprep.subr.mxu0 0.0
  %121 = vmatpush1.xpose.msra.mxu0 0.0
  %122 = vmatprep.subr.mxu0 0.0
  %123 = vmatpush1.xpose.msra.mxu0 0.0
  %124 = vmatprep.subr.mxu0 0.0
  %125 = vmatpush1.xpose.msra.mxu0 0.0
  %126 = vmatprep.subr.mxu0 0.0
  %127 = vmatpush1.xpose.msra.mxu0 0.0
  %128 = vmatprep.subr.mxu0 0.0
  %129 = vmatpush1.xpose.msra.mxu0 0.0
  %130 = vmatprep.subr.mxu0 0.0
  %131 = vmatpush1.xpose.msra.mxu0 0.0
  %132 = vmatprep.subr.mxu0 0.0
  %133 = vmatpush1.xpose.msra.mxu0 0.0
  %134 = vmatprep.subr.mxu0 0.0
  %135 = vmatpush1.xpose.msra.mxu0 0.0
  %136 = vmatprep.subr.mxu0 0.0
  %137 = vmatpush1.xpose.msra.mxu0 0.0
  %138 = vmatprep.subr.mxu0 0.0
  %139 = vmatpush1.xpose.msra.mxu0 0.0
  %140 = vmatprep.subr.mxu0 0.0
  %141 = vmatpush1.xpose.msra.mxu0 0.0
  %142 = vmatprep.subr.mxu0 0.0
  %143 = vmatpush1.xpose.msra.mxu0 0.0
  %144 = vmatprep.subr.mxu0 0.0
  %145 = vmatpush1.xpose.msra.mxu0 0.0
  %146 = vmatprep.subr.mxu0 0.0
  %147 = vmatpush1.xpose.msra.mxu0 0.0
  %148 = vmatprep.subr.mxu0 0.0
  %149 = vmatpush1.xpose.msra.mxu0 0.0
  %150 = vmatprep.subr.mxu0 0.0
  %151 = vmatpush1.xpose.msra.mxu0 0.0
  %152 = vmatprep.subr.mxu0 0.0
  %153 = vmatpush1.xpose.msra.mxu0 0.0
  %154 = vmatprep.subr.mxu0 0.0
  %155 = vmatpush1.xpose.msra.mxu0 0.0
  %156 = vmatprep.subr.mxu0 0.0
  %157 = vmatpush1.xpose.msra.mxu0 0.0
  %158 = vmatprep.subr.mxu0 0.0
  %159 = vmatpush1.xpose.msra.mxu0 0.0
  %160 = vmatprep.subr.mxu0 0.0
  %161 = vmatpush1.xpose.msra.mxu0 0.0
  %162 = vmatprep.subr.mxu0 0.0
  %163 = vmatpush1.xpose.msra.mxu0 0.0
  %164 = vmatprep.subr.mxu0 0.0
  %165 = vmatpush1.xpose.msra.mxu0 0.0
  %166 = vmatprep.subr.mxu0 0.0
  %167 = vmatpush1.xpose.msra.mxu0 0.0
  %168 = vmatprep.subr.mxu0 0.0
  %169 = vmatpush1.xpose.msra.mxu0 0.0
  %170 = vmatprep.subr.mxu0 0.0
  %171 = vmatpush1.xpose.msra.mxu0 0.0
  %172 = vmatprep.subr.mxu0 0.0
  %173 = vmatpush1.xpose.msra.mxu0 0.0
  %174 = vmatprep.subr.mxu0 0.0
  %175 = vmatpush1.xpose.msra.mxu0 0.0
  %176 = vmatprep.mubr.f32.mxu0 %v39
  %177 = vmatmul.mubr.f32.gmra.mrb[0].mxu0 %v31
  %v178 = vpop.f32.mrb[0].mxu0
  %v179 = vadd.f32 %v109, %v178
  %v180 = vpop.f32.mrb[0].mxu0
  %181 = vdwg.mxu0
  %v182 = vadd.f32 %v29, %v179
  %vm183 = vcmask 60416
  %184 = vst.msk [vmem:[#allocation2] sm:$0xf] %vm183, %v182
  // Predicated region
  $region30: #{discriminator_epilogue.5} parent=0 // pred_check
    %p185 = pneg %p23
  $region31: #{discriminator_epilogue.5} parent=0 // pred_check_branch
    %187 = sbr.rel (%p185) target = $region33
  $region32: #{discriminator_epilogue.5} parent=0 // pred_region
    %v188 = vld [vmem:[#allocation2] sm:$0xf]
    %v189 = vmul.f32 %v188, 0.044194173
    %v190 = vld [vmem:[%s2] sm:$0x1]
    %v192 = vlaneseq
    %v193 = vshrl.u32 %v192, 7
    %v194 = vsub.s32 0, %v193
    %v195 = vrot.slane %v190, %v194
    %v197 = vadd.f32 %v189, %v195
    %vm198 = vcmp.ge.f32.partialorder %v197, 0.0
    %v199 = vmul.f32 %v197, 0.2
    %v200 = vsel %vm198, %v197, %v199
    %v201 = vmul.f32 %v200, 1.4142135
    %v202 = vld [vmem:[%s3] sm:$0xff]
    %v203 = vld [vmem:[%s3 + $0x8] sm:$0xff]
    %vm204 = vcmask 64512
    %v206 = vsel %vm204, %v201, 0
    %v209 = vsel %vm204, %v202, 0
    %v212 = vsel %vm204, %v203, 0
    %214 = vmatprep.subr.mxu0 0.0
    %215 = vmatpush1.xpose.msra.mxu0 %v209
    %216 = vmatprep.subr.mxu0 0.0
    %217 = vmatpush1.xpose.msra.mxu0 %v212
    %218 = vmatprep.subr.mxu0 0.0
    %219 = vmatpush1.xpose.msra.mxu0 0.0
    %220 = vmatprep.subr.mxu0 0.0
    %221 = vmatpush1.xpose.msra.mxu0 0.0
    %222 = vmatprep.subr.mxu0 0.0
    %223 = vmatpush1.xpose.msra.mxu0 0.0
    %224 = vmatprep.subr.mxu0 0.0
    %225 = vmatpush1.xpose.msra.mxu0 0.0
    %226 = vmatprep.subr.mxu0 0.0
    %227 = vmatpush1.xpose.msra.mxu0 0.0
    %228 = vmatprep.subr.mxu0 0.0
    %229 = vmatpush1.xpose.msra.mxu0 0.0
    %230 = vmatprep.subr.mxu0 0.0
    %231 = vmatpush1.xpose.msra.mxu0 0.0
    %232 = vmatprep.subr.mxu0 0.0
    %233 = vmatpush1.xpose.msra.mxu0 0.0
    %234 = vmatprep.subr.mxu0 0.0
    %235 = vmatpush1.xpose.msra.mxu0 0.0
    %236 = vmatprep.subr.mxu0 0.0
    %237 = vmatpush1.xpose.msra.mxu0 0.0
    %238 = vmatprep.subr.mxu0 0.0
    %239 = vmatpush1.xpose.msra.mxu0 0.0
    %240 = vmatprep.subr.mxu0 0.0
    %241 = vmatpush1.xpose.msra.mxu0 0.0
    %242 = vmatprep.subr.mxu0 0.0
    %243 = vmatpush1.xpose.msra.mxu0 0.0
    %244 = vmatprep.subr.mxu0 0.0
    %245 = vmatpush1.xpose.msra.mxu0 0.0
    %246 = vmatprep.subr.mxu0 0.0
    %247 = vmatpush1.xpose.msra.mxu0 0.0
    %248 = vmatprep.subr.mxu0 0.0
    %249 = vmatpush1.xpose.msra.mxu0 0.0
    %250 = vmatprep.subr.mxu0 0.0
    %251 = vmatpush1.xpose.msra.mxu0 0.0
    %252 = vmatprep.subr.mxu0 0.0
    %253 = vmatpush1.xpose.msra.mxu0 0.0
    %254 = vmatprep.subr.mxu0 0.0
    %255 = vmatpush1.xpose.msra.mxu0 0.0
    %256 = vmatprep.subr.mxu0 0.0
    %257 = vmatpush1.xpose.msra.mxu0 0.0
    %258 = vmatprep.subr.mxu0 0.0
    %259 = vmatpush1.xpose.msra.mxu0 0.0
    %260 = vmatprep.subr.mxu0 0.0
    %261 = vmatpush1.xpose.msra.mxu0 0.0
    %262 = vmatprep.subr.mxu0 0.0
    %263 = vmatpush1.xpose.msra.mxu0 0.0
    %264 = vmatprep.subr.mxu0 0.0
    %265 = vmatpush1.xpose.msra.mxu0 0.0
    %266 = vmatprep.subr.mxu0 0.0
    %267 = vmatpush1.xpose.msra.mxu0 0.0
    %268 = vmatprep.subr.mxu0 0.0
    %269 = vmatpush1.xpose.msra.mxu0 0.0
    %270 = vmatprep.subr.mxu0 0.0
    %271 = vmatpush1.xpose.msra.mxu0 0.0
    %272 = vmatprep.subr.mxu0 0.0
    %273 = vmatpush1.xpose.msra.mxu0 0.0
    %274 = vmatprep.subr.mxu0 0.0
    %275 = vmatpush1.xpose.msra.mxu0 0.0
    %276 = vmatprep.subr.mxu0 0.0
    %277 = vmatpush1.xpose.msra.mxu0 0.0
    %278 = vmatprep.mubr.f32.mxu0 0.0
    %279 = vmatmul.mubr.f32.gmra.mrb[0].mxu0 %v206
    %v280 = vpop.f32.mrb[0].mxu0
    %v281 = vadd.f32 0.0, %v280
    %v282 = vpop.f32.mrb[0].mxu0
    %283 = vdwg.mxu0
    %v284 = vmul.f32 %v281, 0.35355338
    %v285 = vld [vmem:[%s4] sm:$0x1]
    %v287 = vlaneseq
    %v288 = vshrl.u32 %v287, 7
    %v289 = vsub.s32 0, %v288
    %v290 = vrot.slane %v285, %v289
    %v292 = vadd.f32 %v284, %v290
    %v293 = vld [vmem:[%s5] sm:$0xf]
    %v294 = vmul.f32 %v292, %v293
    %vm295 = vcmask 125952
    %v296 = vsel %vm295, %v294, 0.0
    %297 = vadd.xlane.f32.xlu0 %v296
    %v298 = vpop.xlane.xlu0 %297
    %v299 = vmul.f32 %v298, 0.25
    %vm300 = vcmask 3072
    %301 = vst.msk [vmem:[%s6] sm:$0xf] %vm300, %v299
  $region33: #{discriminator_epilogue.5} parent=0 // pred_fallthru
    _
  // Predicated region
  $region34: #{discriminator_epilogue.5} parent=0 // pred_check
    _
  $region35: #{discriminator_epilogue.5} parent=0 // pred_check_branch
    %303 = sbr.rel (0) target = $region37
  $region36: #{discriminator_epilogue.5} parent=0 // pred_region
    _
  $region37: #{discriminator_epilogue.5} parent=0 // pred_fallthru
    _
  // Predicated region
  $region38: #{discriminator_epilogue.5} parent=0 // pred_check
    _
  $region39: #{discriminator_epilogue.5} parent=0 // pred_check_branch
    %305 = sbr.rel (0) target = $region41
  $region40: #{discriminator_epilogue.5} parent=0 // pred_region
    _
  $region41: #{discriminator_epilogue.5} parent=0 // pred_fallthru
    _

// kernel: discriminator_epilogue.4
$region0: #{discriminator_epilogue.4}
  #allocation0 [shape = 'u32[]', space=smem, size = 0x4, offset = 0x4, fixed_abs, tag = 'smem constant byte address 0x4 - core index']
  #allocation1 [shape = 'u32[144,128]{1,0:T(1,128)}', space=vmem, size = 0x12000, scoped, tag = 'internal scratch']
  #allocation2 [shape = 'f32[4,10,10,8]{3,2,1,0:T(8,128)}', space=vmem, size = 0x50000, scoped, tag = 'scratch operand']
  %s0 = inlined_call_operand.vmem [shape: f32[4,8,8,8], index: 0, kind: input, shape index: {}]
  %s1 = inlined_call_operand.vmem [shape: f32[4,1], index: 1, kind: input, shape index: {}]
  %s2 = inlined_call_operand.vmem [shape: f32[3,3,8,8], index: 2, kind: input, shape index: {}]
  %s3 = inlined_call_operand.vmem [shape: f32[64,8], index: 3, kind: input, shape index: {}]
  %s4 = inlined_call_operand.vmem [shape: f32[1,8], index: 4, kind: input, shape index: {}]
  %s5 = inlined_call_operand.vmem [shape: f32[4,64,8], index: 5, kind: output, shape index: {}]
  %s6 = sld [smem:[#allocation0]]
  $region30: #{discriminator_epilogue.4} parent=0
    _
  %s8 = ssub.s32 1, %s6
  %s9 = scalar_select 0, %s8, %s6
  // Predicated region
  $region2: #{discriminator_epilogue.4} parent=0 // pred_check
    _
  $region3: #{discriminator_epilogue.4} parent=0 // pred_check_branch
    %11 = sbr.rel (0) target = $region5
  $region4: #{discriminator_epilogue.4} parent=0 // pred_region
    _
  $region5: #{discriminator_epilogue.4} parent=0 // pred_fallthru
    _
  // Predicated region
  $region6: #{discriminator_epilogue.4} parent=0 // pred_check
    _
  $region7: #{discriminator_epilogue.4} parent=0 // pred_check_branch
    %13 = sbr.rel (0) target = $region9
  $region8: #{discriminator_epilogue.4} parent=0 // pred_region
    _
  $region9: #{discriminator_epilogue.4} parent=0 // pred_fallthru
    _
  // Predicated region
  $region10: #{discriminator_epilogue.4} parent=0 // pred_check
    _
  $region11: #{discriminator_epilogue.4} parent=0 // pred_check_branch
    %15 = sbr.rel (0) target = $region13
  $region12: #{discriminator_epilogue.4} parent=0 // pred_region
    _
  $region13: #{discriminator_epilogue.4} parent=0 // pred_fallthru
    _
  // Predicated region
  $region14: #{discriminator_epilogue.4} parent=0 // pred_check
    _
  $region15: #{discriminator_epilogue.4} parent=0 // pred_check_branch
    %17 = sbr.rel (0) target = $region17
  $region16: #{discriminator_epilogue.4} parent=0 // pred_region
    _
  $region17: #{discriminator_epilogue.4} parent=0 // pred_fallthru
    _
  // Predicated region
  $region18: #{discriminator_epilogue.4} parent=0 // pred_check
    _
  $region19: #{discriminator_epilogue.4} parent=0 // pred_check_branch
    %19 = sbr.rel (0) target = $region21
  $region20: #{discriminator_epilogue.4} parent=0 // pred_region
    _
  $region21: #{discriminator_epilogue.4} parent=0 // pred_fallthru
    _
  %vm20 = vcmask 64512
  %21 = vst.msk [vmem:[#allocation2] sm:$0xff] %vm20, 0.0
  %vm22 = vcmask 58368
  %23 = vst.msk [vmem:[#allocation2 + $0x8] sm:$0x3] %vm22, 0.0
  %24 = vst.msk [vmem:[#allocation2 + $0x10] sm:$0xff] %vm20, 0.0
  %25 = vst.msk [vmem:[#allocation2 + $0x18] sm:$0x3] %vm22, 0.0
  %26 = vst.msk [vmem:[#allocation2 + $0x20] sm:$0xff] %vm20, 0.0
  %27 = vst.msk [vmem:[#allocation2 + $0x28] sm:$0x3] %vm22, 0.0
  %28 = vst.msk [vmem:[#allocation2 + $0x30] sm:$0xff] %vm20, 0.0
  %29 = vst.msk [vmem:[#allocation2 + $0x38] sm:$0x3] %vm22, 0.0
  %30 = vst.msk [vmem:[#allocation2 + $0x40] sm:$0xff] %vm20, 0.0
  %31 = vst.msk [vmem:[#allocation2 + $0x48] sm:$0x3] %vm22, 0.0
  %32 = vst.msk [vmem:[#allocation2 + $0x50] sm:$0xff] %vm20, 0.0
  %33 = vst.msk [vmem:[#allocation2 + $0x58] sm:$0x3] %vm22, 0.0
  %34 = vst.msk [vmem:[#allocation2 + $0x60] sm:$0xff] %vm20, 0.0
  %35 = vst.msk [vmem:[#allocation2 + $0x68] sm:$0x3] %vm22, 0.0
  %36 = vst.msk [vmem:[#allocation2 + $0x70] sm:$0xff] %vm20, 0.0
  %37 = vst.msk [vmem:[#allocation2 + $0x78] sm:$0x3] %vm22, 0.0
  %38 = vst.msk [vmem:[#allocation2 + $0x80] sm:$0xff] %vm20, 0.0
  %39 = vst.msk [vmem:[#allocation2 + $0x88] sm:$0x3] %vm22, 0.0
  %40 = vst.msk [vmem:[#allocation2 + $0x90] sm:$0xff] %vm20, 0.0
  %41 = vst.msk [vmem:[#allocation2 + $0x98] sm:$0x3] %vm22, 0.0
  %42 = vst.msk [vmem:[#allocation2 + $0xa0] sm:$0xff] %vm20, 0.0
  %43 = vst.msk [vmem:[#allocation2 + $0xa8] sm:$0x3] %vm22, 0.0
  %44 = vst.msk [vmem:[#allocation2 + $0xb0] sm:$0xff] %vm20, 0.0
  %45 = vst.msk [vmem:[#allocation2 + $0xb8] sm:$0x3] %vm22, 0.0
  %46 = vst.msk [vmem:[#allocation2 + $0xc0] sm:$0xff] %vm20, 0.0
  %47 = vst.msk [vmem:[#allocation2 + $0xc8] sm:$0x3] %vm22, 0.0
  %48 = vst.msk [vmem:[#allocation2 + $0xd0] sm:$0xff] %vm20, 0.0
  %49 = vst.msk [vmem:[#allocation2 + $0xd8] sm:$0x3] %vm22, 0.0
  %50 = vst.msk [vmem:[#allocation2 + $0xe0] sm:$0xff] %vm20, 0.0
  %51 = vst.msk [vmem:[#allocation2 + $0xe8] sm:$0x3] %vm22, 0.0
  %52 = vst.msk [vmem:[#allocation2 + $0xf0] sm:$0xff] %vm20, 0.0
  %53 = vst.msk [vmem:[#allocation2 + $0xf8] sm:$0x3] %vm22, 0.0
  %54 = vst.msk [vmem:[#allocation2 + $0x100] sm:$0xff] %vm20, 0.0
  %55 = vst.msk [vmem:[#allocation2 + $0x108] sm:$0x3] %vm22, 0.0
  %56 = vst.msk [vmem:[#allocation2 + $0x110] sm:$0xff] %vm20, 0.0
  %57 = vst.msk [vmem:[#allocation2 + $0x118] sm:$0x3] %vm22, 0.0
  %58 = vst.msk [vmem:[#allocation2 + $0x120] sm:$0xff] %vm20, 0.0
  %59 = vst.msk [vmem:[#allocation2 + $0x128] sm:$0x3] %vm22, 0.0
  %60 = vst.msk [vmem:[#allocation2 + $0x130] sm:$0xff] %vm20, 0.0
  %61 = vst.msk [vmem:[#allocation2 + $0x138] sm:$0x3] %vm22, 0.0
  %62 = vst.msk [vmem:[#allocation2 + $0x140] sm:$0xff] %vm20, 0.0
  %63 = vst.msk [vmem:[#allocation2 + $0x148] sm:$0x3] %vm22, 0.0
  %64 = vst.msk [vmem:[#allocation2 + $0x150] sm:$0xff] %vm20, 0.0
  %65 = vst.msk [vmem:[#allocation2 + $0x158] sm:$0x3] %vm22, 0.0
  %66 = vst.msk [vmem:[#allocation2 + $0x160] sm:$0xff] %vm20, 0.0
  %67 = vst.msk [vmem:[#allocation2 + $0x168] sm:$0x3] %vm22, 0.0
  %68 = vst.msk [vmem:[#allocation2 + $0x170] sm:$0xff] %vm20, 0.0
  %69 = vst.msk [vmem:[#allocation2 + $0x178] sm:$0x3] %vm22, 0.0
  %70 = vst.msk [vmem:[#allocation2 + $0x180] sm:$0xff] %vm20, 0.0
  %71 = vst.msk [vmem:[#allocation2 + $0x188] sm:$0x3] %vm22, 0.0
  %72 = vst.msk [vmem:[#allocation2 + $0x190] sm:$0xff] %vm20, 0.0
  %73 = vst.msk [vmem:[#allocation2 + $0x198] sm:$0x3] %vm22, 0.0
  %74 = vst.msk [vmem:[#allocation2 + $0x1a0] sm:$0xff] %vm20, 0.0
  %75 = vst.msk [vmem:[#allocation2 + $0x1a8] sm:$0x3] %vm22, 0.0
  %76 = vst.msk [vmem:[#allocation2 + $0x1b0] sm:$0xff] %vm20, 0.0
  %77 = vst.msk [vmem:[#allocation2 + $0x1b8] sm:$0x3] %vm22, 0.0
  %78 = vst.msk [vmem:[#allocation2 + $0x1c0] sm:$0xff] %vm20, 0.0
  %79 = vst.msk [vmem:[#allocation2 + $0x1c8] sm:$0x3] %vm22, 0.0
  %80 = vst.msk [vmem:[#allocation2 + $0x1d0] sm:$0xff] %vm20, 0.0
  %81 = vst.msk [vmem:[#allocation2 + $0x1d8] sm:$0x3] %vm22, 0.0
  %82 = vst.msk [vmem:[#allocation2 + $0x1e0] sm:$0xff] %vm20, 0.0
  %83 = vst.msk [vmem:[#allocation2 + $0x1e8] sm:$0x3] %vm22, 0.0
  %84 = vst.msk [vmem:[#allocation2 + $0x1f0] sm:$0xff] %vm20, 0.0
  %85 = vst.msk [vmem:[#allocation2 + $0x1f8] sm:$0x3] %vm22, 0.0
  %86 = vst.msk [vmem:[#allocation2 + $0x200] sm:$0xff] %vm20, 0.0
  %87 = vst.msk [vmem:[#allocation2 + $0x208] sm:$0x3] %vm22, 0.0
  %88 = vst.msk [vmem:[#allocation2 + $0x210] sm:$0xff] %vm20, 0.0
  %89 = vst.msk [vmem:[#allocation2 + $0x218] sm:$0x3] %vm22, 0.0
  %90 = vst.msk [vmem:[#allocation2 + $0x220] sm:$0xff] %vm20, 0.0
  %91 = vst.msk [vmem:[#allocation2 + $0x228] sm:$0x3] %vm22, 0.0
  %92 = vst.msk [vmem:[#allocation2 + $0x230] sm:$0xff] %vm20, 0.0
  %93 = vst.msk [vmem:[#allocation2 + $0x238] sm:$0x3] %vm22, 0.0
  %94 = vst.msk [vmem:[#allocation2 + $0x240] sm:$0xff] %vm20, 0.0
  %95 = vst.msk [vmem:[#allocation2 + $0x248] sm:$0x3] %vm22, 0.0
  %96 = vst.msk [vmem:[#allocation2 + $0x250] sm:$0xff] %vm20, 0.0
  %97 = vst.msk [vmem:[#allocation2 + $0x258] sm:$0x3] %vm22, 0.0
  %98 = vst.msk [vmem:[#allocation2 + $0x260] sm:$0xff] %vm20, 0.0
  %99 = vst.msk [vmem:[#allocation2 + $0x268] sm:$0x3] %vm22, 0.0
  %100 = vst.msk [vmem:[#allocation2 + $0x270] sm:$0xff] %vm20, 0.0
  %101 = vst.msk [vmem:[#allocation2 + $0x278] sm:$0x3] %vm22, 0.0
  %v102 = vld [vmem:[%s0] sm:$0xff]
  %v103 = vld [vmem:[%s0 + $0x8] sm:$0xff]
  %v104 = vld [vmem:[%s0 + $0x10] sm:$0xff]
  %v105 = vld [vmem:[%s0 + $0x18] sm:$0xff]
  %v106 = vld [vmem:[%s0 + $0x20] sm:$0xff]
  %v107 = vld [vmem:[%s0 + $0x28] sm:$0xff]
  %v108 = vld [vmem:[%s0 + $0x30] sm:$0xff]
  %v109 = vld [vmem:[%s0 + $0x38] sm:$0xff]
  %v110 = vld [vmem:[%s0 + $0x40] sm:$0xff]
  %v111 = vld [vmem:[%s0 + $0x48] sm:$0xff]
  %v112 = vld [vmem:[%s0 + $0x50] sm:$0xff]
  %v113 = vld [vmem:[%s0 + $0x58] sm:$0xff]
  %v114 = vld [vmem:[%s0 + $0x60] sm:$0xff]
  %v115 = vld [vmem:[%s0 + $0x68] sm:$0xff]
  %v116 = vld [vmem:[%s0 + $0x70] sm:$0xff]
  %v117 = vld [vmem:[%s0 + $0x78] sm:$0xff]
  %v118 = vld [vmem:[%s0 + $0x80] sm:$0xff]
  %v119 = vld [vmem:[%s0 + $0x88] sm:$0xff]
  %v120 = vld [vmem:[%s0 + $0x90] sm:$0xff]
  %v121 = vld [vmem:[%s0 + $0x98] sm:$0xff]
  %v122 = vld [vmem:[%s0 + $0xa0] sm:$0xff]
  %v123 = vld [vmem:[%s0 + $0xa8] sm:$0xff]
  %v124 = vld [vmem:[%s0 + $0xb0] sm:$0xff]
  %v125 = vld [vmem:[%s0 + $0xb8] sm:$0xff]
  %v126 = vld [vmem:[%s0 + $0xc0] sm:$0xff]
  %v127 = vld [vmem:[%s0 + $0xc8] sm:$0xff]
  %v128 = vld [vmem:[%s0 + $0xd0] sm:$0xff]
  %v129 = vld [vmem:[%s0 + $0xd8] sm:$0xff]
  %v130 = vld [vmem:[%s0 + $0xe0] sm:$0xff]
  %v131 = vld [vmem:[%s0 + $0xe8] sm:$0xff]
  %v132 = vld [vmem:[%s0 + $0xf0] sm:$0xff]
  %v133 = vld [vmem:[%s0 + $0xf8] sm:$0xff]
  %s134 = scalar_lea.vmem [#allocation2], 16
  %135 = vst.msk [vmem:[%s134 + $0x1] sm:$0xff] %vm20, %v102
  %136 = vst.msk [vmem:[%s134 + $0x11] sm:$0xff] %vm20, %v103
  %137 = vst.msk [vmem:[%s134 + $0x21] sm:$0xff] %vm20, %v104
  %138 = vst.msk [vmem:[%s134 + $0x31] sm:$0xff] %vm20, %v105
  %139 = vst.msk [vmem:[%s134 + $0x41] sm:$0xff] %vm20, %v106
  %140 = vst.msk [vmem:[%s134 + $0x51] sm:$0xff] %vm20, %v107
  %141 = vst.msk [vmem:[%s134 + $0x61] sm:$0xff] %vm20, %v108
  %142 = vst.msk [vmem:[%s134 + $0x71] sm:$0xff] %vm20, %v109
  %143 = vst.msk [vmem:[%s134 + $0xa1] sm:$0xff] %vm20, %v110
  %144 = vst.msk [vmem:[%s134 + $0xb1] sm:$0xff] %vm20, %v111
  %145 = vst.msk [vmem:[%s134 + $0xc1] sm:$0xff] %vm20, %v112
  %146 = vst.msk [vmem:[%s134 + $0xd1] sm:$0xff] %vm20, %v113
  %147 = vst.msk [vmem:[%s134 + $0xe1] sm:$0xff] %vm20, %v114
  %148 = vst.msk [vmem:[%s134 + $0xf1] sm:$0xff] %vm20, %v115
  %149 = vst.msk [vmem:[%s134 + $0x101] sm:$0xff] %vm20, %v116
  %150 = vst.msk [vmem:[%s134 + $0x111] sm:$0xff] %vm20, %v117
  %151 = vst.msk [vmem:[%s134 + $0x141] sm:$0xff] %vm20, %v118
  %152 = vst.msk [vmem:[%s134 + $0x151] sm:$0xff] %vm20, %v119
  %153 = vst.msk [vmem:[%s134 + $0x161] sm:$0xff] %vm20, %v120
  %154 = vst.msk [vmem:[%s134 + $0x171] sm:$0xff] %vm20, %v121
  %155 = vst.msk [vmem:[%s134 + $0x181] sm:$0xff] %vm20, %v122
  %156 = vst.msk [vmem:[%s134 + $0x191] sm:$0xff] %vm20, %v123
  %157 = vst.msk [vmem:[%s134 + $0x1a1] sm:$0xff] %vm20, %v124
  %158 = vst.msk [vmem:[%s134 + $0x1b1] sm:$0xff] %vm20, %v125
  %159 = vst.msk [vmem:[%s134 + $0x1e1] sm:$0xff] %vm20, %v126
  %160 = vst.msk [vmem:[%s134 + $0x1f1] sm:$0xff] %vm20, %v127
  %161 = vst.msk [vmem:[%s134 + $0x201] sm:$0xff] %vm20, %v128
  %162 = vst.msk [vmem:[%s134 + $0x211] sm:$0xff] %vm20, %v129
  %163 = vst.msk [vmem:[%s134 + $0x221] sm:$0xff] %vm20, %v130
  %164 = vst.msk [vmem:[%s134 + $0x231] sm:$0xff] %vm20, %v131
  %165 = vst.msk [vmem:[%s134 + $0x241] sm:$0xff] %vm20, %v132
  %166 = vst.msk [vmem:[%s134 + $0x251] sm:$0xff] %vm20, %v133
  %v167 = vld [vmem:[#allocation2] sm:$0xff]
  %v168 = vld [vmem:[#allocation2 + $0x8] sm:$0x3]
  %v169 = vld [vmem:[#allocation2 + $0x10] sm:$0xff]
  %v170 = vld [vmem:[#allocation2 + $0x18] sm:$0x3]
  %v171 = vld [vmem:[#allocation2 + $0x20] sm:$0xff]
  %v172 = vld [vmem:[#allocation2 + $0x28] sm:$0x3]
  %v173 = vld [vmem:[#allocation2 + $0x30] sm:$0xff]
  %v174 = vld [vmem:[#allocation2 + $0x38] sm:$0x3]
  %v175 = vld [vmem:[#allocation2 + $0x40] sm:$0xff]
  %v176 = vld [vmem:[#allocation2 + $0x48] sm:$0x3]
  %v177 = vld [vmem:[#allocation2 + $0x50] sm:$0xff]
  %v178 = vld [vmem:[#allocation2 + $0x58] sm:$0x3]
  %v179 = vld [vmem:[#allocation2 + $0x60] sm:$0xff]
  %v180 = vld [vmem:[#allocation2 + $0x68] sm:$0x3]
  %v181 = vld [vmem:[#allocation2 + $0x70] sm:$0xff]
  %v182 = vld [vmem:[#allocation2 + $0x78] sm:$0x3]
  %v183 = vld [vmem:[#allocation2 + $0x80] sm:$0xff]
  %v184 = vld [vmem:[#allocation2 + $0x88] sm:$0x3]
  %v185 = vld [vmem:[#allocation2 + $0x90] sm:$0xff]
  %v186 = vld [vmem:[#allocation2 + $0x98] sm:$0x3]
  %v187 = vld [vmem:[#allocation2 + $0xa0] sm:$0xff]
  %v188 = vld [vmem:[#allocation2 + $0xa8] sm:$0x3]
  %v189 = vld [vmem:[#allocation2 + $0xb0] sm:$0xff]
  %v190 = vld [vmem:[#allocation2 + $0xb8] sm:$0x3]
  %v191 = vld [vmem:[#allocation2 + $0xc0] sm:$0xff]
  %v192 = vld [vmem:[#allocation2 + $0xc8] sm:$0x3]
  %v193 = vld [vmem:[#allocation2 + $0xd0] sm:$0xff]
  %v194 = vld [vmem:[#allocation2 + $0xd8] sm:$0x3]
  %v195 = vld [vmem:[#allocation2 + $0xe0] sm:$0xff]
  %v196 = vld [vmem:[#allocation2 + $0xe8] sm:$0x3]
  %v197 = vld [vmem:[#allocation2 + $0xf0] sm:$0xff]
  %v198 = vld [vmem:[#allocation2 + $0xf8] sm:$0x3]
  %v199 = vld [vmem:[#allocation2 + $0x100] sm:$0xff]
  %v200 = vld [vmem:[#allocation2 + $0x108] sm:$0x3]
  %v201 = vld [vmem:[#allocation2 + $0x110] sm:$0xff]
  %v202 = vld [vmem:[#allocation2 + $0x118] sm:$0x3]
  %v203 = vld [vmem:[#allocation2 + $0x120] sm:$0xff]
  %v204 = vld [vmem:[#allocation2 + $0x128] sm:$0x3]
  %v205 = vld [vmem:[#allocation2 + $0x130] sm:$0xff]
  %v206 = vld [vmem:[#allocation2 + $0x138] sm:$0x3]
  %v207 = vld [vmem:[#allocation2 + $0x140] sm:$0xff]
  %v208 = vld [vmem:[#allocation2 + $0x148] sm:$0x3]
  %v209 = vld [vmem:[#allocation2 + $0x150] sm:$0xff]
  %v210 = vld [vmem:[#allocation2 + $0x158] sm:$0x3]
  %v211 = vld [vmem:[#allocation2 + $0x160] sm:$0xff]
  %v212 = vld [vmem:[#allocation2 + $0x168] sm:$0x3]
  %v213 = vld [vmem:[#allocation2 + $0x170] sm:$0xff]
  %v214 = vld [vmem:[#allocation2 + $0x178] sm:$0x3]
  %v215 = vld [vmem:[#allocation2 + $0x180] sm:$0xff]
  %v216 = vld [vmem:[#allocation2 + $0x188] sm:$0x3]
  %v217 = vld [vmem:[#allocation2 + $0x190] sm:$0xff]
  %v218 = vld [vmem:[#allocation2 + $0x198] sm:$0x3]
  %v219 = vld [vmem:[#allocation2 + $0x1a0] sm:$0xff]
  %v220 = vld [vmem:[#allocation2 + $0x1a8] sm:$0x3]
  %v221 = vld [vmem:[#allocation2 + $0x1b0] sm:$0xff]
  %v222 = vld [vmem:[#allocation2 + $0x1b8] sm:$0x3]
  %v223 = vld [vmem:[#allocation2 + $0x1c0] sm:$0xff]
  %v224 = vld [vmem:[#allocation2 + $0x1c8] sm:$0x3]
  %v225 = vld [vmem:[#allocation2 + $0x1d0] sm:$0xff]
  %v226 = vld [vmem:[#allocation2 + $0x1d8] sm:$0x3]
  %v227 = vld [vmem:[#allocation2 + $0x1e0] sm:$0xff]
  %v228 = vld [vmem:[#allocation2 + $0x1e8] sm:$0x3]
  %v229 = vld [vmem:[#allocation2 + $0x1f0] sm:$0xff]
  %v230 = vld [vmem:[#allocation2 + $0x1f8] sm:$0x3]
  %v231 = vld [vmem:[#allocation2 + $0x200] sm:$0xff]
  %v232 = vld [vmem:[#allocation2 + $0x208] sm:$0x3]
  %v233 = vld [vmem:[#allocation2 + $0x210] sm:$0xff]
  %v234 = vld [vmem:[#allocation2 + $0x218] sm:$0x3]
  %v235 = vld [vmem:[#allocation2 + $0x220] sm:$0xff]
  %v236 = vld [vmem:[#allocation2 + $0x228] sm:$0x3]
  %v237 = vld [vmem:[#allocation2 + $0x230] sm:$0xff]
  %v238 = vld [vmem:[#allocation2 + $0x238] sm:$0x3]
  %v239 = vld [vmem:[#allocation2 + $0x240] sm:$0xff]
  %v240 = vld [vmem:[#allocation2 + $0x248] sm:$0x3]
  %v241 = vld [vmem:[#allocation2 + $0x250] sm:$0xff]
  %v242 = vld [vmem:[#allocation2 + $0x258] sm:$0x3]
  %v243 = vld [vmem:[#allocation2 + $0x260] sm:$0xff]
  %v244 = vld [vmem:[#allocation2 + $0x268] sm:$0x3]
  %v245 = vld [vmem:[#allocation2 + $0x270] sm:$0xff]
  %v246 = vld [vmem:[#allocation2 + $0x278] sm:$0x3]
  %v247 = vld [vmem:[%s2] sm:$0xff]
  %vm312 = vcmask 1046528
  %v313 = vrot.slane %v167, 1
  %v314 = vrot.slane %v168, 1
  %v315 = vsel %vm312, %v313, %v314
  %v316 = vrot.slane %v169, 1
  %v317 = vrot.slane %v170, 1
  %v318 = vsel %vm312, %v316, %v317
  %v319 = vrot.slane %v171, 1
  %v320 = vrot.slane %v172, 1
  %v321 = vsel %vm312, %v319, %v320
  %v322 = vrot.slane %v173, 1
  %v323 = vrot.slane %v174, 1
  %v324 = vsel %vm312, %v322, %v323
  %v325 = vrot.slane %v175, 1
  %v326 = vrot.slane %v176, 1
  %v327 = vsel %vm312, %v325, %v326
  %v328 = vrot.slane %v177, 1
  %v329 = vrot.slane %v178, 1
  %v330 = vsel %vm312, %v328, %v329
  %v331 = vrot.slane %v179, 1
  %v332 = vrot.slane %v180, 1
  %v333 = vsel %vm312, %v331, %v332
  %v334 = vrot.slane %v181, 1
  %v335 = vrot.slane %v182, 1
  %v336 = vsel %vm312, %v334, %v335
  %v337 = vrot.slane %v187, 1
  %v338 = vrot.slane %v188, 1
  %v339 = vsel %vm312, %v337, %v338
  %v340 = vrot.slane %v189, 1
  %v341 = vrot.slane %v190, 1
  %v342 = vsel %vm312, %v340, %v341
  %v343 = vrot.slane %v191, 1
  %v344 = vrot.slane %v192, 1
  %v345 = vsel %vm312, %v343, %v344
  %v346 = vrot.slane %v193, 1
  %v347 = vrot.slane %v194, 1
  %v348 = vsel %vm312, %v346, %v347
  %v349 = vrot.slane %v195, 1
  %v350 = vrot.slane %v196, 1
  %v351 = vsel %vm312, %v349, %v350
  %v352 = vrot.slane %v197, 1
  %v353 = vrot.slane %v198, 1
  %v354 = vsel %vm312, %v352, %v353
  %v355 = vrot.slane %v199, 1
  %v356 = vrot.slane %v200, 1
  %v357 = vsel %vm312, %v355, %v356
  %v358 = vrot.slane %v201, 1
  %v359 = vrot.slane %v202, 1
  %v360 = vsel %vm312, %v358, %v359
  %v361 = vrot.slane %v207, 1
  %v362 = vrot.slane %v208, 1
  %v363 = vsel %vm312, %v361, %v362
  %v364 = vrot.slane %v209, 1
  %v365 = vrot.slane %v210, 1
  %v366 = vsel %vm312, %v364, %v365
  %v367 = vrot.slane %v211, 1
  %v368 = vrot.slane %v212, 1
  %v369 = vsel %vm312, %v367, %v368
  %v370 = vrot.slane %v213, 1
  %v371 = vrot.slane %v214, 1
  %v372 = vsel %vm312, %v370, %v371
  %v373 = vrot.slane %v215, 1
  %v374 = vrot.slane %v216, 1
  %v375 = vsel %vm312, %v373, %v374
  %v376 = vrot.slane %v217, 1
  %v377 = vrot.slane %v218, 1
  %v378 = vsel %vm312, %v376, %v377
  %v379 = vrot.slane %v219, 1
  %v380 = vrot.slane %v220, 1
  %v381 = vsel %vm312, %v379, %v380
  %v382 = vrot.slane %v221, 1
  %v383 = vrot.slane %v222, 1
  %v384 = vsel %vm312, %v382, %v383
  %v385 = vrot.slane %v227, 1
  %v386 = vrot.slane %v228, 1
  %v387 = vsel %vm312, %v385, %v386
  %v388 = vrot.slane %v229, 1
  %v389 = vrot.slane %v230, 1
  %v390 = vsel %vm312, %v388, %v389
  %v391 = vrot.slane %v231, 1
  %v392 = vrot.slane %v232, 1
  %v393 = vsel %vm312, %v391, %v392
  %v394 = vrot.slane %v233, 1
  %v395 = vrot.slane %v234, 1
  %v396 = vsel %vm312, %v394, %v395
  %v397 = vrot.slane %v235, 1
  %v398 = vrot.slane %v236, 1
  %v399 = vsel %vm312, %v397, %v398
  %v400 = vrot.slane %v237, 1
  %v401 = vrot.slane %v238, 1
  %v402 = vsel %vm312, %v400, %v401
  %v403 = vrot.slane %v239, 1
  %v404 = vrot.slane %v240, 1
  %v405 = vsel %vm312, %v403, %v404
  %v406 = vrot.slane %v241, 1
  %v407 = vrot.slane %v242, 1
  %v408 = vsel %vm312, %v406, %v407
  %s409 = scalar_lea.vmem %s2, 8
  %v410 = vld [vmem:[%s409] sm:$0xff]
  %v411 = vsel %vm20, %v315, 0
  %v413 = vsel %vm20, %v318, 0
  %v415 = vsel %vm20, %v321, 0
  %v417 = vsel %vm20, %v324, 0
  %v419 = vsel %vm20, %v327, 0
  %v421 = vsel %vm20, %v330, 0
  %v423 = vsel %vm20, %v333, 0
  %v425 = vsel %vm20, %v336, 0
  %v427 = vsel %vm20, %v339, 0
  %v429 = vsel %vm20, %v342, 0
  %v431 = vsel %vm20, %v345, 0
  %v433 = vsel %vm20, %v348, 0
  %v435 = vsel %vm20, %v351, 0
  %v437 = vsel %vm20, %v354, 0
  %v439 = vsel %vm20, %v357, 0
  %v441 = vsel %vm20, %v360, 0
  %v443 = vsel %vm20, %v363, 0
  %v445 = vsel %vm20, %v366, 0
  %v447 = vsel %vm20, %v369, 0
  %v449 = vsel %vm20, %v372, 0
  %v451 = vsel %vm20, %v375, 0
  %v453 = vsel %vm20, %v378, 0
  %v455 = vsel %vm20, %v381, 0
  %v457 = vsel %vm20, %v384, 0
  %v459 = vsel %vm20, %v387, 0
  %v461 = vsel %vm20, %v390, 0
  %v463 = vsel %vm20, %v393, 0
  %v465 = vsel %vm20, %v396, 0
  %v467 = vsel %vm20, %v399, 0
  %v469 = vsel %vm20, %v402, 0
  %v471 = vsel %vm20, %v405, 0
  %v473 = vsel %vm20, %v408, 0
  %475 = vmatprep.subr.mxu0 0.0
  %476 = vmatpush1.msra.mxu0 %v410
  %477 = vmatprep.subr.mxu0 0.0
  %478 = vmatpush1.msra.mxu0 0.0
  %479 = vmatprep.subr.mxu0 0.0
  %480 = vmatpush1.msra.mxu0 0.0
  %481 = vmatprep.subr.mxu0 0.0
  %482 = vmatpush1.msra.mxu0 0.0
  %483 = vmatprep.subr.mxu0 0.0
  %484 = vmatpush1.msra.mxu0 0.0
  %485 = vmatprep.subr.mxu0 0.0
  %486 = vmatpush1.msra.mxu0 0.0
  %487 = vmatprep.subr.mxu0 0.0
  %488 = vmatpush1.msra.mxu0 0.0
  %489 = vmatprep.subr.mxu0 0.0
  %490 = vmatpush1.msra.mxu0 0.0
  %491 = vmatprep.subr.mxu0 0.0
  %492 = vmatpush1.msra.mxu0 0.0
  %493 = vmatprep.subr.mxu0 0.0
  %494 = vmatpush1.msra.mxu0 0.0
  %495 = vmatprep.subr.mxu0 0.0
  %496 = vmatpush1.msra.mxu0 0.0
  %497 = vmatprep.subr.mxu0 0.0
  %498 = vmatpush1.msra.mxu0 0.0
  %499 = vmatprep.subr.mxu0 0.0
  %500 = vmatpush1.msra.mxu0 0.0
  %501 = vmatprep.subr.mxu0 0.0
  %502 = vmatpush1.msra.mxu0 0.0
  %503 = vmatprep.subr.mxu0 0.0
  %504 = vmatpush1.msra.mxu0 0.0
  %505 = vmatprep.subr.mxu0 0.0
  %506 = vmatpush1.msra.mxu0 0.0
  %507 = vmatprep.subr.mxu0 0.0
  %508 = vmatpush1.msra.mxu0 0.0
  %509 = vmatprep.subr.mxu0 0.0
  %510 = vmatpush1.msra.mxu0 0.0
  %511 = vmatprep.subr.mxu0 0.0
  %512 = vmatpush1.msra.mxu0 0.0
  %513 = vmatprep.subr.mxu0 0.0
  %514 = vmatpush1.msra.mxu0 0.0
  %515 = vmatprep.subr.mxu0 0.0
  %516 = vmatpush1.msra.mxu0 0.0
  %517 = vmatprep.subr.mxu0 0.0
  %518 = vmatpush1.msra.mxu0 0.0
  %519 = vmatprep.subr.mxu0 0.0
  %520 = vmatpush1.msra.mxu0 0.0
  %521 = vmatprep.subr.mxu0 0.0
  %522 = vmatpush1.msra.mxu0 0.0
  %523 = vmatprep.subr.mxu0 0.0
  %524 = vmatpush1.msra.mxu0 0.0
  %525 = vmatprep.subr.mxu0 0.0
  %526 = vmatpush1.msra.mxu0 0.0
  %527 = vmatprep.subr.mxu0 0.0
  %528 = vmatpush1.msra.mxu0 0.0
  %529 = vmatprep.subr.mxu0 0.0
  %530 = vmatpush1.msra.mxu0 0.0
  %531 = vmatprep.subr.mxu0 0.0
  %532 = vmatpush1.msra.mxu0 0.0
  %533 = vmatprep.subr.mxu0 0.0
  %534 = vmatpush1.msra.mxu0 0.0
  %535 = vmatprep.subr.mxu0 0.0
  %536 = vmatpush1.msra.mxu0 0.0
  %537 = vmatprep.subr.mxu0 0.0
  %538 = vmatpush1.msra.mxu0 0.0
  %539 = vmatprep.mubr.f32.mxu0 0.0
  %540 = vmatmul.mubr.f32.gmra.mrb[0].mxu0 %v411
  %v541 = vpop.f32.mrb[0].mxu0
  %v542 = vadd.f32 0.0, %v541
  %v543 = vpop.f32.mrb[0].mxu0
  %544 = vmatprep.mubr.f32.mxu0 0.0
  %545 = vmatmul.mubr.f32.gmra.mrb[0].mxu0 %v413
  %v546 = vpop.f32.mrb[0].mxu0
  %v547 = vadd.f32 0.0, %v546
  %v548 = vpop.f32.mrb[0].mxu0
  %549 = vmatprep.mubr.f32.mxu0 0.0
  %550 = vmatmul.mubr.f32.gmra.mrb[0].mxu0 %v415
  %v551 = vpop.f32.mrb[0].mxu0
  %v552 = vadd.f32 0.0, %v551
  %v553 = vpop.f32.mrb[0].mxu0
  %554 = vmatprep.mubr.f32.mxu0 0.0
  %555 = vmatmul.mubr.f32.gmra.mrb[0].mxu0 %v417
  %v556 = vpop.f32.mrb[0].mxu0
  %v557 = vadd.f32 0.0, %v556
  %v558 = vpop.f32.mrb[0].mxu0
  %559 = vmatprep.mubr.f32.mxu0 0.0
  %560 = vmatmul.mubr.f32.gmra.mrb[0].mxu0 %v419
  %v561 = vpop.f32.mrb[0].mxu0
  %v562 = vadd.f32 0.0, %v561
  %v563 = vpop.f32.mrb[0].mxu0
  %564 = vmatprep.mubr.f32.mxu0 0.0
  %565 = vmatmul.mubr.f32.gmra.mrb[0].mxu0 %v421
  %v566 = vpop.f32.mrb[0].mxu0
  %v567 = vadd.f32 0.0, %v566
  %v568 = vpop.f32.mrb[0].mxu0
  %569 = vmatprep.mubr.f32.mxu0 0.0
  %570 = vmatmul.mubr.f32.gmra.mrb[0].mxu0 %v423
  %v571 = vpop.f32.mrb[0].mxu0
  %v572 = vadd.f32 0.0, %v571
  %v573 = vpop.f32.mrb[0].mxu0
  %574 = vmatprep.mubr.f32.mxu0 0.0
  %575 = vmatmul.mubr.f32.gmra.mrb[0].mxu0 %v425
  %v576 = vpop.f32.mrb[0].mxu0
  %v577 = vadd.f32 0.0, %v576
  %v578 = vpop.f32.mrb[0].mxu0
  %579 = vmatprep.mubr.f32.mxu0 0.0
  %580 = vmatmul.mubr.f32.gmra.mrb[0].mxu0 %v427
  %v581 = vpop.f32.mrb[0].mxu0
  %v582 = vadd.f32 0.0, %v581
  %v583 = vpop.f32.mrb[0].mxu0
  %584 = vmatprep.mubr.f32.mxu0 0.0
  %585 = vmatmul.mubr.f32.gmra.mrb[0].mxu0 %v429
  %v586 = vpop.f32.mrb[0].mxu0
  %v587 = vadd.f32 0.0, %v586
  %v588 = vpop.f32.mrb[0].mxu0
  %589 = vmatprep.mubr.f32.mxu0 0.0
  %590 = vmatmul.mubr.f32.gmra.mrb[0].mxu0 %v431
  %v591 = vpop.f32.mrb[0].mxu0
  %v592 = vadd.f32 0.0, %v591
  %v593 = vpop.f32.mrb[0].mxu0
  %594 = vmatprep.mubr.f32.mxu0 0.0
  %595 = vmatmul.mubr.f32.gmra.mrb[0].mxu0 %v433
  %v596 = vpop.f32.mrb[0].mxu0
  %v597 = vadd.f32 0.0, %v596
  %v598 = vpop.f32.mrb[0].mxu0
  %599 = vmatprep.mubr.f32.mxu0 0.0
  %600 = vmatmul.mubr.f32.gmra.mrb[0].mxu0 %v435
  %v601 = vpop.f32.mrb[0].mxu0
  %v602 = vadd.f32 0.0, %v601
  %v603 = vpop.f32.mrb[0].mxu0
  %604 = vmatprep.mubr.f32.mxu0 0.0
  %605 = vmatmul.mubr.f32.gmra.mrb[0].mxu0 %v437
  %v606 = vpop.f32.mrb[0].mxu0
  %v607 = vadd.f32 0.0, %v606
  %v608 = vpop.f32.mrb[0].mxu0
  %609 = vmatprep.mubr.f32.mxu0 0.0
  %610 = vmatmul.mubr.f32.gmra.mrb[0].mxu0 %v439
  %v611 = vpop.f32.mrb[0].mxu0
  %v612 = vadd.f32 0.0, %v611
  %v613 = vpop.f32.mrb[0].mxu0
  %614 = vmatprep.mubr.f32.mxu0 0.0
  %615 = vmatmul.mubr.f32.gmra.mrb[0].mxu0 %v441
  %v616 = vpop.f32.mrb[0].mxu0
  %v617 = vadd.f32 0.0, %v616
  %v618 = vpop.f32.mrb[0].mxu0
  %619 = vmatprep.mubr.f32.mxu0 0.0
  %620 = vmatmul.mubr.f32.gmra.mrb[0].mxu0 %v443
  %v621 = vpop.f32.mrb[0].mxu0
  %v622 = vadd.f32 0.0, %v621
  %v623 = vpop.f32.mrb[0].mxu0
  %624 = vmatprep.mubr.f32.mxu0 0.0
  %625 = vmatmul.mubr.f32.gmra.mrb[0].mxu0 %v445
  %v626 = vpop.f32.mrb[0].mxu0
  %v627 = vadd.f32 0.0, %v626
  %v628 = vpop.f32.mrb[0].mxu0
  %629 = vmatprep.mubr.f32.mxu0 0.0
  %630 = vmatmul.mubr.f32.gmra.mrb[0].mxu0 %v447
  %v631 = vpop.f32.mrb[0].mxu0
  %v632 = vadd.f32 0.0, %v631
  %v633 = vpop.f32.mrb[0].mxu0
  %634 = vmatprep.mubr.f32.mxu0 0.0
  %635 = vmatmul.mubr.f32.gmra.mrb[0].mxu0 %v449
  %v636 = vpop.f32.mrb[0].mxu0
  %v637 = vadd.f32 0.0, %v636
  %v638 = vpop.f32.mrb[0].mxu0
  %639 = vmatprep.mubr.f32.mxu0 0.0
  %640 = vmatmul.mubr.f32.gmra.mrb[0].mxu0 %v451
  %v641 = vpop.f32.mrb[0].mxu0
  %v642 = vadd.f32 0.0, %v641
  %v643 = vpop.f32.mrb[0].mxu0
  %644 = vmatprep.mubr.f32.mxu0 0.0
  %645 = vmatmul.mubr.f32.gmra.mrb[0].mxu0 %v453
  %v646 = vpop.f32.mrb[0].mxu0
  %v647 = vadd.f32 0.0, %v646
  %v648 = vpop.f32.mrb[0].mxu0
  %649 = vmatprep.mubr.f32.mxu0 0.0
  %650 = vmatmul.mubr.f32.gmra.mrb[0].mxu0 %v455
  %v651 = vpop.f32.mrb[0].mxu0
  %v652 = vadd.f32 0.0, %v651
  %v653 = vpop.f32.mrb[0].mxu0
  %654 = vmatprep.mubr.f32.mxu0 0.0
  %655 = vmatmul.mubr.f32.gmra.mrb[0].mxu0 %v457
  %v656 = vpop.f32.mrb[0].mxu0
  %v657 = vadd.f32 0.0, %v656
  %v658 = vpop.f32.mrb[0].mxu0
  %659 = vmatprep.mubr.f32.mxu0 0.0
  %660 = vmatmul.mubr.f32.gmra.mrb[0].mxu0 %v459
  %v661 = vpop.f32.mrb[0].mxu0
  %v662 = vadd.f32 0.0, %v661
  %v663 = vpop.f32.mrb[0].mxu0
  %664 = vmatprep.mubr.f32.mxu0 0.0
  %665 = vmatmul.mubr.f32.gmra.mrb[0].mxu0 %v461
  %v666 = vpop.f32.mrb[0].mxu0
  %v667 = vadd.f32 0.0, %v666
  %v668 = vpop.f32.mrb[0].mxu0
  %669 = vmatprep.mubr.f32.mxu0 0.0
  %670 = vmatmul.mubr.f32.gmra.mrb[0].mxu0 %v463
  %v671 = vpop.f32.mrb[0].mxu0
  %v672 = vadd.f32 0.0, %v671
  %v673 = vpop.f32.mrb[0].mxu0
  %674 = vmatprep.mubr.f32.mxu0 0.0
  %675 = vmatmul.mubr.f32.gmra.mrb[0].mxu0 %v465
  %v676 = vpop.f32.mrb[0].mxu0
  %v677 = vadd.f32 0.0, %v676
  %v678 = vpop.f32.mrb[0].mxu0
  %679 = vmatprep.mubr.f32.mxu0 0.0
  %680 = vmatmul.mubr.f32.gmra.mrb[0].mxu0 %v467
  %v681 = vpop.f32.mrb[0].mxu0
  %v682 = vadd.f32 0.0, %v681
  %v683 = vpop.f32.mrb[0].mxu0
  %684 = vmatprep.mubr.f32.mxu0 0.0
  %685 = vmatmul.mubr.f32.gmra.mrb[0].mxu0 %v469
  %v686 = vpop.f32.mrb[0].mxu0
  %v687 = vadd.f32 0.0, %v686
  %v688 = vpop.f32.mrb[0].mxu0
  %689 = vmatprep.mubr.f32.mxu0 0.0
  %690 = vmatmul.mubr.f32.gmra.mrb[0].mxu0 %v471
  %v691 = vpop.f32.mrb[0].mxu0
  %v692 = vadd.f32 0.0, %v691
  %v693 = vpop.f32.mrb[0].mxu0
  %694 = vmatprep.mubr.f32.mxu0 0.0
  %695 = vmatmul.mubr.f32.gmra.mrb[0].mxu0 %v473
  %v696 = vpop.f32.mrb[0].mxu0
  %v697 = vadd.f32 0.0, %v696
  %v698 = vpop.f32.mrb[0].mxu0
  %699 = vdwg.mxu0
  %v700 = vsel %vm20, %v167, 0
  %v702 = vsel %vm20, %v169, 0
  %v704 = vsel %vm20, %v171, 0
  %v706 = vsel %vm20, %v173, 0
  %v708 = vsel %vm20, %v175, 0
  %v710 = vsel %vm20, %v177, 0
  %v712 = vsel %vm20, %v179, 0
  %v714 = vsel %vm20, %v181, 0
  %v716 = vsel %vm20, %v187, 0
  %v718 = vsel %vm20, %v189, 0
  %v720 = vsel %vm20, %v191, 0
  %v722 = vsel %vm20, %v193, 0
  %v724 = vsel %vm20, %v195, 0
  %v726 = vsel %vm20, %v197, 0
  %v728 = vsel %vm20, %v199, 0
  %v730 = vsel %vm20, %v201, 0
  %v732 = vsel %vm20, %v207, 0
  %v734 = vsel %vm20, %v209, 0
  %v736 = vsel %vm20, %v211, 0
  %v738 = vsel %vm20, %v213, 0
  %v740 = vsel %vm20, %v215, 0
  %v742 = vsel %vm20, %v217, 0
  %v744 = vsel %vm20, %v219, 0
  %v746 = vsel %vm20, %v221, 0
  %v748 = vsel %vm20, %v227, 0
  %v750 = vsel %vm20, %v229, 0
  %v752 = vsel %vm20, %v231, 0
  %v754 = vsel %vm20, %v233, 0
  %v756 = vsel %vm20, %v235, 0
  %v758 = vsel %vm20, %v237, 0
  %v760 = vsel %vm20, %v239, 0
  %v762 = vsel %vm20, %v241, 0
  %764 = vmatprep.subr.mxu0 0.0
  %765 = vmatpush1.msra.mxu0 %v247
  %766 = vmatprep.subr.mxu0 0.0
  %767 = vmatpush1.msra.mxu0 0.0
  %768 = vmatprep.subr.mxu0 0.0
  %769 = vmatpush1.msra.mxu0 0.0
  %770 = vmatprep.subr.mxu0 0.0
  %771 = vmatpush1.msra.mxu0 0.0
  %772 = vmatprep.subr.mxu0 0.0
  %773 = vmatpush1.msra.mxu0 0.0
  %774 = vmatprep.subr.mxu0 0.0
  %775 = vmatpush1.msra.mxu0 0.0
  %776 = vmatprep.subr.mxu0 0.0
  %777 = vmatpush1.msra.mxu0 0.0
  %778 = vmatprep.subr.mxu0 0.0
  %779 = vmatpush1.msra.mxu0 0.0
  %780 = vmatprep.subr.mxu0 0.0
  %781 = vmatpush1.msra.mxu0 0.0
  %782 = vmatprep.subr.mxu0 0.0
  %783 = vmatpush1.msra.mxu0 0.0
  %784 = vmatprep.subr.mxu0 0.0
  %785 = vmatpush1.msra.mxu0 0.0
  %786 = vmatprep.subr.mxu0 0.0
  %787 = vmatpush1.msra.mxu0 0.0
  %788 = vmatprep.subr.mxu0 0.0
  %789 = vmatpush1.msra.mxu0 0.0
  %790 = vmatprep.subr.mxu0 0.0
  %791 = vmatpush1.msra.mxu0 0.0
  %792 = vmatprep.subr.mxu0 0.0
  %793 = vmatpush1.msra.mxu0 0.0
  %794 = vmatprep.subr.mxu0 0.0
  %795 = vmatpush1.msra.mxu0 0.0
  %796 = vmatprep.subr.mxu0 0.0
  %797 = vmatpush1.msra.mxu0 0.0
  %798 = vmatprep.subr.mxu0 0.0
  %799 = vmatpush1.msra.mxu0 0.0
  %800 = vmatprep.subr.mxu0 0.0
  %801 = vmatpush1.msra.mxu0 0.0
  %802 = vmatprep.subr.mxu0 0.0
  %803 = vmatpush1.msra.mxu0 0.0
  %804 = vmatprep.subr.mxu0 0.0
  %805 = vmatpush1.msra.mxu0 0.0
  %806 = vmatprep.subr.mxu0 0.0
  %807 = vmatpush1.msra.mxu0 0.0
  %808 = vmatprep.subr.mxu0 0.0
  %809 = vmatpush1.msra.mxu0 0.0
  %810 = vmatprep.subr.mxu0 0.0
  %811 = vmatpush1.msra.mxu0 0.0
  %812 = vmatprep.subr.mxu0 0.0
  %813 = vmatpush1.msra.mxu0 0.0
  %814 = vmatprep.subr.mxu0 0.0
  %815 = vmatpush1.msra.mxu0 0.0
  %816 = vmatprep.subr.mxu0 0.0
  %817 = vmatpush1.msra.mxu0 0.0
  %818 = vmatprep.subr.mxu0 0.0
  %819 = vmatpush1.msra.mxu0 0.0
  %820 = vmatprep.subr.mxu0 0.0
  %821 = vmatpush1.msra.mxu0 0.0
  %822 = vmatprep.subr.mxu0 0.0
  %823 = vmatpush1.msra.mxu0 0.0
  %824 = vmatprep.subr.mxu0 0.0
  %825 = vmatpush1.msra.mxu0 0.0
  %826 = vmatprep.subr.mxu0 0.0
  %827 = vmatpush1.msra.mxu0 0.0
  %828 = vmatprep.mubr.f32.mxu0 0.0
  %829 = vmatmul.mubr.f32.gmra.mrb[0].mxu0 %v700
  %v830 = vpop.f32.mrb[0].mxu0
  %v831 = vadd.f32 %v542, %v830
  %v832 = vpop.f32.mrb[0].mxu0
  %833 = vmatprep.mubr.f32.mxu0 0.0
  %834 = vmatmul.mubr.f32.gmra.mrb[0].mxu0 %v702
  %v835 = vpop.f32.mrb[0].mxu0
  %v836 = vadd.f32 %v547, %v835
  %v837 = vpop.f32.mrb[0].mxu0
  %838 = vmatprep.mubr.f32.mxu0 0.0
  %839 = vmatmul.mubr.f32.gmra.mrb[0].mxu0 %v704
  %v840 = vpop.f32.mrb[0].mxu0
  %v841 = vadd.f32 %v552, %v840
  %v842 = vpop.f32.mrb[0].mxu0
  %843 = vmatprep.mubr.f32.mxu0 0.0
  %844 = vmatmul.mubr.f32.gmra.mrb[0].mxu0 %v706
  %v845 = vpop.f32.mrb[0].mxu0
  %v846 = vadd.f32 %v557, %v845
  %v847 = vpop.f32.mrb[0].mxu0
  %848 = vmatprep.mubr.f32.mxu0 0.0
  %849 = vmatmul.mubr.f32.gmra.mrb[0].mxu0 %v708
  %v850 = vpop.f32.mrb[0].mxu0
  %v851 = vadd.f32 %v562, %v850
  %v852 = vpop.f32.mrb[0].mxu0
  %853 = vmatprep.mubr.f32.mxu0 0.0
  %854 = vmatmul.mubr.f32.gmra.mrb[0].mxu0 %v710
  %v855 = vpop.f32.mrb[0].mxu0
  %v856 = vadd.f32 %v567, %v855
  %v857 = vpop.f32.mrb[0].mxu0
  %858 = vmatprep.mubr.f32.mxu0 0.0
  %859 = vmatmul.mubr.f32.gmra.mrb[0].mxu0 %v712
  %v860 = vpop.f32.mrb[0].mxu0
  %v861 = vadd.f32 %v572, %v860
  %v862 = vpop.f32.mrb[0].mxu0
  %863 = vmatprep.mubr.f32.mxu0 0.0
  %864 = vmatmul.mubr.f32.gmra.mrb[0].mxu0 %v714
  %v865 = vpop.f32.mrb[0].mxu0
  %v866 = vadd.f32 %v577, %v865
  %v867 = vpop.f32.mrb[0].mxu0
  %868 = vmatprep.mubr.f32.mxu0 0.0
  %869 = vmatmul.mubr.f32.gmra.mrb[0].mxu0 %v716
  %v870 = vpop.f32.mrb[0].mxu0
  %v871 = vadd.f32 %v582, %v870
  %v872 = vpop.f32.mrb[0].mxu0
  %873 = vmatprep.mubr.f32.mxu0 0.0
  %874 = vmatmul.mubr.f32.gmra.mrb[0].mxu0 %v718
  %v875 = vpop.f32.mrb[0].mxu0
  %v876 = vadd.f32 %v587, %v875
  %v877 = vpop.f32.mrb[0].mxu0
  %878 = vmatprep.mubr.f32.mxu0 0.0
  %879 = vmatmul.mubr.f32.gmra.mrb[0].mxu0 %v720
  %v880 = vpop.f32.mrb[0].mxu0
  %v881 = vadd.f32 %v592, %v880
  %v882 = vpop.f32.mrb[0].mxu0
  %883 = vmatprep.mubr.f32.mxu0 0.0
  %884 = vmatmul.mubr.f32.gmra.mrb[0].mxu0 %v722
  %v885 = vpop.f32.mrb[0].mxu0
  %v886 = vadd.f32 %v597, %v885
  %v887 = vpop.f32.mrb[0].mxu0
  %888 = vmatprep.mubr.f32.mxu0 0.0
  %889 = vmatmul.mubr.f32.gmra.mrb[0].mxu0 %v724
  %v890 = vpop.f32.mrb[0].mxu0
  %v891 = vadd.f32 %v602, %v890
  %v892 = vpop.f32.mrb[0].mxu0
  %893 = vmatprep.mubr.f32.mxu0 0.0
  %894 = vmatmul.mubr.f32.gmra.mrb[0].mxu0 %v726
  %v895 = vpop.f32.mrb[0].mxu0
  %v896 = vadd.f32 %v607, %v895
  %v897 = vpop.f32.mrb[0].mxu0
  %898 = vmatprep.mubr.f32.mxu0 0.0
  %899 = vmatmul.mubr.f32.gmra.mrb[0].mxu0 %v728
  %v900 = vpop.f32.mrb[0].mxu0
  %v901 = vadd.f32 %v612, %v900
  %v902 = vpop.f32.mrb[0].mxu0
  %903 = vmatprep.mubr.f32.mxu0 0.0
  %904 = vmatmul.mubr.f32.gmra.mrb[0].mxu0 %v730
  %v905 = vpop.f32.mrb[0].mxu0
  %v906 = vadd.f32 %v617, %v905
  %v907 = vpop.f32.mrb[0].mxu0
  %908 = vmatprep.mubr.f32.mxu0 0.0
  %909 = vmatmul.mubr.f32.gmra.mrb[0].mxu0 %v732
  %v910 = vpop.f32.mrb[0].mxu0
  %v911 = vadd.f32 %v622, %v910
  %v912 = vpop.f32.mrb[0].mxu0
  %913 = vmatprep.mubr.f32.mxu0 0.0
  %914 = vmatmul.mubr.f32.gmra.mrb[0].mxu0 %v734
  %v915 = vpop.f32.mrb[0].mxu0
  %v916 = vadd.f32 %v627, %v915
  %v917 = vpop.f32.mrb[0].mxu0
  %918 = vmatprep.mubr.f32.mxu0 0.0
  %919 = vmatmul.mubr.f32.gmra.mrb[0].mxu0 %v736
  %v920 = vpop.f32.mrb[0].mxu0
  %v921 = vadd.f32 %v632, %v920
  %v922 = vpop.f32.mrb[0].mxu0
  %923 = vmatprep.mubr.f32.mxu0 0.0
  %924 = vmatmul.mubr.f32.gmra.mrb[0].mxu0 %v738
  %v925 = vpop.f32.mrb[0].mxu0
  %v926 = vadd.f32 %v637, %v925
  %v927 = vpop.f32.mrb[0].mxu0
  %928 = vmatprep.mubr.f32.mxu0 0.0
  %929 = vmatmul.mubr.f32.gmra.mrb[0].mxu0 %v740
  %v930 = vpop.f32.mrb[0].mxu0
  %v931 = vadd.f32 %v642, %v930
  %v932 = vpop.f32.mrb[0].mxu0
  %933 = vmatprep.mubr.f32.mxu0 0.0
  %934 = vmatmul.mubr.f32.gmra.mrb[0].mxu0 %v742
  %v935 = vpop.f32.mrb[0].mxu0
  %v936 = vadd.f32 %v647, %v935
  %v937 = vpop.f32.mrb[0].mxu0
  %938 = vmatprep.mubr.f32.mxu0 0.0
  %939 = vmatmul.mubr.f32.gmra.mrb[0].mxu0 %v744
  %v940 = vpop.f32.mrb[0].mxu0
  %v941 = vadd.f32 %v652, %v940
  %v942 = vpop.f32.mrb[0].mxu0
  %943 = vmatprep.mubr.f32.mxu0 0.0
  %944 = vmatmul.mubr.f32.gmra.mrb[0].mxu0 %v746
  %v945 = vpop.f32.mrb[0].mxu0
  %v946 = vadd.f32 %v657, %v945
  %v947 = vpop.f32.mrb[0].mxu0
  %948 = vmatprep.mubr.f32.mxu0 0.0
  %949 = vmatmul.mubr.f32.gmra.mrb[0].mxu0 %v748
  %v950 = vpop.f32.mrb[0].mxu0
  %v951 = vadd.f32 %v662, %v950
  %v952 = vpop.f32.mrb[0].mxu0
  %953 = vmatprep.mubr.f32.mxu0 0.0
  %954 = vmatmul.mubr.f32.gmra.mrb[0].mxu0 %v750
  %v955 = vpop.f32.mrb[0].mxu0
  %v956 = vadd.f32 %v667, %v955
  %v957 = vpop.f32.mrb[0].mxu0
  %958 = vmatprep.mubr.f32.mxu0 0.0
  %959 = vmatmul.mubr.f32.gmra.mrb[0].mxu0 %v752
  %v960 = vpop.f32.mrb[0].mxu0
  %v961 = vadd.f32 %v672, %v960
  %v962 = vpop.f32.mrb[0].mxu0
  %963 = vmatprep.mubr.f32.mxu0 0.0
  %964 = vmatmul.mubr.f32.gmra.mrb[0].mxu0 %v754
  %v965 = vpop.f32.mrb[0].mxu0
  %v966 = vadd.f32 %v677, %v965
  %v967 = vpop.f32.mrb[0].mxu0
  %968 = vmatprep.mubr.f32.mxu0 0.0
  %969 = vmatmul.mubr.f32.gmra.mrb[0].mxu0 %v756
  %v970 = vpop.f32.mrb[0].mxu0
  %v971 = vadd.f32 %v682, %v970
  %v972 = vpop.f32.mrb[0].mxu0
  %973 = vmatprep.mubr.f32.mxu0 0.0
  %974 = vmatmul.mubr.f32.gmra.mrb[0].mxu0 %v758
  %v975 = vpop.f32.mrb[0].mxu0
  %v976 = vadd.f32 %v687, %v975
  %v977 = vpop.f32.mrb[0].mxu0
  %978 = vmatprep.mubr.f32.mxu0 0.0
  %979 = vmatmul.mubr.f32.gmra.mrb[0].mxu0 %v760
  %v980 = vpop.f32.mrb[0].mxu0
  %v981 = vadd.f32 %v692, %v980
  %v982 = vpop.f32.mrb[0].mxu0
  %983 = vmatprep.mubr.f32.mxu0 0.0
  %984 = vmatmul.mubr.f32.gmra.mrb[0].mxu0 %v762
  %v985 = vpop.f32.mrb[0].mxu0
  %v986 = vadd.f32 %v697, %v985
  %v987 = vpop.f32.mrb[0].mxu0
  %988 = vdwg.mxu0
  %vm989 = vcmask 1045504
  %v990 = vrot.slane %v167, 2
  %v991 = vrot.slane %v168, 2
  %v992 = vsel %vm989, %v990, %v991
  %v993 = vrot.slane %v169, 2
  %v994 = vrot.slane %v170, 2
  %v995 = vsel %vm989, %v993, %v994
  %v996 = vrot.slane %v171, 2
  %v997 = vrot.slane %v172, 2
  %v998 = vsel %vm989, %v996, %v997
  %v999 = vrot.slane %v173, 2
  %v1000 = vrot.slane %v174, 2
  %v1001 = vsel %vm989, %v999, %v1000
  %v1002 = vrot.slane %v175, 2
  %v1003 = vrot.slane %v176, 2
  %v1004 = vsel %vm989, %v1002, %v1003
  %v1005 = vrot.slane %v177, 2
  %v1006 = vrot.slane %v178, 2
  %v1007 = vsel %vm989, %v1005, %v1006
  %v1008 = vrot.slane %v179, 2
  %v1009 = vrot.slane %v180, 2
  %v1010 = vsel %vm989, %v1008, %v1009
  %v1011 = vrot.slane %v181, 2
  %v1012 = vrot.slane %v182, 2
  %v1013 = vsel %vm989, %v1011, %v1012
  %v1014 = vrot.slane %v187, 2
  %v1015 = vrot.slane %v188, 2
  %v1016 = vsel %vm989, %v1014, %v1015
  %v1017 = vrot.slane %v189, 2
  %v1018 = vrot.slane %v190, 2
  %v1019 = vsel %vm989, %v1017, %v1018
  %v1020 = vrot.slane %v191, 2
  %v1021 = vrot.slane %v192, 2
  %v1022 = vsel %vm989, %v1020, %v1021
  %v1023 = vrot.slane %v193, 2
  %v1024 = vrot.slane %v194, 2
  %v1025 = vsel %vm989, %v1023, %v1024
  %v1026 = vrot.slane %v195, 2
  %v1027 = vrot.slane %v196, 2
  %v1028 = vsel %vm989, %v1026, %v1027
  %v1029 = vrot.slane %v197, 2
  %v1030 = vrot.slane %v198, 2
  %v1031 = vsel %vm989, %v1029, %v1030
  %v1032 = vrot.slane %v199, 2
  %v1033 = vrot.slane %v200, 2
  %v1034 = vsel %vm989, %v1032, %v1033
  %v1035 = vrot.slane %v201, 2
  %v1036 = vrot.slane %v202, 2
  %v1037 = vsel %vm989, %v1035, %v1036
  %v1038 = vrot.slane %v207, 2
  %v1039 = vrot.slane %v208, 2
  %v1040 = vsel %vm989, %v1038, %v1039
  %v1041 = vrot.slane %v209, 2
  %v1042 = vrot.slane %v210, 2
  %v1043 = vsel %vm989, %v1041, %v1042
  %v1044 = vrot.slane %v211, 2
  %v1045 = vrot.slane %v212, 2
  %v1046 = vsel %vm989, %v1044, %v1045
  %v1047 = vrot.slane %v213, 2
  %v1048 = vrot.slane %v214, 2
  %v1049 = vsel %vm989, %v1047, %v1048
  %v1050 = vrot.slane %v215, 2
  %v1051 = vrot.slane %v216, 2
  %v1052 = vsel %vm989, %v1050, %v1051
  %v1053 = vrot.slane %v217, 2
  %v1054 = vrot.slane %v218, 2
  %v1055 = vsel %vm989, %v1053, %v1054
  %v1056 = vrot.slane %v219, 2
  %v1057 = vrot.slane %v220, 2
  %v1058 = vsel %vm989, %v1056, %v1057
  %v1059 = vrot.slane %v221, 2
  %v1060 = vrot.slane %v222, 2
  %v1061 = vsel %vm989, %v1059, %v1060
  %v1062 = vrot.slane %v227, 2
  %v1063 = vrot.slane %v228, 2
  %v1064 = vsel %vm989, %v1062, %v1063
  %v1065 = vrot.slane %v229, 2
  %v1066 = vrot.slane %v230, 2
  %v1067 = vsel %vm989, %v1065, %v1066
  %v1068 = vrot.slane %v231, 2
  %v1069 = vrot.slane %v232, 2
  %v1070 = vsel %vm989, %v1068, %v1069
  %v1071 = vrot.slane %v233, 2
  %v1072 = vrot.slane %v234, 2
  %v1073 = vsel %vm989, %v1071, %v1072
  %v1074 = vrot.slane %v235, 2
  %v1075 = vrot.slane %v236, 2
  %v1076 = vsel %vm989, %v1074, %v1075
  %v1077 = vrot.slane %v237, 2
  %v1078 = vrot.slane %v238, 2
  %v1079 = vsel %vm989, %v1077, %v1078
  %v1080 = vrot.slane %v239, 2
  %v1081 = vrot.slane %v240, 2
  %v1082 = vsel %vm989, %v1080, %v1081
  %v1083 = vrot.slane %v241, 2
  %v1084 = vrot.slane %v242, 2
  %v1085 = vsel %vm989, %v1083, %v1084
  %s1086 = scalar_lea.vmem %s2, 16
  %v1087 = vld [vmem:[%s1086] sm:$0xff]
  %v1088 = vsel %vm20, %v992, 0
  %v1090 = vsel %vm20, %v995, 0
  %v1092 = vsel %vm20, %v998, 0
  %v1094 = vsel %vm20, %v1001, 0
  %v1096 = vsel %vm20, %v1004, 0
  %v1098 = vsel %vm20, %v1007, 0
  %v1100 = vsel %vm20, %v1010, 0
  %v1102 = vsel %vm20, %v1013, 0
  %v1104 = vsel %vm20, %v1016, 0
  %v1106 = vsel %vm20, %v1019, 0
  %v1108 = vsel %vm20, %v1022, 0
  %v1110 = vsel %vm20, %v1025, 0
  %v1112 = vsel %vm20, %v1028, 0
  %v1114 = vsel %vm20, %v1031, 0
  %v1116 = vsel %vm20, %v1034, 0
  %v1118 = vsel %vm20, %v1037, 0
  %v1120 = vsel %vm20, %v1040, 0
  %v1122 = vsel %vm20, %v1043, 0
  %v1124 = vsel %vm20, %v1046, 0
  %v1126 = vsel %vm20, %v1049, 0
  %v1128 = vsel %vm20, %v1052, 0
  %v1130 = vsel %vm20, %v1055, 0
  %v1132 = vsel %vm20, %v1058, 0
  %v1134 = vsel %vm20, %v1061, 0
  %v1136 = vsel %vm20, %v1064, 0
  %v1138 = vsel %vm20, %v1067, 0
  %v1140 = vsel %vm20, %v1070, 0
  %v1142 = vsel %vm20, %v1073, 0
  %v1144 = vsel %vm20, %v1076, 0
  %v1146 = vsel %vm20, %v1079, 0
  %v1148 = vsel %vm20, %v1082, 0
  %v1150 = vsel %vm20, %v1085, 0
  %1152 = vmatprep.subr.mxu0 0.0
  %1153 = vmatpush1.msra.mxu0 %v1087
  %1154 = vmatprep.subr.mxu0 0.0
  %1155 = vmatpush1.msra.mxu0 0.0
  %1156 = vmatprep.subr.mxu0 0.0
  %1157 = vmatpush1.msra.mxu0 0.0
  %1158 = vmatprep.subr.mxu0 0.0
  %1159 = vmatpush1.msra.mxu0 0.0
  %1160 = vmatprep.subr.mxu0 0.0
  %1161 = vmatpush1.msra.mxu0 0.0
  %1162 = vmatprep.subr.mxu0 0.0
  %1163 = vmatpush1.msra.mxu0 0.0
  %1164 = vmatprep.subr.mxu0 0.0
  %1165 = vmatpush1.msra.mxu0 0.0
  %1166 = vmatprep.subr.mxu0 0.0
  %1167 = vmatpush1.msra.mxu0 0.0
  %1168 = vmatprep.subr.mxu0 0.0
  %1169 = vmatpush1.msra.mxu0 0.0
  %1170 = vmatprep.subr.mxu0 0.0
  %1171 = vmatpush1.msra.mxu0 0.0
  %1172 = vmatprep.subr.mxu0 0.0
  %1173 = vmatpush1.msra.mxu0 0.0
  %1174 = vmatprep.subr.mxu0 0.0
  %1175 = vmatpush1.msra.mxu0 0.0
  %1176 = vmatprep.subr.mxu0 0.0
  %1177 = vmatpush1.msra.mxu0 0.0
  %1178 = vmatprep.subr.mxu0 0.0
  %1179 = vmatpush1.msra.mxu0 0.0
  %1180 = vmatprep.subr.mxu0 0.0
  %1181 = vmatpush1.msra.mxu0 0.0
  %1182 = vmatprep.subr.mxu0 0.0
  %1183 = vmatpush1.msra.mxu0 0.0
  %1184 = vmatprep.subr.mxu0 0.0
  %1185 = vmatpush1.msra.mxu0 0.0
  %1186 = vmatprep.subr.mxu0 0.0
  %1187 = vmatpush1.msra.mxu0 0.0
  %1188 = vmatprep.subr.mxu0 0.0
  %1189 = vmatpush1.msra.mxu0 0.0
  %1190 = vmatprep.subr.mxu0 0.0
  %1191 = vmatpush1.msra.mxu0 0.0
  %1192 = vmatprep.subr.mxu0 0.0
  %1193 = vmatpush1.msra.mxu0 0.0
  %1194 = vmatprep.subr.mxu0 0.0
  %1195 = vmatpush1.msra.mxu0 0.0
  %1196 = vmatprep.subr.mxu0 0.0
  %1197 = vmatpush1.msra.mxu0 0.0
  %1198 = vmatprep.subr.mxu0 0.0
  %1199 = vmatpush1.msra.mxu0 0.0
  %1200 = vmatprep.subr.mxu0 0.0
  %1201 = vmatpush1.msra.mxu0 0.0
  %1202 = vmatprep.subr.mxu0 0.0
  %1203 = vmatpush1.msra.mxu0 0.0
  %1204 = vmatprep.subr.mxu0 0.0
  %1205 = vmatpush1.msra.mxu0 0.0
  %1206 = vmatprep.subr.mxu0 0.0
  %1207 = vmatpush1.msra.mxu0 0.0
  %1208 = vmatprep.subr.mxu0 0.0
  %1209 = vmatpush1.msra.mxu0 0.0
  %1210 = vmatprep.subr.mxu0 0.0
  %1211 = vmatpush1.msra.mxu0 0.0
  %1212 = vmatprep.subr.mxu0 0.0
  %1213 = vmatpush1.msra.mxu0 0.0
  %1214 = vmatprep.subr.mxu0 0.0
  %1215 = vmatpush1.msra.mxu0 0.0
  %1216 = vmatprep.mubr.f32.mxu0 0.0
  %1217 = vmatmul.mubr.f32.gmra.mrb[0].mxu0 %v1088
  %v1218 = vpop.f32.mrb[0].mxu0
  %v1219 = vadd.f32 0.0, %v1218
  %v1220 = vpop.f32.mrb[0].mxu0
  %1221 = vmatprep.mubr.f32.mxu0 0.0
  %1222 = vmatmul.mubr.f32.gmra.mrb[0].mxu0 %v1090
  %v1223 = vpop.f32.mrb[0].mxu0
  %v1224 = vadd.f32 0.0, %v1223
  %v1225 = vpop.f32.mrb[0].mxu0
  %1226 = vmatprep.mubr.f32.mxu0 0.0
  %1227 = vmatmul.mubr.f32.gmra.mrb[0].mxu0 %v1092
  %v1228 = vpop.f32.mrb[0].mxu0
  %v1229 = vadd.f32 0.0, %v1228
  %v1230 = vpop.f32.mrb[0].mxu0
  %1231 = vmatprep.mubr.f32.mxu0 0.0
  %1232 = vmatmul.mubr.f32.gmra.mrb[0].mxu0 %v1094
  %v1233 = vpop.f32.mrb[0].mxu0
  %v1234 = vadd.f32 0.0, %v1233
  %v1235 = vpop.f32.mrb[0].mxu0
  %1236 = vmatprep.mubr.f32.mxu0 0.0
  %1237 = vmatmul.mubr.f32.gmra.mrb[0].mxu0 %v1096
  %v1238 = vpop.f32.mrb[0].mxu0
  %v1239 = vadd.f32 0.0, %v1238
  %v1240 = vpop.f32.mrb[0].mxu0
  %1241 = vmatprep.mubr.f32.mxu0 0.0
  %1242 = vmatmul.mubr.f32.gmra.mrb[0].mxu0 %v1098
  %v1243 = vpop.f32.mrb[0].mxu0
  %v1244 = vadd.f32 0.0, %v1243
  %v1245 = vpop.f32.mrb[0].mxu0
  %1246 = vmatprep.mubr.f32.mxu0 0.0
  %1247 = vmatmul.mubr.f32.gmra.mrb[0].mxu0 %v1100
  %v1248 = vpop.f32.mrb[0].mxu0
  %v1249 = vadd.f32 0.0, %v1248
  %v1250 = vpop.f32.mrb[0].mxu0
  %1251 = vmatprep.mubr.f32.mxu0 0.0
  %1252 = vmatmul.mubr.f32.gmra.mrb[0].mxu0 %v1102
  %v1253 = vpop.f32.mrb[0].mxu0
  %v1254 = vadd.f32 0.0, %v1253
  %v1255 = vpop.f32.mrb[0].mxu0
  %1256 = vmatprep.mubr.f32.mxu0 0.0
  %1257 = vmatmul.mubr.f32.gmra.mrb[0].mxu0 %v1104
  %v1258 = vpop.f32.mrb[0].mxu0
  %v1259 = vadd.f32 0.0, %v1258
  %v1260 = vpop.f32.mrb[0].mxu0
  %1261 = vmatprep.mubr.f32.mxu0 0.0
  %1262 = vmatmul.mubr.f32.gmra.mrb[0].mxu0 %v1106
  %v1263 = vpop.f32.mrb[0].mxu0
  %v1264 = vadd.f32 0.0, %v1263
  %v1265 = vpop.f32.mrb[0].mxu0
  %1266 = vmatprep.mubr.f32.mxu0 0.0
  %1267 = vmatmul.mubr.f32.gmra.mrb[0].mxu0 %v1108
  %v1268 = vpop.f32.mrb[0].mxu0
  %v1269 = vadd.f32 0.0, %v1268
  %v1270 = vpop.f32.mrb[0].mxu0
  %1271 = vmatprep.mubr.f32.mxu0 0.0
  %1272 = vmatmul.mubr.f32.gmra.mrb[0].mxu0 %v1110
  %v1273 = vpop.f32.mrb[0].mxu0
  %v1274 = vadd.f32 0.0, %v1273
  %v1275 = vpop.f32.mrb[0].mxu0
  %1276 = vmatprep.mubr.f32.mxu0 0.0
  %1277 = vmatmul.mubr.f32.gmra.mrb[0].mxu0 %v1112
  %v1278 = vpop.f32.mrb[0].mxu0
  %v1279 = vadd.f32 0.0, %v1278
  %v1280 = vpop.f32.mrb[0].mxu0
  %1281 = vmatprep.mubr.f32.mxu0 0.0
  %1282 = vmatmul.mubr.f32.gmra.mrb[0].mxu0 %v1114
  %v1283 = vpop.f32.mrb[0].mxu0
  %v1284 = vadd.f32 0.0, %v1283
  %v1285 = vpop.f32.mrb[0].mxu0
  %1286 = vmatprep.mubr.f32.mxu0 0.0
  %1287 = vmatmul.mubr.f32.gmra.mrb[0].mxu0 %v1116
  %v1288 = vpop.f32.mrb[0].mxu0
  %v1289 = vadd.f32 0.0, %v1288
  %v1290 = vpop.f32.mrb[0].mxu0
  %1291 = vmatprep.mubr.f32.mxu0 0.0
  %1292 = vmatmul.mubr.f32.gmra.mrb[0].mxu0 %v1118
  %v1293 = vpop.f32.mrb[0].mxu0
  %v1294 = vadd.f32 0.0, %v1293
  %v1295 = vpop.f32.mrb[0].mxu0
  %1296 = vmatprep.mubr.f32.mxu0 0.0
  %1297 = vmatmul.mubr.f32.gmra.mrb[0].mxu0 %v1120
  %v1298 = vpop.f32.mrb[0].mxu0
  %v1299 = vadd.f32 0.0, %v1298
  %v1300 = vpop.f32.mrb[0].mxu0
  %1301 = vmatprep.mubr.f32.mxu0 0.0
  %1302 = vmatmul.mubr.f32.gmra.mrb[0].mxu0 %v1122
  %v1303 = vpop.f32.mrb[0].mxu0
  %v1304 = vadd.f32 0.0, %v1303
  %v1305 = vpop.f32.mrb[0].mxu0
  %1306 = vmatprep.mubr.f32.mxu0 0.0
  %1307 = vmatmul.mubr.f32.gmra.mrb[0].mxu0 %v1124
  %v1308 = vpop.f32.mrb[0].mxu0
  %v1309 = vadd.f32 0.0, %v1308
  %v1310 = vpop.f32.mrb[0].mxu0
  %1311 = vmatprep.mubr.f32.mxu0 0.0
  %1312 = vmatmul.mubr.f32.gmra.mrb[0].mxu0 %v1126
  %v1313 = vpop.f32.mrb[0].mxu0
  %v1314 = vadd.f32 0.0, %v1313
  %v1315 = vpop.f32.mrb[0].mxu0
  %1316 = vmatprep.mubr.f32.mxu0 0.0
  %1317 = vmatmul.mubr.f32.gmra.mrb[0].mxu0 %v1128
  %v1318 = vpop.f32.mrb[0].mxu0
  %v1319 = vadd.f32 0.0, %v1318
  %v1320 = vpop.f32.mrb[0].mxu0
  %1321 = vmatprep.mubr.f32.mxu0 0.0
  %1322 = vmatmul.mubr.f32.gmra.mrb[0].mxu0 %v1130
  %v1323 = vpop.f32.mrb[0].mxu0
  %v1324 = vadd.f32 0.0, %v1323
  %v1325 = vpop.f32.mrb[0].mxu0
  %1326 = vmatprep.mubr.f32.mxu0 0.0
  %1327 = vmatmul.mubr.f32.gmra.mrb[0].mxu0 %v1132
  %v1328 = vpop.f32.mrb[0].mxu0
  %v1329 = vadd.f32 0.0, %v1328
  %v1330 = vpop.f32.mrb[0].mxu0
  %1331 = vmatprep.mubr.f32.mxu0 0.0
  %1332 = vmatmul.mubr.f32.gmra.mrb[0].mxu0 %v1134
  %v1333 = vpop.f32.mrb[0].mxu0
  %v1334 = vadd.f32 0.0, %v1333
  %v1335 = vpop.f32.mrb[0].mxu0
  %1336 = vmatprep.mubr.f32.mxu0 0.0
  %1337 = vmatmul.mubr.f32.gmra.mrb[0].mxu0 %v1136
  %v1338 = vpop.f32.mrb[0].mxu0
  %v1339 = vadd.f32 0.0, %v1338
  %v1340 = vpop.f32.mrb[0].mxu0
  %1341 = vmatprep.mubr.f32.mxu0 0.0
  %1342 = vmatmul.mubr.f32.gmra.mrb[0].mxu0 %v1138
  %v1343 = vpop.f32.mrb[0].mxu0
  %v1344 = vadd.f32 0.0, %v1343
  %v1345 = vpop.f32.mrb[0].mxu0
  %1346 = vmatprep.mubr.f32.mxu0 0.0
  %1347 = vmatmul.mubr.f32.gmra.mrb[0].mxu0 %v1140
  %v1348 = vpop.f32.mrb[0].mxu0
  %v1349 = vadd.f32 0.0, %v1348
  %v1350 = vpop.f32.mrb[0].mxu0
  %1351 = vmatprep.mubr.f32.mxu0 0.0
  %1352 = vmatmul.mubr.f32.gmra.mrb[0].mxu0 %v1142
  %v1353 = vpop.f32.mrb[0].mxu0
  %v1354 = vadd.f32 0.0, %v1353
  %v1355 = vpop.f32.mrb[0].mxu0
  %1356 = vmatprep.mubr.f32.mxu0 0.0
  %1357 = vmatmul.mubr.f32.gmra.mrb[0].mxu0 %v1144
  %v1358 = vpop.f32.mrb[0].mxu0
  %v1359 = vadd.f32 0.0, %v1358
  %v1360 = vpop.f32.mrb[0].mxu0
  %1361 = vmatprep.mubr.f32.mxu0 0.0
  %1362 = vmatmul.mubr.f32.gmra.mrb[0].mxu0 %v1146
  %v1363 = vpop.f32.mrb[0].mxu0
  %v1364 = vadd.f32 0.0, %v1363
  %v1365 = vpop.f32.mrb[0].mxu0
  %1366 = vmatprep.mubr.f32.mxu0 0.0
  %1367 = vmatmul.mubr.f32.gmra.mrb[0].mxu0 %v1148
  %v1368 = vpop.f32.mrb[0].mxu0
  %v1369 = vadd.f32 0.0, %v1368
  %v1370 = vpop.f32.mrb[0].mxu0
  %1371 = vmatprep.mubr.f32.mxu0 0.0
  %1372 = vmatmul.mubr.f32.gmra.mrb[0].mxu0 %v1150
  %v1373 = vpop.f32.mrb[0].mxu0
  %v1374 = vadd.f32 0.0, %v1373
  %v1375 = vpop.f32.mrb[0].mxu0
  %1376 = vdwg.mxu0
  %v1377 = vadd.f32 %v831, %v1219
  %v1378 = vadd.f32 %v836, %v1224
  %v1379 = vadd.f32 %v841, %v1229
  %v1380 = vadd.f32 %v846, %v1234
  %v1381 = vadd.f32 %v851, %v1239
  %v1382 = vadd.f32 %v856, %v1244
  %v1383 = vadd.f32 %v861, %v1249
  %v1384 = vadd.f32 %v866, %v1254
  %v1385 = vadd.f32 %v871, %v1259
  %v1386 = vadd.f32 %v876, %v1264
  %v1387 = vadd.f32 %v881, %v1269
  %v1388 = vadd.f32 %v886, %v1274
  %v1389 = vadd.f32 %v891, %v1279
  %v1390 = vadd.f32 %v896, %v1284
  %v1391 = vadd.f32 %v901, %v1289
  %v1392 = vadd.f32 %v906, %v1294
  %v1393 = vadd.f32 %v911, %v1299
  %v1394 = vadd.f32 %v916, %v1304
  %v1395 = vadd.f32 %v921, %v1309
  %v1396 = vadd.f32 %v926, %v1314
  %v1397 = vadd.f32 %v931, %v1319
  %v1398 = vadd.f32 %v936, %v1324
  %v1399 = vadd.f32 %v941, %v1329
  %v1400 = vadd.f32 %v946, %v1334
  %v1401 = vadd.f32 %v951, %v1339
  %v1402 = vadd.f32 %v956, %v1344
  %v1403 = vadd.f32 %v961, %v1349
  %v1404 = vadd.f32 %v966, %v1354
  %v1405 = vadd.f32 %v971, %v1359
  %v1406 = vadd.f32 %v976, %v1364
  %v1407 = vadd.f32 %v981, %v1369
  %v1408 = vadd.f32 %v986, %v1374
  %s1409 = scalar_lea.vmem %s2, 24
  %v1410 = vld [vmem:[%s1409] sm:$0xff]
  %v1412 = vsel %vm20, %v183, 0
  %v1415 = vsel %vm20, %v203, 0
  %v1418 = vsel %vm20, %v223, 0
  %v1421 = vsel %vm20, %v243, 0
  %1423 = vmatprep.subr.mxu0 0.0
  %1424 = vmatpush1.msra.mxu0 %v1410
  %1425 = vmatprep.subr.mxu0 0.0
  %1426 = vmatpush1.msra.mxu0 0.0
  %1427 = vmatprep.subr.mxu0 0.0
  %1428 = vmatpush1.msra.mxu0 0.0
  %1429 = vmatprep.subr.mxu0 0.0
  %1430 = vmatpush1.msra.mxu0 0.0
  %1431 = vmatprep.subr.mxu0 0.0
  %1432 = vmatpush1.msra.mxu0 0.0
  %1433 = vmatprep.subr.mxu0 0.0
  %1434 = vmatpush1.msra.mxu0 0.0
  %1435 = vmatprep.subr.mxu0 0.0
  %1436 = vmatpush1.msra.mxu0 0.0
  %1437 = vmatprep.subr.mxu0 0.0
  %1438 = vmatpush1.msra.mxu0 0.0
  %1439 = vmatprep.subr.mxu0 0.0
  %1440 = vmatpush1.msra.mxu0 0.0
  %1441 = vmatprep.subr.mxu0 0.0
  %1442 = vmatpush1.msra.mxu0 0.0
  %1443 = vmatprep.subr.mxu0 0.0
  %1444 = vmatpush1.msra.mxu0 0.0
  %1445 = vmatprep.subr.mxu0 0.0
  %1446 = vmatpush1.msra.mxu0 0.0
  %1447 = vmatprep.subr.mxu0 0.0
  %1448 = vmatpush1.msra.mxu0 0.0
  %1449 = vmatprep.subr.mxu0 0.0
  %1450 = vmatpush1.msra.mxu0 0.0
  %1451 = vmatprep.subr.mxu0 0.0
  %1452 = vmatpush1.msra.mxu0 0.0
  %1453 = vmatprep.subr.mxu0 0.0
  %1454 = vmatpush1.msra.mxu0 0.0
  %1455 = vmatprep.subr.mxu0 0.0
  %1456 = vmatpush1.msra.mxu0 0.0
  %1457 = vmatprep.subr.mxu0 0.0
  %1458 = vmatpush1.msra.mxu0 0.0
  %1459 = vmatprep.subr.mxu0 0.0
  %1460 = vmatpush1.msra.mxu0 0.0
  %1461 = vmatprep.subr.mxu0 0.0
  %1462 = vmatpush1.msra.mxu0 0.0
  %1463 = vmatprep.subr.mxu0 0.0
  %1464 = vmatpush1.msra.mxu0 0.0
  %1465 = vmatprep.subr.mxu0 0.0
  %1466 = vmatpush1.msra.mxu0 0.0
  %1467 = vmatprep.subr.mxu0 0.0
  %1468 = vmatpush1.msra.mxu0 0.0
  %1469 = vmatprep.subr.mxu0 0.0
  %1470 = vmatpush1.msra.mxu0 0.0
  %1471 = vmatprep.subr.mxu0 0.0
  %1472 = vmatpush1.msra.mxu0 0.0
  %1473 = vmatprep.subr.mxu0 0.0
  %1474 = vmatpush1.msra.mxu0 0.0
  %1475 = vmatprep.subr.mxu0 0.0
  %1476 = vmatpush1.msra.mxu0 0.0
  %1477 = vmatprep.subr.mxu0 0.0
  %1478 = vmatpush1.msra.mxu0 0.0
  %1479 = vmatprep.subr.mxu0 0.0
  %1480 = vmatpush1.msra.mxu0 0.0
  %1481 = vmatprep.subr.mxu0 0.0
  %1482 = vmatpush1.msra.mxu0 0.0
  %1483 = vmatprep.subr.mxu0 0.0
  %1484 = vmatpush1.msra.mxu0 0.0
  %1485 = vmatprep.subr.mxu0 0.0
  %1486 = vmatpush1.msra.mxu0 0.0
  %1487 = vmatprep.mubr.f32.mxu0 0.0
  %1488 = vmatmul.mubr.f32.gmra.mrb[0].mxu0 %v702
  %v1489 = vpop.f32.mrb[0].mxu0
  %v1490 = vadd.f32 0.0, %v1489
  %v1491 = vpop.f32.mrb[0].mxu0
  %1492 = vmatprep.mubr.f32.mxu0 0.0
  %1493 = vmatmul.mubr.f32.gmra.mrb[0].mxu0 %v704
  %v1494 = vpop.f32.mrb[0].mxu0
  %v1495 = vadd.f32 0.0, %v1494
  %v1496 = vpop.f32.mrb[0].mxu0
  %1497 = vmatprep.mubr.f32.mxu0 0.0
  %1498 = vmatmul.mubr.f32.gmra.mrb[0].mxu0 %v706
  %v1499 = vpop.f32.mrb[0].mxu0
  %v1500 = vadd.f32 0.0, %v1499
  %v1501 = vpop.f32.mrb[0].mxu0
  %1502 = vmatprep.mubr.f32.mxu0 0.0
  %1503 = vmatmul.mubr.f32.gmra.mrb[0].mxu0 %v708
  %v1504 = vpop.f32.mrb[0].mxu0
  %v1505 = vadd.f32 0.0, %v1504
  %v1506 = vpop.f32.mrb[0].mxu0
  %1507 = vmatprep.mubr.f32.mxu0 0.0
  %1508 = vmatmul.mubr.f32.gmra.mrb[0].mxu0 %v710
  %v1509 = vpop.f32.mrb[0].mxu0
  %v1510 = vadd.f32 0.0, %v1509
  %v1511 = vpop.f32.mrb[0].mxu0
  %1512 = vmatprep.mubr.f32.mxu0 0.0
  %1513 = vmatmul.mubr.f32.gmra.mrb[0].mxu0 %v712
  %v1514 = vpop.f32.mrb[0].mxu0
  %v1515 = vadd.f32 0.0, %v1514
  %v1516 = vpop.f32.mrb[0].mxu0
  %1517 = vmatprep.mubr.f32.mxu0 0.0
  %1518 = vmatmul.mubr.f32.gmra.mrb[0].mxu0 %v714
  %v1519 = vpop.f32.mrb[0].mxu0
  %v1520 = vadd.f32 0.0, %v1519
  %v1521 = vpop.f32.mrb[0].mxu0
  %1522 = vmatprep.mubr.f32.mxu0 0.0
  %1523 = vmatmul.mubr.f32.gmra.mrb[0].mxu0 %v1412
  %v1524 = vpop.f32.mrb[0].mxu0
  %v1525 = vadd.f32 0.0, %v1524
  %v1526 = vpop.f32.mrb[0].mxu0
  %1527 = vmatprep.mubr.f32.mxu0 0.0
  %1528 = vmatmul.mubr.f32.gmra.mrb[0].mxu0 %v718
  %v1529 = vpop.f32.mrb[0].mxu0
  %v1530 = vadd.f32 0.0, %v1529
  %v1531 = vpop.f32.mrb[0].mxu0
  %1532 = vmatprep.mubr.f32.mxu0 0.0
  %1533 = vmatmul.mubr.f32.gmra.mrb[0].mxu0 %v720
  %v1534 = vpop.f32.mrb[0].mxu0
  %v1535 = vadd.f32 0.0, %v1534
  %v1536 = vpop.f32.mrb[0].mxu0
  %1537 = vmatprep.mubr.f32.mxu0 0.0
  %1538 = vmatmul.mubr.f32.gmra.mrb[0].mxu0 %v722
  %v1539 = vpop.f32.mrb[0].mxu0
  %v1540 = vadd.f32 0.0, %v1539
  %v1541 = vpop.f32.mrb[0].mxu0
  %1542 = vmatprep.mubr.f32.mxu0 0.0
  %1543 = vmatmul.mubr.f32.gmra.mrb[0].mxu0 %v724
  %v1544 = vpop.f32.mrb[0].mxu0
  %v1545 = vadd.f32 0.0, %v1544
  %v1546 = vpop.f32.mrb[0].mxu0
  %1547 = vmatprep.mubr.f32.mxu0 0.0
  %1548 = vmatmul.mubr.f32.gmra.mrb[0].mxu0 %v726
  %v1549 = vpop.f32.mrb[0].mxu0
  %v1550 = vadd.f32 0.0, %v1549
  %v1551 = vpop.f32.mrb[0].mxu0
  %1552 = vmatprep.mubr.f32.mxu0 0.0
  %1553 = vmatmul.mubr.f32.gmra.mrb[0].mxu0 %v728
  %v1554 = vpop.f32.mrb[0].mxu0
  %v1555 = vadd.f32 0.0, %v1554
  %v1556 = vpop.f32.mrb[0].mxu0
  %1557 = vmatprep.mubr.f32.mxu0 0.0
  %1558 = vmatmul.mubr.f32.gmra.mrb[0].mxu0 %v730
  %v1559 = vpop.f32.mrb[0].mxu0
  %v1560 = vadd.f32 0.0, %v1559
  %v1561 = vpop.f32.mrb[0].mxu0
  %1562 = vmatprep.mubr.f32.mxu0 0.0
  %1563 = vmatmul.mubr.f32.gmra.mrb[0].mxu0 %v1415
  %v1564 = vpop.f32.mrb[0].mxu0
  %v1565 = vadd.f32 0.0, %v1564
  %v1566 = vpop.f32.mrb[0].mxu0
  %1567 = vmatprep.mubr.f32.mxu0 0.0
  %1568 = vmatmul.mubr.f32.gmra.mrb[0].mxu0 %v734
  %v1569 = vpop.f32.mrb[0].mxu0
  %v1570 = vadd.f32 0.0, %v1569
  %v1571 = vpop.f32.mrb[0].mxu0
  %1572 = vmatprep.mubr.f32.mxu0 0.0
  %1573 = vmatmul.mubr.f32.gmra.mrb[0].mxu0 %v736
  %v1574 = vpop.f32.mrb[0].mxu0
  %v1575 = vadd.f32 0.0, %v1574
  %v1576 = vpop.f32.mrb[0].mxu0
  %1577 = vmatprep.mubr.f32.mxu0 0.0
  %1578 = vmatmul.mubr.f32.gmra.mrb[0].mxu0 %v738
  %v1579 = vpop.f32.mrb[0].mxu0
  %v1580 = vadd.f32 0.0, %v1579
  %v1581 = vpop.f32.mrb[0].mxu0
  %1582 = vmatprep.mubr.f32.mxu0 0.0
  %1583 = vmatmul.mubr.f32.gmra.mrb[0].mxu0 %v740
  %v1584 = vpop.f32.mrb[0].mxu0
  %v1585 = vadd.f32 0.0, %v1584
  %v1586 = vpop.f32.mrb[0].mxu0
  %1587 = vmatprep.mubr.f32.mxu0 0.0
  %1588 = vmatmul.mubr.f32.gmra.mrb[0].mxu0 %v742
  %v1589 = vpop.f32.mrb[0].mxu0
  %v1590 = vadd.f32 0.0, %v1589
  %v1591 = vpop.f32.mrb[0].mxu0
  %1592 = vmatprep.mubr.f32.mxu0 0.0
  %1593 = vmatmul.mubr.f32.gmra.mrb[0].mxu0 %v744
  %v1594 = vpop.f32.mrb[0].mxu0
  %v1595 = vadd.f32 0.0, %v1594
  %v1596 = vpop.f32.mrb[0].mxu0
  %1597 = vmatprep.mubr.f32.mxu0 0.0
  %1598 = vmatmul.mubr.f32.gmra.mrb[0].mxu0 %v746
  %v1599 = vpop.f32.mrb[0].mxu0
  %v1600 = vadd.f32 0.0, %v1599
  %v1601 = vpop.f32.mrb[0].mxu0
  %1602 = vmatprep.mubr.f32.mxu0 0.0
  %1603 = vmatmul.mubr.f32.gmra.mrb[0].mxu0 %v1418
  %v1604 = vpop.f32.mrb[0].mxu0
  %v1605 = vadd.f32 0.0, %v1604
  %v1606 = vpop.f32.mrb[0].mxu0
  %1607 = vmatprep.mubr.f32.mxu0 0.0
  %1608 = vmatmul.mubr.f32.gmra.mrb[0].mxu0 %v750
  %v1609 = vpop.f32.mrb[0].mxu0
  %v1610 = vadd.f32 0.0, %v1609
  %v1611 = vpop.f32.mrb[0].mxu0
  %1612 = vmatprep.mubr.f32.mxu0 0.0
  %1613 = vmatmul.mubr.f32.gmra.mrb[0].mxu0 %v752
  %v1614 = vpop.f32.mrb[0].mxu0
  %v1615 = vadd.f32 0.0, %v1614
  %v1616 = vpop.f32.mrb[0].mxu0
  %1617 = vmatprep.mubr.f32.mxu0 0.0
  %1618 = vmatmul.mubr.f32.gmra.mrb[0].mxu0 %v754
  %v1619 = vpop.f32.mrb[0].mxu0
  %v1620 = vadd.f32 0.0, %v1619
  %v1621 = vpop.f32.mrb[0].mxu0
  %1622 = vmatprep.mubr.f32.mxu0 0.0
  %1623 = vmatmul.mubr.f32.gmra.mrb[0].mxu0 %v756
  %v1624 = vpop.f32.mrb[0].mxu0
  %v1625 = vadd.f32 0.0, %v1624
  %v1626 = vpop.f32.mrb[0].mxu0
  %1627 = vmatprep.mubr.f32.mxu0 0.0
  %1628 = vmatmul.mubr.f32.gmra.mrb[0].mxu0 %v758
  %v1629 = vpop.f32.mrb[0].mxu0
  %v1630 = vadd.f32 0.0, %v1629
  %v1631 = vpop.f32.mrb[0].mxu0
  %1632 = vmatprep.mubr.f32.mxu0 0.0
  %1633 = vmatmul.mubr.f32.gmra.mrb[0].mxu0 %v760
  %v1634 = vpop.f32.mrb[0].mxu0
  %v1635 = vadd.f32 0.0, %v1634
  %v1636 = vpop.f32.mrb[0].mxu0
  %1637 = vmatprep.mubr.f32.mxu0 0.0
  %1638 = vmatmul.mubr.f32.gmra.mrb[0].mxu0 %v762
  %v1639 = vpop.f32.mrb[0].mxu0
  %v1640 = vadd.f32 0.0, %v1639
  %v1641 = vpop.f32.mrb[0].mxu0
  %1642 = vmatprep.mubr.f32.mxu0 0.0
  %1643 = vmatmul.mubr.f32.gmra.mrb[0].mxu0 %v1421
  %v1644 = vpop.f32.mrb[0].mxu0
  %v1645 = vadd.f32 0.0, %v1644
  %v1646 = vpop.f32.mrb[0].mxu0
  %1647 = vdwg.mxu0
  %v1648 = vadd.f32 %v1377, %v1490
  %v1649 = vadd.f32 %v1378, %v1495
  %v1650 = vadd.f32 %v1379, %v1500
  %v1651 = vadd.f32 %v1380, %v1505
  %v1652 = vadd.f32 %v1381, %v1510
  %v1653 = vadd.f32 %v1382, %v1515
  %v1654 = vadd.f32 %v1383, %v1520
  %v1655 = vadd.f32 %v1384, %v1525
  %v1656 = vadd.f32 %v1385, %v1530
  %v1657 = vadd.f32 %v1386, %v1535
  %v1658 = vadd.f32 %v1387, %v1540
  %v1659 = vadd.f32 %v1388, %v1545
  %v1660 = vadd.f32 %v1389, %v1550
  %v1661 = vadd.f32 %v1390, %v1555
  %v1662 = vadd.f32 %v1391, %v1560
  %v1663 = vadd.f32 %v1392, %v1565
  %v1664 = vadd.f32 %v1393, %v1570
  %v1665 = vadd.f32 %v1394, %v1575
  %v1666 = vadd.f32 %v1395, %v1580
  %v1667 = vadd.f32 %v1396, %v1585
  %v1668 = vadd.f32 %v1397, %v1590
  %v1669 = vadd.f32 %v1398, %v1595
  %v1670 = vadd.f32 %v1399, %v1600
  %v1671 = vadd.f32 %v1400, %v1605
  %v1672 = vadd.f32 %v1401, %v1610
  %v1673 = vadd.f32 %v1402, %v1615
  %v1674 = vadd.f32 %v1403, %v1620
  %v1675 = vadd.f32 %v1404, %v1625
  %v1676 = vadd.f32 %v1405, %v1630
  %v1677 = vadd.f32 %v1406, %v1635
  %v1678 = vadd.f32 %v1407, %v1640
  %v1679 = vadd.f32 %v1408, %v1645
  %v1684 = vrot.slane %v183, 1
  %v1685 = vrot.slane %v184, 1
  %v1686 = vsel %vm312, %v1684, %v1685
  %v1687 = vrot.slane %v203, 1
  %v1688 = vrot.slane %v204, 1
  %v1689 = vsel %vm312, %v1687, %v1688
  %v1690 = vrot.slane %v223, 1
  %v1691 = vrot.slane %v224, 1
  %v1692 = vsel %vm312, %v1690, %v1691
  %v1693 = vrot.slane %v243, 1
  %v1694 = vrot.slane %v244, 1
  %v1695 = vsel %vm312, %v1693, %v1694
  %s1696 = scalar_lea.vmem %s2, 32
  %v1697 = vld [vmem:[%s1696] sm:$0xff]
  %v1698 = vsel %vm20, %v1686, 0
  %v1700 = vsel %vm20, %v1689, 0
  %v1702 = vsel %vm20, %v1692, 0
  %v1704 = vsel %vm20, %v1695, 0
  %1706 = vmatprep.subr.mxu0 0.0
  %1707 = vmatpush1.msra.mxu0 %v1697
  %1708 = vmatprep.subr.mxu0 0.0
  %1709 = vmatpush1.msra.mxu0 0.0
  %1710 = vmatprep.subr.mxu0 0.0
  %1711 = vmatpush1.msra.mxu0 0.0
  %1712 = vmatprep.subr.mxu0 0.0
  %1713 = vmatpush1.msra.mxu0 0.0
  %1714 = vmatprep.subr.mxu0 0.0
  %1715 = vmatpush1.msra.mxu0 0.0
  %1716 = vmatprep.subr.mxu0 0.0
  %1717 = vmatpush1.msra.mxu0 0.0
  %1718 = vmatprep.subr.mxu0 0.0
  %1719 = vmatpush1.msra.mxu0 0.0
  %1720 = vmatprep.subr.mxu0 0.0
  %1721 = vmatpush1.msra.mxu0 0.0
  %1722 = vmatprep.subr.mxu0 0.0
  %1723 = vmatpush1.msra.mxu0 0.0
  %1724 = vmatprep.subr.mxu0 0.0
  %1725 = vmatpush1.msra.mxu0 0.0
  %1726 = vmatprep.subr.mxu0 0.0
  %1727 = vmatpush1.msra.mxu0 0.0
  %1728 = vmatprep.subr.mxu0 0.0
  %1729 = vmatpush1.msra.mxu0 0.0
  %1730 = vmatprep.subr.mxu0 0.0
  %1731 = vmatpush1.msra.mxu0 0.0
  %1732 = vmatprep.subr.mxu0 0.0
  %1733 = vmatpush1.msra.mxu0 0.0
  %1734 = vmatprep.subr.mxu0 0.0
  %1735 = vmatpush1.msra.mxu0 0.0
  %1736 = vmatprep.subr.mxu0 0.0
  %1737 = vmatpush1.msra.mxu0 0.0
  %1738 = vmatprep.subr.mxu0 0.0
  %1739 = vmatpush1.msra.mxu0 0.0
  %1740 = vmatprep.subr.mxu0 0.0
  %1741 = vmatpush1.msra.mxu0 0.0
  %1742 = vmatprep.subr.mxu0 0.0
  %1743 = vmatpush1.msra.mxu0 0.0
  %1744 = vmatprep.subr.mxu0 0.0
  %1745 = vmatpush1.msra.mxu0 0.0
  %1746 = vmatprep.subr.mxu0 0.0
  %1747 = vmatpush1.msra.mxu0 0.0
  %1748 = vmatprep.subr.mxu0 0.0
  %1749 = vmatpush1.msra.mxu0 0.0
  %1750 = vmatprep.subr.mxu0 0.0
  %1751 = vmatpush1.msra.mxu0 0.0
  %1752 = vmatprep.subr.mxu0 0.0
  %1753 = vmatpush1.msra.mxu0 0.0
  %1754 = vmatprep.subr.mxu0 0.0
  %1755 = vmatpush1.msra.mxu0 0.0
  %1756 = vmatprep.subr.mxu0 0.0
  %1757 = vmatpush1.msra.mxu0 0.0
  %1758 = vmatprep.subr.mxu0 0.0
  %1759 = vmatpush1.msra.mxu0 0.0
  %1760 = vmatprep.subr.mxu0 0.0
  %1761 = vmatpush1.msra.mxu0 0.0
  %1762 = vmatprep.subr.mxu0 0.0
  %1763 = vmatpush1.msra.mxu0 0.0
  %1764 = vmatprep.subr.mxu0 0.0
  %1765 = vmatpush1.msra.mxu0 0.0
  %1766 = vmatprep.subr.mxu0 0.0
  %1767 = vmatpush1.msra.mxu0 0.0
  %1768 = vmatprep.subr.mxu0 0.0
  %1769 = vmatpush1.msra.mxu0 0.0
  %1770 = vmatprep.mubr.f32.mxu0 0.0
  %1771 = vmatmul.mubr.f32.gmra.mrb[0].mxu0 %v413
  %v1772 = vpop.f32.mrb[0].mxu0
  %v1773 = vadd.f32 0.0, %v1772
  %v1774 = vpop.f32.mrb[0].mxu0
  %1775 = vmatprep.mubr.f32.mxu0 0.0
  %1776 = vmatmul.mubr.f32.gmra.mrb[0].mxu0 %v415
  %v1777 = vpop.f32.mrb[0].mxu0
  %v1778 = vadd.f32 0.0, %v1777
  %v1779 = vpop.f32.mrb[0].mxu0
  %1780 = vmatprep.mubr.f32.mxu0 0.0
  %1781 = vmatmul.mubr.f32.gmra.mrb[0].mxu0 %v417
  %v1782 = vpop.f32.mrb[0].mxu0
  %v1783 = vadd.f32 0.0, %v1782
  %v1784 = vpop.f32.mrb[0].mxu0
  %1785 = vmatprep.mubr.f32.mxu0 0.0
  %1786 = vmatmul.mubr.f32.gmra.mrb[0].mxu0 %v419
  %v1787 = vpop.f32.mrb[0].mxu0
  %v1788 = vadd.f32 0.0, %v1787
  %v1789 = vpop.f32.mrb[0].mxu0
  %1790 = vmatprep.mubr.f32.mxu0 0.0
  %1791 = vmatmul.mubr.f32.gmra.mrb[0].mxu0 %v421
  %v1792 = vpop.f32.mrb[0].mxu0
  %v1793 = vadd.f32 0.0, %v1792
  %v1794 = vpop.f32.mrb[0].mxu0
  %1795 = vmatprep.mubr.f32.mxu0 0.0
  %1796 = vmatmul.mubr.f32.gmra.mrb[0].mxu0 %v423
  %v1797 = vpop.f32.mrb[0].mxu0
  %v1798 = vadd.f32 0.0, %v1797
  %v1799 = vpop.f32.mrb[0].mxu0
  %1800 = vmatprep.mubr.f32.mxu0 0.0
  %1801 = vmatmul.mubr.f32.gmra.mrb[0].mxu0 %v425
  %v1802 = vpop.f32.mrb[0].mxu0
  %v1803 = vadd.f32 0.0, %v1802
  %v1804 = vpop.f32.mrb[0].mxu0
  %1805 = vmatprep.mubr.f32.mxu0 0.0
  %1806 = vmatmul.mubr.f32.gmra.mrb[0].mxu0 %v1698
  %v1807 = vpop.f32.mrb[0].mxu0
  %v1808 = vadd.f32 0.0, %v1807
  %v1809 = vpop.f32.mrb[0].mxu0
  %1810 = vmatprep.mubr.f32.mxu0 0.0
  %1811 = vmatmul.mubr.f32.gmra.mrb[0].mxu0 %v429
  %v1812 = vpop.f32.mrb[0].mxu0
  %v1813 = vadd.f32 0.0, %v1812
  %v1814 = vpop.f32.mrb[0].mxu0
  %1815 = vmatprep.mubr.f32.mxu0 0.0
  %1816 = vmatmul.mubr.f32.gmra.mrb[0].mxu0 %v431
  %v1817 = vpop.f32.mrb[0].mxu0
  %v1818 = vadd.f32 0.0, %v1817
  %v1819 = vpop.f32.mrb[0].mxu0
  %1820 = vmatprep.mubr.f32.mxu0 0.0
  %1821 = vmatmul.mubr.f32.gmra.mrb[0].mxu0 %v433
  %v1822 = vpop.f32.mrb[0].mxu0
  %v1823 = vadd.f32 0.0, %v1822
  %v1824 = vpop.f32.mrb[0].mxu0
  %1825 = vmatprep.mubr.f32.mxu0 0.0
  %1826 = vmatmul.mubr.f32.gmra.mrb[0].mxu0 %v435
  %v1827 = vpop.f32.mrb[0].mxu0
  %v1828 = vadd.f32 0.0, %v1827
  %v1829 = vpop.f32.mrb[0].mxu0
  %1830 = vmatprep.mubr.f32.mxu0 0.0
  %1831 = vmatmul.mubr.f32.gmra.mrb[0].mxu0 %v437
  %v1832 = vpop.f32.mrb[0].mxu0
  %v1833 = vadd.f32 0.0, %v1832
  %v1834 = vpop.f32.mrb[0].mxu0
  %1835 = vmatprep.mubr.f32.mxu0 0.0
  %1836 = vmatmul.mubr.f32.gmra.mrb[0].mxu0 %v439
  %v1837 = vpop.f32.mrb[0].mxu0
  %v1838 = vadd.f32 0.0, %v1837
  %v1839 = vpop.f32.mrb[0].mxu0
  %1840 = vmatprep.mubr.f32.mxu0 0.0
  %1841 = vmatmul.mubr.f32.gmra.mrb[0].mxu0 %v441
  %v1842 = vpop.f32.mrb[0].mxu0
  %v1843 = vadd.f32 0.0, %v1842
  %v1844 = vpop.f32.mrb[0].mxu0
  %1845 = vmatprep.mubr.f32.mxu0 0.0
  %1846 = vmatmul.mubr.f32.gmra.mrb[0].mxu0 %v1700
  %v1847 = vpop.f32.mrb[0].mxu0
  %v1848 = vadd.f32 0.0, %v1847
  %v1849 = vpop.f32.mrb[0].mxu0
  %1850 = vmatprep.mubr.f32.mxu0 0.0
  %1851 = vmatmul.mubr.f32.gmra.mrb[0].mxu0 %v445
  %v1852 = vpop.f32.mrb[0].mxu0
  %v1853 = vadd.f32 0.0, %v1852
  %v1854 = vpop.f32.mrb[0].mxu0
  %1855 = vmatprep.mubr.f32.mxu0 0.0
  %1856 = vmatmul.mubr.f32.gmra.mrb[0].mxu0 %v447
  %v1857 = vpop.f32.mrb[0].mxu0
  %v1858 = vadd.f32 0.0, %v1857
  %v1859 = vpop.f32.mrb[0].mxu0
  %1860 = vmatprep.mubr.f32.mxu0 0.0
  %1861 = vmatmul.mubr.f32.gmra.mrb[0].mxu0 %v449
  %v1862 = vpop.f32.mrb[0].mxu0
  %v1863 = vadd.f32 0.0, %v1862
  %v1864 = vpop.f32.mrb[0].mxu0
  %1865 = vmatprep.mubr.f32.mxu0 0.0
  %1866 = vmatmul.mubr.f32.gmra.mrb[0].mxu0 %v451
  %v1867 = vpop.f32.mrb[0].mxu0
  %v1868 = vadd.f32 0.0, %v1867
  %v1869 = vpop.f32.mrb[0].mxu0
  %1870 = vmatprep.mubr.f32.mxu0 0.0
  %1871 = vmatmul.mubr.f32.gmra.mrb[0].mxu0 %v453
  %v1872 = vpop.f32.mrb[0].mxu0
  %v1873 = vadd.f32 0.0, %v1872
  %v1874 = vpop.f32.mrb[0].mxu0
  %1875 = vmatprep.mubr.f32.mxu0 0.0
  %1876 = vmatmul.mubr.f32.gmra.mrb[0].mxu0 %v455
  %v1877 = vpop.f32.mrb[0].mxu0
  %v1878 = vadd.f32 0.0, %v1877
  %v1879 = vpop.f32.mrb[0].mxu0
  %1880 = vmatprep.mubr.f32.mxu0 0.0
  %1881 = vmatmul.mubr.f32.gmra.mrb[0].mxu0 %v457
  %v1882 = vpop.f32.mrb[0].mxu0
  %v1883 = vadd.f32 0.0, %v1882
  %v1884 = vpop.f32.mrb[0].mxu0
  %1885 = vmatprep.mubr.f32.mxu0 0.0
  %1886 = vmatmul.mubr.f32.gmra.mrb[0].mxu0 %v1702
  %v1887 = vpop.f32.mrb[0].mxu0
  %v1888 = vadd.f32 0.0, %v1887
  %v1889 = vpop.f32.mrb[0].mxu0
  %1890 = vmatprep.mubr.f32.mxu0 0.0
  %1891 = vmatmul.mubr.f32.gmra.mrb[0].mxu0 %v461
  %v1892 = vpop.f32.mrb[0].mxu0
  %v1893 = vadd.f32 0.0, %v1892
  %v1894 = vpop.f32.mrb[0].mxu0
  %1895 = vmatprep.mubr.f32.mxu0 0.0
  %1896 = vmatmul.mubr.f32.gmra.mrb[0].mxu0 %v463
  %v1897 = vpop.f32.mrb[0].mxu0
  %v1898 = vadd.f32 0.0, %v1897
  %v1899 = vpop.f32.mrb[0].mxu0
  %1900 = vmatprep.mubr.f32.mxu0 0.0
  %1901 = vmatmul.mubr.f32.gmra.mrb[0].mxu0 %v465
  %v1902 = vpop.f32.mrb[0].mxu0
  %v1903 = vadd.f32 0.0, %v1902
  %v1904 = vpop.f32.mrb[0].mxu0
  %1905 = vmatprep.mubr.f32.mxu0 0.0
  %1906 = vmatmul.mubr.f32.gmra.mrb[0].mxu0 %v467
  %v1907 = vpop.f32.mrb[0].mxu0
  %v1908 = vadd.f32 0.0, %v1907
  %v1909 = vpop.f32.mrb[0].mxu0
  %1910 = vmatprep.mubr.f32.mxu0 0.0
  %1911 = vmatmul.mubr.f32.gmra.mrb[0].mxu0 %v469
  %v1912 = vpop.f32.mrb[0].mxu0
  %v1913 = vadd.f32 0.0, %v1912
  %v1914 = vpop.f32.mrb[0].mxu0
  %1915 = vmatprep.mubr.f32.mxu0 0.0
  %1916 = vmatmul.mubr.f32.gmra.mrb[0].mxu0 %v471
  %v1917 = vpop.f32.mrb[0].mxu0
  %v1918 = vadd.f32 0.0, %v1917
  %v1919 = vpop.f32.mrb[0].mxu0
  %1920 = vmatprep.mubr.f32.mxu0 0.0
  %1921 = vmatmul.mubr.f32.gmra.mrb[0].mxu0 %v473
  %v1922 = vpop.f32.mrb[0].mxu0
  %v1923 = vadd.f32 0.0, %v1922
  %v1924 = vpop.f32.mrb[0].mxu0
  %1925 = vmatprep.mubr.f32.mxu0 0.0
  %1926 = vmatmul.mubr.f32.gmra.mrb[0].mxu0 %v1704
  %v1927 = vpop.f32.mrb[0].mxu0
  %v1928 = vadd.f32 0.0, %v1927
  %v1929 = vpop.f32.mrb[0].mxu0
  %1930 = vdwg.mxu0
  %v1931 = vadd.f32 %v1648, %v1773
  %v1932 = vadd.f32 %v1649, %v1778
  %v1933 = vadd.f32 %v1650, %v1783
  %v1934 = vadd.f32 %v1651, %v1788
  %v1935 = vadd.f32 %v1652, %v1793
  %v1936 = vadd.f32 %v1653, %v1798
  %v1937 = vadd.f32 %v1654, %v1803
  %v1938 = vadd.f32 %v1655, %v1808
  %v1939 = vadd.f32 %v1656, %v1813
  %v1940 = vadd.f32 %v1657, %v1818
  %v1941 = vadd.f32 %v1658, %v1823
  %v1942 = vadd.f32 %v1659, %v1828
  %v1943 = vadd.f32 %v1660, %v1833
  %v1944 = vadd.f32 %v1661, %v1838
  %v1945 = vadd.f32 %v1662, %v1843
  %v1946 = vadd.f32 %v1663, %v1848
  %v1947 = vadd.f32 %v1664, %v1853
  %v1948 = vadd.f32 %v1665, %v1858
  %v1949 = vadd.f32 %v1666, %v1863
  %v1950 = vadd.f32 %v1667, %v1868
  %v1951 = vadd.f32 %v1668, %v1873
  %v1952 = vadd.f32 %v1669, %v1878
  %v1953 = vadd.f32 %v1670, %v1883
  %v1954 = vadd.f32 %v1671, %v1888
  %v1955 = vadd.f32 %v1672, %v1893
  %v1956 = vadd.f32 %v1673, %v1898
  %v1957 = vadd.f32 %v1674, %v1903
  %v1958 = vadd.f32 %v1675, %v1908
  %v1959 = vadd.f32 %v1676, %v1913
  %v1960 = vadd.f32 %v1677, %v1918
  %v1961 = vadd.f32 %v1678, %v1923
  %v1962 = vadd.f32 %v1679, %v1928
  %v1963 = vrot.slane %v183, 2
  %v1964 = vrot.slane %v184, 2
  %v1965 = vsel %vm989, %v1963, %v1964
  %v1966 = vrot.slane %v203, 2
  %v1967 = vrot.slane %v204, 2
  %v1968 = vsel %vm989, %v1966, %v1967
  %v1969 = vrot.slane %v223, 2
  %v1970 = vrot.slane %v224, 2
  %v1971 = vsel %vm989, %v1969, %v1970
  %v1972 = vrot.slane %v243, 2
  %v1973 = vrot.slane %v244, 2
  %v1974 = vsel %vm989, %v1972, %v1973
  %s1975 = scalar_lea.vmem %s2, 40
  %v1976 = vld [vmem:[%s1975] sm:$0xff]
  %v1977 = vsel %vm20, %v1965, 0
  %v1979 = vsel %vm20, %v1968, 0
  %v1981 = vsel %vm20, %v1971, 0
  %v1983 = vsel %vm20, %v1974, 0
  %1985 = vmatprep.subr.mxu0 0.0
  %1986 = vmatpush1.msra.mxu0 %v1976
  %1987 = vmatprep.subr.mxu0 0.0
  %1988 = vmatpush1.msra.mxu0 0.0
  %1989 = vmatprep.subr.mxu0 0.0
  %1990 = vmatpush1.msra.mxu0 0.0
  %1991 = vmatprep.subr.mxu0 0.0
  %1992 = vmatpush1.msra.mxu0 0.0
  %1993 = vmatprep.subr.mxu0 0.0
  %1994 = vmatpush1.msra.mxu0 0.0
  %1995 = vmatprep.subr.mxu0 0.0
  %1996 = vmatpush1.msra.mxu0 0.0
  %1997 = vmatprep.subr.mxu0 0.0
  %1998 = vmatpush1.msra.mxu0 0.0
  %1999 = vmatprep.subr.mxu0 0.0
  %2000 = vmatpush1.msra.mxu0 0.0
  %2001 = vmatprep.subr.mxu0 0.0
  %2002 = vmatpush1.msra.mxu0 0.0
  %2003 = vmatprep.subr.mxu0 0.0
  %2004 = vmatpush1.msra.mxu0 0.0
  %2005 = vmatprep.subr.mxu0 0.0
  %2006 = vmatpush1.msra.mxu0 0.0
  %2007 = vmatprep.subr.mxu0 0.0
  %2008 = vmatpush1.msra.mxu0 0.0
  %2009 = vmatprep.subr.mxu0 0.0
  %2010 = vmatpush1.msra.mxu0 0.0
  %2011 = vmatprep.subr.mxu0 0.0
  %2012 = vmatpush1.msra.mxu0 0.0
  %2013 = vmatprep.subr.mxu0 0.0
  %2014 = vmatpush1.msra.mxu0 0.0
  %2015 = vmatprep.subr.mxu0 0.0
  %2016 = vmatpush1.msra.mxu0 0.0
  %2017 = vmatprep.subr.mxu0 0.0
  %2018 = vmatpush1.msra.mxu0 0.0
  %2019 = vmatprep.subr.mxu0 0.0
  %2020 = vmatpush1.msra.mxu0 0.0
  %2021 = vmatprep.subr.mxu0 0.0
  %2022 = vmatpush1.msra.mxu0 0.0
  %2023 = vmatprep.subr.mxu0 0.0
  %2024 = vmatpush1.msra.mxu0 0.0
  %2025 = vmatprep.subr.mxu0 0.0
  %2026 = vmatpush1.msra.mxu0 0.0
  %2027 = vmatprep.subr.mxu0 0.0
  %2028 = vmatpush1.msra.mxu0 0.0
  %2029 = vmatprep.subr.mxu0 0.0
  %2030 = vmatpush1.msra.mxu0 0.0
  %2031 = vmatprep.subr.mxu0 0.0
  %2032 = vmatpush1.msra.mxu0 0.0
  %2033 = vmatprep.subr.mxu0 0.0
  %2034 = vmatpush1.msra.mxu0 0.0
  %2035 = vmatprep.subr.mxu0 0.0
  %2036 = vmatpush1.msra.mxu0 0.0
  %2037 = vmatprep.subr.mxu0 0.0
  %2038 = vmatpush1.msra.mxu0 0.0
  %2039 = vmatprep.subr.mxu0 0.0
  %2040 = vmatpush1.msra.mxu0 0.0
  %2041 = vmatprep.subr.mxu0 0.0
  %2042 = vmatpush1.msra.mxu0 0.0
  %2043 = vmatprep.subr.mxu0 0.0
  %2044 = vmatpush1.msra.mxu0 0.0
  %2045 = vmatprep.subr.mxu0 0.0
  %2046 = vmatpush1.msra.mxu0 0.0
  %2047 = vmatprep.subr.mxu0 0.0
  %2048 = vmatpush1.msra.mxu0 0.0
  %2049 = vmatprep.mubr.f32.mxu0 0.0
  %2050 = vmatmul.mubr.f32.gmra.mrb[0].mxu0 %v1090
  %v2051 = vpop.f32.mrb[0].mxu0
  %v2052 = vadd.f32 0.0, %v2051
  %v2053 = vpop.f32.mrb[0].mxu0
  %2054 = vmatprep.mubr.f32.mxu0 0.0
  %2055 = vmatmul.mubr.f32.gmra.mrb[0].mxu0 %v1092
  %v2056 = vpop.f32.mrb[0].mxu0
  %v2057 = vadd.f32 0.0, %v2056
  %v2058 = vpop.f32.mrb[0].mxu0
  %2059 = vmatprep.mubr.f32.mxu0 0.0
  %2060 = vmatmul.mubr.f32.gmra.mrb[0].mxu0 %v1094
  %v2061 = vpop.f32.mrb[0].mxu0
  %v2062 = vadd.f32 0.0, %v2061
  %v2063 = vpop.f32.mrb[0].mxu0
  %2064 = vmatprep.mubr.f32.mxu0 0.0
  %2065 = vmatmul.mubr.f32.gmra.mrb[0].mxu0 %v1096
  %v2066 = vpop.f32.mrb[0].mxu0
  %v2067 = vadd.f32 0.0, %v2066
  %v2068 = vpop.f32.mrb[0].mxu0
  %2069 = vmatprep.mubr.f32.mxu0 0.0
  %2070 = vmatmul.mubr.f32.gmra.mrb[0].mxu0 %v1098
  %v2071 = vpop.f32.mrb[0].mxu0
  %v2072 = vadd.f32 0.0, %v2071
  %v2073 = vpop.f32.mrb[0].mxu0
  %2074 = vmatprep.mubr.f32.mxu0 0.0
  %2075 = vmatmul.mubr.f32.gmra.mrb[0].mxu0 %v1100
  %v2076 = vpop.f32.mrb[0].mxu0
  %v2077 = vadd.f32 0.0, %v2076
  %v2078 = vpop.f32.mrb[0].mxu0
  %2079 = vmatprep.mubr.f32.mxu0 0.0
  %2080 = vmatmul.mubr.f32.gmra.mrb[0].mxu0 %v1102
  %v2081 = vpop.f32.mrb[0].mxu0
  %v2082 = vadd.f32 0.0, %v2081
  %v2083 = vpop.f32.mrb[0].mxu0
  %2084 = vmatprep.mubr.f32.mxu0 0.0
  %2085 = vmatmul.mubr.f32.gmra.mrb[0].mxu0 %v1977
  %v2086 = vpop.f32.mrb[0].mxu0
  %v2087 = vadd.f32 0.0, %v2086
  %v2088 = vpop.f32.mrb[0].mxu0
  %2089 = vmatprep.mubr.f32.mxu0 0.0
  %2090 = vmatmul.mubr.f32.gmra.mrb[0].mxu0 %v1106
  %v2091 = vpop.f32.mrb[0].mxu0
  %v2092 = vadd.f32 0.0, %v2091
  %v2093 = vpop.f32.mrb[0].mxu0
  %2094 = vmatprep.mubr.f32.mxu0 0.0
  %2095 = vmatmul.mubr.f32.gmra.mrb[0].mxu0 %v1108
  %v2096 = vpop.f32.mrb[0].mxu0
  %v2097 = vadd.f32 0.0, %v2096
  %v2098 = vpop.f32.mrb[0].mxu0
  %2099 = vmatprep.mubr.f32.mxu0 0.0
  %2100 = vmatmul.mubr.f32.gmra.mrb[0].mxu0 %v1110
  %v2101 = vpop.f32.mrb[0].mxu0
  %v2102 = vadd.f32 0.0, %v2101
  %v2103 = vpop.f32.mrb[0].mxu0
  %2104 = vmatprep.mubr.f32.mxu0 0.0
  %2105 = vmatmul.mubr.f32.gmra.mrb[0].mxu0 %v1112
  %v2106 = vpop.f32.mrb[0].mxu0
  %v2107 = vadd.f32 0.0, %v2106
  %v2108 = vpop.f32.mrb[0].mxu0
  %2109 = vmatprep.mubr.f32.mxu0 0.0
  %2110 = vmatmul.mubr.f32.gmra.mrb[0].mxu0 %v1114
  %v2111 = vpop.f32.mrb[0].mxu0
  %v2112 = vadd.f32 0.0, %v2111
  %v2113 = vpop.f32.mrb[0].mxu0
  %2114 = vmatprep.mubr.f32.mxu0 0.0
  %2115 = vmatmul.mubr.f32.gmra.mrb[0].mxu0 %v1116
  %v2116 = vpop.f32.mrb[0].mxu0
  %v2117 = vadd.f32 0.0, %v2116
  %v2118 = vpop.f32.mrb[0].mxu0
  %2119 = vmatprep.mubr.f32.mxu0 0.0
  %2120 = vmatmul.mubr.f32.gmra.mrb[0].mxu0 %v1118
  %v2121 = vpop.f32.mrb[0].mxu0
  %v2122 = vadd.f32 0.0, %v2121
  %v2123 = vpop.f32.mrb[0].mxu0
  %2124 = vmatprep.mubr.f32.mxu0 0.0
  %2125 = vmatmul.mubr.f32.gmra.mrb[0].mxu0 %v1979
  %v2126 = vpop.f32.mrb[0].mxu0
  %v2127 = vadd.f32 0.0, %v2126
  %v2128 = vpop.f32.mrb[0].mxu0
  %2129 = vmatprep.mubr.f32.mxu0 0.0
  %2130 = vmatmul.mubr.f32.gmra.mrb[0].mxu0 %v1122
  %v2131 = vpop.f32.mrb[0].mxu0
  %v2132 = vadd.f32 0.0, %v2131
  %v2133 = vpop.f32.mrb[0].mxu0
  %2134 = vmatprep.mubr.f32.mxu0 0.0
  %2135 = vmatmul.mubr.f32.gmra.mrb[0].mxu0 %v1124
  %v2136 = vpop.f32.mrb[0].mxu0
  %v2137 = vadd.f32 0.0, %v2136
  %v2138 = vpop.f32.mrb[0].mxu0
  %2139 = vmatprep.mubr.f32.mxu0 0.0
  %2140 = vmatmul.mubr.f32.gmra.mrb[0].mxu0 %v1126
  %v2141 = vpop.f32.mrb[0].mxu0
  %v2142 = vadd.f32 0.0, %v2141
  %v2143 = vpop.f32.mrb[0].mxu0
  %2144 = vmatprep.mubr.f32.mxu0 0.0
  %2145 = vmatmul.mubr.f32.gmra.mrb[0].mxu0 %v1128
  %v2146 = vpop.f32.mrb[0].mxu0
  %v2147 = vadd.f32 0.0, %v2146
  %v2148 = vpop.f32.mrb[0].mxu0
  %2149 = vmatprep.mubr.f32.mxu0 0.0
  %2150 = vmatmul.mubr.f32.gmra.mrb[0].mxu0 %v1130
  %v2151 = vpop.f32.mrb[0].mxu0
  %v2152 = vadd.f32 0.0, %v2151
  %v2153 = vpop.f32.mrb[0].mxu0
  %2154 = vmatprep.mubr.f32.mxu0 0.0
  %2155 = vmatmul.mubr.f32.gmra.mrb[0].mxu0 %v1132
  %v2156 = vpop.f32.mrb[0].mxu0
  %v2157 = vadd.f32 0.0, %v2156
  %v2158 = vpop.f32.mrb[0].mxu0
  %2159 = vmatprep.mubr.f32.mxu0 0.0
  %2160 = vmatmul.mubr.f32.gmra.mrb[0].mxu0 %v1134
  %v2161 = vpop.f32.mrb[0].mxu0
  %v2162 = vadd.f32 0.0, %v2161
  %v2163 = vpop.f32.mrb[0].mxu0
  %2164 = vmatprep.mubr.f32.mxu0 0.0
  %2165 = vmatmul.mubr.f32.gmra.mrb[0].mxu0 %v1981
  %v2166 = vpop.f32.mrb[0].mxu0
  %v2167 = vadd.f32 0.0, %v2166
  %v2168 = vpop.f32.mrb[0].mxu0
  %2169 = vmatprep.mubr.f32.mxu0 0.0
  %2170 = vmatmul.mubr.f32.gmra.mrb[0].mxu0 %v1138
  %v2171 = vpop.f32.mrb[0].mxu0
  %v2172 = vadd.f32 0.0, %v2171
  %v2173 = vpop.f32.mrb[0].mxu0
  %2174 = vmatprep.mubr.f32.mxu0 0.0
  %2175 = vmatmul.mubr.f32.gmra.mrb[0].mxu0 %v1140
  %v2176 = vpop.f32.mrb[0].mxu0
  %v2177 = vadd.f32 0.0, %v2176
  %v2178 = vpop.f32.mrb[0].mxu0
  %2179 = vmatprep.mubr.f32.mxu0 0.0
  %2180 = vmatmul.mubr.f32.gmra.mrb[0].mxu0 %v1142
  %v2181 = vpop.f32.mrb[0].mxu0
  %v2182 = vadd.f32 0.0, %v2181
  %v2183 = vpop.f32.mrb[0].mxu0
  %2184 = vmatprep.mubr.f32.mxu0 0.0
  %2185 = vmatmul.mubr.f32.gmra.mrb[0].mxu0 %v1144
  %v2186 = vpop.f32.mrb[0].mxu0
  %v2187 = vadd.f32 0.0, %v2186
  %v2188 = vpop.f32.mrb[0].mxu0
  %2189 = vmatprep.mubr.f32.mxu0 0.0
  %2190 = vmatmul.mubr.f32.gmra.mrb[0].mxu0 %v1146
  %v2191 = vpop.f32.mrb[0].mxu0
  %v2192 = vadd.f32 0.0, %v2191
  %v2193 = vpop.f32.mrb[0].mxu0
  %2194 = vmatprep.mubr.f32.mxu0 0.0
  %2195 = vmatmul.mubr.f32.gmra.mrb[0].mxu0 %v1148
  %v2196 = vpop.f32.mrb[0].mxu0
  %v2197 = vadd.f32 0.0, %v2196
  %v2198 = vpop.f32.mrb[0].mxu0
  %2199 = vmatprep.mubr.f32.mxu0 0.0
  %2200 = vmatmul.mubr.f32.gmra.mrb[0].mxu0 %v1150
  %v2201 = vpop.f32.mrb[0].mxu0
  %v2202 = vadd.f32 0.0, %v2201
  %v2203 = vpop.f32.mrb[0].mxu0
  %2204 = vmatprep.mubr.f32.mxu0 0.0
  %2205 = vmatmul.mubr.f32.gmra.mrb[0].mxu0 %v1983
  %v2206 = vpop.f32.mrb[0].mxu0
  %v2207 = vadd.f32 0.0, %v2206
  %v2208 = vpop.f32.mrb[0].mxu0
  %2209 = vdwg.mxu0
  %v2210 = vadd.f32 %v1931, %v2052
  %v2211 = vadd.f32 %v1932, %v2057
  %v2212 = vadd.f32 %v1933, %v2062
  %v2213 = vadd.f32 %v1934, %v2067
  %v2214 = vadd.f32 %v1935, %v2072
  %v2215 = vadd.f32 %v1936, %v2077
  %v2216 = vadd.f32 %v1937, %v2082
  %v2217 = vadd.f32 %v1938, %v2087
  %v2218 = vadd.f32 %v1939, %v2092
  %v2219 = vadd.f32 %v1940, %v2097
  %v2220 = vadd.f32 %v1941, %v2102
  %v2221 = vadd.f32 %v1942, %v2107
  %v2222 = vadd.f32 %v1943, %v2112
  %v2223 = vadd.f32 %v1944, %v2117
  %v2224 = vadd.f32 %v1945, %v2122
  %v2225 = vadd.f32 %v1946, %v2127
  %v2226 = vadd.f32 %v1947, %v2132
  %v2227 = vadd.f32 %v1948, %v2137
  %v2228 = vadd.f32 %v1949, %v2142
  %v2229 = vadd.f32 %v1950, %v2147
  %v2230 = vadd.f32 %v1951, %v2152
  %v2231 = vadd.f32 %v1952, %v2157
  %v2232 = vadd.f32 %v1953, %v2162
  %v2233 = vadd.f32 %v1954, %v2167
  %v2234 = vadd.f32 %v1955, %v2172
  %v2235 = vadd.f32 %v1956, %v2177
  %v2236 = vadd.f32 %v1957, %v2182
  %v2237 = vadd.f32 %v1958, %v2187
  %v2238 = vadd.f32 %v1959, %v2192
  %v2239 = vadd.f32 %v1960, %v2197
  %v2240 = vadd.f32 %v1961, %v2202
  %v2241 = vadd.f32 %v1962, %v2207
  %s2242 = scalar_lea.vmem %s2, 48
  %v2243 = vld [vmem:[%s2242] sm:$0xff]
  %v2245 = vsel %vm20, %v185, 0
  %v2248 = vsel %vm20, %v205, 0
  %v2251 = vsel %vm20, %v225, 0
  %v2254 = vsel %vm20, %v245, 0
  %2256 = vmatprep.subr.mxu0 0.0
  %2257 = vmatpush1.msra.mxu0 %v2243
  %2258 = vmatprep.subr.mxu0 0.0
  %2259 = vmatpush1.msra.mxu0 0.0
  %2260 = vmatprep.subr.mxu0 0.0
  %2261 = vmatpush1.msra.mxu0 0.0
  %2262 = vmatprep.subr.mxu0 0.0
  %2263 = vmatpush1.msra.mxu0 0.0
  %2264 = vmatprep.subr.mxu0 0.0
  %2265 = vmatpush1.msra.mxu0 0.0
  %2266 = vmatprep.subr.mxu0 0.0
  %2267 = vmatpush1.msra.mxu0 0.0
  %2268 = vmatprep.subr.mxu0 0.0
  %2269 = vmatpush1.msra.mxu0 0.0
  %2270 = vmatprep.subr.mxu0 0.0
  %2271 = vmatpush1.msra.mxu0 0.0
  %2272 = vmatprep.subr.mxu0 0.0
  %2273 = vmatpush1.msra.mxu0 0.0
  %2274 = vmatprep.subr.mxu0 0.0
  %2275 = vmatpush1.msra.mxu0 0.0
  %2276 = vmatprep.subr.mxu0 0.0
  %2277 = vmatpush1.msra.mxu0 0.0
  %2278 = vmatprep.subr.mxu0 0.0
  %2279 = vmatpush1.msra.mxu0 0.0
  %2280 = vmatprep.subr.mxu0 0.0
  %2281 = vmatpush1.msra.mxu0 0.0
  %2282 = vmatprep.subr.mxu0 0.0
  %2283 = vmatpush1.msra.mxu0 0.0
  %2284 = vmatprep.subr.mxu0 0.0
  %2285 = vmatpush1.msra.mxu0 0.0
  %2286 = vmatprep.subr.mxu0 0.0
  %2287 = vmatpush1.msra.mxu0 0.0
  %2288 = vmatprep.subr.mxu0 0.0
  %2289 = vmatpush1.msra.mxu0 0.0
  %2290 = vmatprep.subr.mxu0 0.0
  %2291 = vmatpush1.msra.mxu0 0.0
  %2292 = vmatprep.subr.mxu0 0.0
  %2293 = vmatpush1.msra.mxu0 0.0
  %2294 = vmatprep.subr.mxu0 0.0
  %2295 = vmatpush1.msra.mxu0 0.0
  %2296 = vmatprep.subr.mxu0 0.0
  %2297 = vmatpush1.msra.mxu0 0.0
  %2298 = vmatprep.subr.mxu0 0.0
  %2299 = vmatpush1.msra.mxu0 0.0
  %2300 = vmatprep.subr.mxu0 0.0
  %2301 = vmatpush1.msra.mxu0 0.0
  %2302 = vmatprep.subr.mxu0 0.0
  %2303 = vmatpush1.msra.mxu0 0.0
  %2304 = vmatprep.subr.mxu0 0.0
  %2305 = vmatpush1.msra.mxu0 0.0
  %2306 = vmatprep.subr.mxu0 0.0
  %2307 = vmatpush1.msra.mxu0 0.0
  %2308 = vmatprep.subr.mxu0 0.0
  %2309 = vmatpush1.msra.mxu0 0.0
  %2310 = vmatprep.subr.mxu0 0.0
  %2311 = vmatpush1.msra.mxu0 0.0
  %2312 = vmatprep.subr.mxu0 0.0
  %2313 = vmatpush1.msra.mxu0 0.0
  %2314 = vmatprep.subr.mxu0 0.0
  %2315 = vmatpush1.msra.mxu0 0.0
  %2316 = vmatprep.subr.mxu0 0.0
  %2317 = vmatpush1.msra.mxu0 0.0
  %2318 = vmatprep.subr.mxu0 0.0
  %2319 = vmatpush1.msra.mxu0 0.0
  %2320 = vmatprep.mubr.f32.mxu0 0.0
  %2321 = vmatmul.mubr.f32.gmra.mrb[0].mxu0 %v704
  %v2322 = vpop.f32.mrb[0].mxu0
  %v2323 = vadd.f32 0.0, %v2322
  %v2324 = vpop.f32.mrb[0].mxu0
  %2325 = vmatprep.mubr.f32.mxu0 0.0
  %2326 = vmatmul.mubr.f32.gmra.mrb[0].mxu0 %v706
  %v2327 = vpop.f32.mrb[0].mxu0
  %v2328 = vadd.f32 0.0, %v2327
  %v2329 = vpop.f32.mrb[0].mxu0
  %2330 = vmatprep.mubr.f32.mxu0 0.0
  %2331 = vmatmul.mubr.f32.gmra.mrb[0].mxu0 %v708
  %v2332 = vpop.f32.mrb[0].mxu0
  %v2333 = vadd.f32 0.0, %v2332
  %v2334 = vpop.f32.mrb[0].mxu0
  %2335 = vmatprep.mubr.f32.mxu0 0.0
  %2336 = vmatmul.mubr.f32.gmra.mrb[0].mxu0 %v710
  %v2337 = vpop.f32.mrb[0].mxu0
  %v2338 = vadd.f32 0.0, %v2337
  %v2339 = vpop.f32.mrb[0].mxu0
  %2340 = vmatprep.mubr.f32.mxu0 0.0
  %2341 = vmatmul.mubr.f32.gmra.mrb[0].mxu0 %v712
  %v2342 = vpop.f32.mrb[0].mxu0
  %v2343 = vadd.f32 0.0, %v2342
  %v2344 = vpop.f32.mrb[0].mxu0
  %2345 = vmatprep.mubr.f32.mxu0 0.0
  %2346 = vmatmul.mubr.f32.gmra.mrb[0].mxu0 %v714
  %v2347 = vpop.f32.mrb[0].mxu0
  %v2348 = vadd.f32 0.0, %v2347
  %v2349 = vpop.f32.mrb[0].mxu0
  %2350 = vmatprep.mubr.f32.mxu0 0.0
  %2351 = vmatmul.mubr.f32.gmra.mrb[0].mxu0 %v1412
  %v2352 = vpop.f32.mrb[0].mxu0
  %v2353 = vadd.f32 0.0, %v2352
  %v2354 = vpop.f32.mrb[0].mxu0
  %2355 = vmatprep.mubr.f32.mxu0 0.0
  %2356 = vmatmul.mubr.f32.gmra.mrb[0].mxu0 %v2245
  %v2357 = vpop.f32.mrb[0].mxu0
  %v2358 = vadd.f32 0.0, %v2357
  %v2359 = vpop.f32.mrb[0].mxu0
  %2360 = vmatprep.mubr.f32.mxu0 0.0
  %2361 = vmatmul.mubr.f32.gmra.mrb[0].mxu0 %v720
  %v2362 = vpop.f32.mrb[0].mxu0
  %v2363 = vadd.f32 0.0, %v2362
  %v2364 = vpop.f32.mrb[0].mxu0
  %2365 = vmatprep.mubr.f32.mxu0 0.0
  %2366 = vmatmul.mubr.f32.gmra.mrb[0].mxu0 %v722
  %v2367 = vpop.f32.mrb[0].mxu0
  %v2368 = vadd.f32 0.0, %v2367
  %v2369 = vpop.f32.mrb[0].mxu0
  %2370 = vmatprep.mubr.f32.mxu0 0.0
  %2371 = vmatmul.mubr.f32.gmra.mrb[0].mxu0 %v724
  %v2372 = vpop.f32.mrb[0].mxu0
  %v2373 = vadd.f32 0.0, %v2372
  %v2374 = vpop.f32.mrb[0].mxu0
  %2375 = vmatprep.mubr.f32.mxu0 0.0
  %2376 = vmatmul.mubr.f32.gmra.mrb[0].mxu0 %v726
  %v2377 = vpop.f32.mrb[0].mxu0
  %v2378 = vadd.f32 0.0, %v2377
  %v2379 = vpop.f32.mrb[0].mxu0
  %2380 = vmatprep.mubr.f32.mxu0 0.0
  %2381 = vmatmul.mubr.f32.gmra.mrb[0].mxu0 %v728
  %v2382 = vpop.f32.mrb[0].mxu0
  %v2383 = vadd.f32 0.0, %v2382
  %v2384 = vpop.f32.mrb[0].mxu0
  %2385 = vmatprep.mubr.f32.mxu0 0.0
  %2386 = vmatmul.mubr.f32.gmra.mrb[0].mxu0 %v730
  %v2387 = vpop.f32.mrb[0].mxu0
  %v2388 = vadd.f32 0.0, %v2387
  %v2389 = vpop.f32.mrb[0].mxu0
  %2390 = vmatprep.mubr.f32.mxu0 0.0
  %2391 = vmatmul.mubr.f32.gmra.mrb[0].mxu0 %v1415
  %v2392 = vpop.f32.mrb[0].mxu0
  %v2393 = vadd.f32 0.0, %v2392
  %v2394 = vpop.f32.mrb[0].mxu0
  %2395 = vmatprep.mubr.f32.mxu0 0.0
  %2396 = vmatmul.mubr.f32.gmra.mrb[0].mxu0 %v2248
  %v2397 = vpop.f32.mrb[0].mxu0
  %v2398 = vadd.f32 0.0, %v2397
  %v2399 = vpop.f32.mrb[0].mxu0
  %2400 = vmatprep.mubr.f32.mxu0 0.0
  %2401 = vmatmul.mubr.f32.gmra.mrb[0].mxu0 %v736
  %v2402 = vpop.f32.mrb[0].mxu0
  %v2403 = vadd.f32 0.0, %v2402
  %v2404 = vpop.f32.mrb[0].mxu0
  %2405 = vmatprep.mubr.f32.mxu0 0.0
  %2406 = vmatmul.mubr.f32.gmra.mrb[0].mxu0 %v738
  %v2407 = vpop.f32.mrb[0].mxu0
  %v2408 = vadd.f32 0.0, %v2407
  %v2409 = vpop.f32.mrb[0].mxu0
  %2410 = vmatprep.mubr.f32.mxu0 0.0
  %2411 = vmatmul.mubr.f32.gmra.mrb[0].mxu0 %v740
  %v2412 = vpop.f32.mrb[0].mxu0
  %v2413 = vadd.f32 0.0, %v2412
  %v2414 = vpop.f32.mrb[0].mxu0
  %2415 = vmatprep.mubr.f32.mxu0 0.0
  %2416 = vmatmul.mubr.f32.gmra.mrb[0].mxu0 %v742
  %v2417 = vpop.f32.mrb[0].mxu0
  %v2418 = vadd.f32 0.0, %v2417
  %v2419 = vpop.f32.mrb[0].mxu0
  %2420 = vmatprep.mubr.f32.mxu0 0.0
  %2421 = vmatmul.mubr.f32.gmra.mrb[0].mxu0 %v744
  %v2422 = vpop.f32.mrb[0].mxu0
  %v2423 = vadd.f32 0.0, %v2422
  %v2424 = vpop.f32.mrb[0].mxu0
  %2425 = vmatprep.mubr.f32.mxu0 0.0
  %2426 = vmatmul.mubr.f32.gmra.mrb[0].mxu0 %v746
  %v2427 = vpop.f32.mrb[0].mxu0
  %v2428 = vadd.f32 0.0, %v2427
  %v2429 = vpop.f32.mrb[0].mxu0
  %2430 = vmatprep.mubr.f32.mxu0 0.0
  %2431 = vmatmul.mubr.f32.gmra.mrb[0].mxu0 %v1418
  %v2432 = vpop.f32.mrb[0].mxu0
  %v2433 = vadd.f32 0.0, %v2432
  %v2434 = vpop.f32.mrb[0].mxu0
  %2435 = vmatprep.mubr.f32.mxu0 0.0
  %2436 = vmatmul.mubr.f32.gmra.mrb[0].mxu0 %v2251
  %v2437 = vpop.f32.mrb[0].mxu0
  %v2438 = vadd.f32 0.0, %v2437
  %v2439 = vpop.f32.mrb[0].mxu0
  %2440 = vmatprep.mubr.f32.mxu0 0.0
  %2441 = vmatmul.mubr.f32.gmra.mrb[0].mxu0 %v752
  %v2442 = vpop.f32.mrb[0].mxu0
  %v2443 = vadd.f32 0.0, %v2442
  %v2444 = vpop.f32.mrb[0].mxu0
  %2445 = vmatprep.mubr.f32.mxu0 0.0
  %2446 = vmatmul.mubr.f32.gmra.mrb[0].mxu0 %v754
  %v2447 = vpop.f32.mrb[0].mxu0
  %v2448 = vadd.f32 0.0, %v2447
  %v2449 = vpop.f32.mrb[0].mxu0
  %2450 = vmatprep.mubr.f32.mxu0 0.0
  %2451 = vmatmul.mubr.f32.gmra.mrb[0].mxu0 %v756
  %v2452 = vpop.f32.mrb[0].mxu0
  %v2453 = vadd.f32 0.0, %v2452
  %v2454 = vpop.f32.mrb[0].mxu0
  %2455 = vmatprep.mubr.f32.mxu0 0.0
  %2456 = vmatmul.mubr.f32.gmra.mrb[0].mxu0 %v758
  %v2457 = vpop.f32.mrb[0].mxu0
  %v2458 = vadd.f32 0.0, %v2457
  %v2459 = vpop.f32.mrb[0].mxu0
  %2460 = vmatprep.mubr.f32.mxu0 0.0
  %2461 = vmatmul.mubr.f32.gmra.mrb[0].mxu0 %v760
  %v2462 = vpop.f32.mrb[0].mxu0
  %v2463 = vadd.f32 0.0, %v2462
  %v2464 = vpop.f32.mrb[0].mxu0
  %2465 = vmatprep.mubr.f32.mxu0 0.0
  %2466 = vmatmul.mubr.f32.gmra.mrb[0].mxu0 %v762
  %v2467 = vpop.f32.mrb[0].mxu0
  %v2468 = vadd.f32 0.0, %v2467
  %v2469 = vpop.f32.mrb[0].mxu0
  %2470 = vmatprep.mubr.f32.mxu0 0.0
  %2471 = vmatmul.mubr.f32.gmra.mrb[0].mxu0 %v1421
  %v2472 = vpop.f32.mrb[0].mxu0
  %v2473 = vadd.f32 0.0, %v2472
  %v2474 = vpop.f32.mrb[0].mxu0
  %2475 = vmatprep.mubr.f32.mxu0 0.0
  %2476 = vmatmul.mubr.f32.gmra.mrb[0].mxu0 %v2254
  %v2477 = vpop.f32.mrb[0].mxu0
  %v2478 = vadd.f32 0.0, %v2477
  %v2479 = vpop.f32.mrb[0].mxu0
  %2480 = vdwg.mxu0
  %v2481 = vadd.f32 %v2210, %v2323
  %v2482 = vadd.f32 %v2211, %v2328
  %v2483 = vadd.f32 %v2212, %v2333
  %v2484 = vadd.f32 %v2213, %v2338
  %v2485 = vadd.f32 %v2214, %v2343
  %v2486 = vadd.f32 %v2215, %v2348
  %v2487 = vadd.f32 %v2216, %v2353
  %v2488 = vadd.f32 %v2217, %v2358
  %v2489 = vadd.f32 %v2218, %v2363
  %v2490 = vadd.f32 %v2219, %v2368
  %v2491 = vadd.f32 %v2220, %v2373
  %v2492 = vadd.f32 %v2221, %v2378
  %v2493 = vadd.f32 %v2222, %v2383
  %v2494 = vadd.f32 %v2223, %v2388
  %v2495 = vadd.f32 %v2224, %v2393
  %v2496 = vadd.f32 %v2225, %v2398
  %v2497 = vadd.f32 %v2226, %v2403
  %v2498 = vadd.f32 %v2227, %v2408
  %v2499 = vadd.f32 %v2228, %v2413
  %v2500 = vadd.f32 %v2229, %v2418
  %v2501 = vadd.f32 %v2230, %v2423
  %v2502 = vadd.f32 %v2231, %v2428
  %v2503 = vadd.f32 %v2232, %v2433
  %v2504 = vadd.f32 %v2233, %v2438
  %v2505 = vadd.f32 %v2234, %v2443
  %v2506 = vadd.f32 %v2235, %v2448
  %v2507 = vadd.f32 %v2236, %v2453
  %v2508 = vadd.f32 %v2237, %v2458
  %v2509 = vadd.f32 %v2238, %v2463
  %v2510 = vadd.f32 %v2239, %v2468
  %v2511 = vadd.f32 %v2240, %v2473
  %v2512 = vadd.f32 %v2241, %v2478
  %v2517 = vrot.slane %v185, 1
  %v2518 = vrot.slane %v186, 1
  %v2519 = vsel %vm312, %v2517, %v2518
  %v2520 = vrot.slane %v205, 1
  %v2521 = vrot.slane %v206, 1
  %v2522 = vsel %vm312, %v2520, %v2521
  %v2523 = vrot.slane %v225, 1
  %v2524 = vrot.slane %v226, 1
  %v2525 = vsel %vm312, %v2523, %v2524
  %v2526 = vrot.slane %v245, 1
  %v2527 = vrot.slane %v246, 1
  %v2528 = vsel %vm312, %v2526, %v2527
  %s2529 = scalar_lea.vmem %s2, 56
  %v2530 = vld [vmem:[%s2529] sm:$0xff]
  %v2531 = vsel %vm20, %v2519, 0
  %v2533 = vsel %vm20, %v2522, 0
  %v2535 = vsel %vm20, %v2525, 0
  %v2537 = vsel %vm20, %v2528, 0
  %2539 = vmatprep.subr.mxu0 0.0
  %2540 = vmatpush1.msra.mxu0 %v2530
  %2541 = vmatprep.subr.mxu0 0.0
  %2542 = vmatpush1.msra.mxu0 0.0
  %2543 = vmatprep.subr.mxu0 0.0
  %2544 = vmatpush1.msra.mxu0 0.0
  %2545 = vmatprep.subr.mxu0 0.0
  %2546 = vmatpush1.msra.mxu0 0.0
  %2547 = vmatprep.subr.mxu0 0.0
  %2548 = vmatpush1.msra.mxu0 0.0
  %2549 = vmatprep.subr.mxu0 0.0
  %2550 = vmatpush1.msra.mxu0 0.0
  %2551 = vmatprep.subr.mxu0 0.0
  %2552 = vmatpush1.msra.mxu0 0.0
  %2553 = vmatprep.subr.mxu0 0.0
  %2554 = vmatpush1.msra.mxu0 0.0
  %2555 = vmatprep.subr.mxu0 0.0
  %2556 = vmatpush1.msra.mxu0 0.0
  %2557 = vmatprep.subr.mxu0 0.0
  %2558 = vmatpush1.msra.mxu0 0.0
  %2559 = vmatprep.subr.mxu0 0.0
  %2560 = vmatpush1.msra.mxu0 0.0
  %2561 = vmatprep.subr.mxu0 0.0
  %2562 = vmatpush1.msra.mxu0 0.0
  %2563 = vmatprep.subr.mxu0 0.0
  %2564 = vmatpush1.msra.mxu0 0.0
  %2565 = vmatprep.subr.mxu0 0.0
  %2566 = vmatpush1.msra.mxu0 0.0
  %2567 = vmatprep.subr.mxu0 0.0
  %2568 = vmatpush1.msra.mxu0 0.0
  %2569 = vmatprep.subr.mxu0 0.0
  %2570 = vmatpush1.msra.mxu0 0.0
  %2571 = vmatprep.subr.mxu0 0.0
  %2572 = vmatpush1.msra.mxu0 0.0
  %2573 = vmatprep.subr.mxu0 0.0
  %2574 = vmatpush1.msra.mxu0 0.0
  %2575 = vmatprep.subr.mxu0 0.0
  %2576 = vmatpush1.msra.mxu0 0.0
  %2577 = vmatprep.subr.mxu0 0.0
  %2578 = vmatpush1.msra.mxu0 0.0
  %2579 = vmatprep.subr.mxu0 0.0
  %2580 = vmatpush1.msra.mxu0 0.0
  %2581 = vmatprep.subr.mxu0 0.0
  %2582 = vmatpush1.msra.mxu0 0.0
  %2583 = vmatprep.subr.mxu0 0.0
  %2584 = vmatpush1.msra.mxu0 0.0
  %2585 = vmatprep.subr.mxu0 0.0
  %2586 = vmatpush1.msra.mxu0 0.0
  %2587 = vmatprep.subr.mxu0 0.0
  %2588 = vmatpush1.msra.mxu0 0.0
  %2589 = vmatprep.subr.mxu0 0.0
  %2590 = vmatpush1.msra.mxu0 0.0
  %2591 = vmatprep.subr.mxu0 0.0
  %2592 = vmatpush1.msra.mxu0 0.0
  %2593 = vmatprep.subr.mxu0 0.0
  %2594 = vmatpush1.msra.mxu0 0.0
  %2595 = vmatprep.subr.mxu0 0.0
  %2596 = vmatpush1.msra.mxu0 0.0
  %2597 = vmatprep.subr.mxu0 0.0
  %2598 = vmatpush1.msra.mxu0 0.0
  %2599 = vmatprep.subr.mxu0 0.0
  %2600 = vmatpush1.msra.mxu0 0.0
  %2601 = vmatprep.subr.mxu0 0.0
  %2602 = vmatpush1.msra.mxu0 0.0
  %2603 = vmatprep.mubr.f32.mxu0 0.0
  %2604 = vmatmul.mubr.f32.gmra.mrb[0].mxu0 %v415
  %v2605 = vpop.f32.mrb[0].mxu0
  %v2606 = vadd.f32 0.0, %v2605
  %v2607 = vpop.f32.mrb[0].mxu0
  %2608 = vmatprep.mubr.f32.mxu0 0.0
  %2609 = vmatmul.mubr.f32.gmra.mrb[0].mxu0 %v417
  %v2610 = vpop.f32.mrb[0].mxu0
  %v2611 = vadd.f32 0.0, %v2610
  %v2612 = vpop.f32.mrb[0].mxu0
  %2613 = vmatprep.mubr.f32.mxu0 0.0
  %2614 = vmatmul.mubr.f32.gmra.mrb[0].mxu0 %v419
  %v2615 = vpop.f32.mrb[0].mxu0
  %v2616 = vadd.f32 0.0, %v2615
  %v2617 = vpop.f32.mrb[0].mxu0
  %2618 = vmatprep.mubr.f32.mxu0 0.0
  %2619 = vmatmul.mubr.f32.gmra.mrb[0].mxu0 %v421
  %v2620 = vpop.f32.mrb[0].mxu0
  %v2621 = vadd.f32 0.0, %v2620
  %v2622 = vpop.f32.mrb[0].mxu0
  %2623 = vmatprep.mubr.f32.mxu0 0.0
  %2624 = vmatmul.mubr.f32.gmra.mrb[0].mxu0 %v423
  %v2625 = vpop.f32.mrb[0].mxu0
  %v2626 = vadd.f32 0.0, %v2625
  %v2627 = vpop.f32.mrb[0].mxu0
  %2628 = vmatprep.mubr.f32.mxu0 0.0
  %2629 = vmatmul.mubr.f32.gmra.mrb[0].mxu0 %v425
  %v2630 = vpop.f32.mrb[0].mxu0
  %v2631 = vadd.f32 0.0, %v2630
  %v2632 = vpop.f32.mrb[0].mxu0
  %2633 = vmatprep.mubr.f32.mxu0 0.0
  %2634 = vmatmul.mubr.f32.gmra.mrb[0].mxu0 %v1698
  %v2635 = vpop.f32.mrb[0].mxu0
  %v2636 = vadd.f32 0.0, %v2635
  %v2637 = vpop.f32.mrb[0].mxu0
  %2638 = vmatprep.mubr.f32.mxu0 0.0
  %2639 = vmatmul.mubr.f32.gmra.mrb[0].mxu0 %v2531
  %v2640 = vpop.f32.mrb[0].mxu0
  %v2641 = vadd.f32 0.0, %v2640
  %v2642 = vpop.f32.mrb[0].mxu0
  %2643 = vmatprep.mubr.f32.mxu0 0.0
  %2644 = vmatmul.mubr.f32.gmra.mrb[0].mxu0 %v431
  %v2645 = vpop.f32.mrb[0].mxu0
  %v2646 = vadd.f32 0.0, %v2645
  %v2647 = vpop.f32.mrb[0].mxu0
  %2648 = vmatprep.mubr.f32.mxu0 0.0
  %2649 = vmatmul.mubr.f32.gmra.mrb[0].mxu0 %v433
  %v2650 = vpop.f32.mrb[0].mxu0
  %v2651 = vadd.f32 0.0, %v2650
  %v2652 = vpop.f32.mrb[0].mxu0
  %2653 = vmatprep.mubr.f32.mxu0 0.0
  %2654 = vmatmul.mubr.f32.gmra.mrb[0].mxu0 %v435
  %v2655 = vpop.f32.mrb[0].mxu0
  %v2656 = vadd.f32 0.0, %v2655
  %v2657 = vpop.f32.mrb[0].mxu0
  %2658 = vmatprep.mubr.f32.mxu0 0.0
  %2659 = vmatmul.mubr.f32.gmra.mrb[0].mxu0 %v437
  %v2660 = vpop.f32.mrb[0].mxu0
  %v2661 = vadd.f32 0.0, %v2660
  %v2662 = vpop.f32.mrb[0].mxu0
  %2663 = vmatprep.mubr.f32.mxu0 0.0
  %2664 = vmatmul.mubr.f32.gmra.mrb[0].mxu0 %v439
  %v2665 = vpop.f32.mrb[0].mxu0
  %v2666 = vadd.f32 0.0, %v2665
  %v2667 = vpop.f32.mrb[0].mxu0
  %2668 = vmatprep.mubr.f32.mxu0 0.0
  %2669 = vmatmul.mubr.f32.gmra.mrb[0].mxu0 %v441
  %v2670 = vpop.f32.mrb[0].mxu0
  %v2671 = vadd.f32 0.0, %v2670
  %v2672 = vpop.f32.mrb[0].mxu0
  %2673 = vmatprep.mubr.f32.mxu0 0.0
  %2674 = vmatmul.mubr.f32.gmra.mrb[0].mxu0 %v1700
  %v2675 = vpop.f32.mrb[0].mxu0
  %v2676 = vadd.f32 0.0, %v2675
  %v2677 = vpop.f32.mrb[0].mxu0
  %2678 = vmatprep.mubr.f32.mxu0 0.0
  %2679 = vmatmul.mubr.f32.gmra.mrb[0].mxu0 %v2533
  %v2680 = vpop.f32.mrb[0].mxu0
  %v2681 = vadd.f32 0.0, %v2680
  %v2682 = vpop.f32.mrb[0].mxu0
  %2683 = vmatprep.mubr.f32.mxu0 0.0
  %2684 = vmatmul.mubr.f32.gmra.mrb[0].mxu0 %v447
  %v2685 = vpop.f32.mrb[0].mxu0
  %v2686 = vadd.f32 0.0, %v2685
  %v2687 = vpop.f32.mrb[0].mxu0
  %2688 = vmatprep.mubr.f32.mxu0 0.0
  %2689 = vmatmul.mubr.f32.gmra.mrb[0].mxu0 %v449
  %v2690 = vpop.f32.mrb[0].mxu0
  %v2691 = vadd.f32 0.0, %v2690
  %v2692 = vpop.f32.mrb[0].mxu0
  %2693 = vmatprep.mubr.f32.mxu0 0.0
  %2694 = vmatmul.mubr.f32.gmra.mrb[0].mxu0 %v451
  %v2695 = vpop.f32.mrb[0].mxu0
  %v2696 = vadd.f32 0.0, %v2695
  %v2697 = vpop.f32.mrb[0].mxu0
  %2698 = vmatprep.mubr.f32.mxu0 0.0
  %2699 = vmatmul.mubr.f32.gmra.mrb[0].mxu0 %v453
  %v2700 = vpop.f32.mrb[0].mxu0
  %v2701 = vadd.f32 0.0, %v2700
  %v2702 = vpop.f32.mrb[0].mxu0
  %2703 = vmatprep.mubr.f32.mxu0 0.0
  %2704 = vmatmul.mubr.f32.gmra.mrb[0].mxu0 %v455
  %v2705 = vpop.f32.mrb[0].mxu0
  %v2706 = vadd.f32 0.0, %v2705
  %v2707 = vpop.f32.mrb[0].mxu0
  %2708 = vmatprep.mubr.f32.mxu0 0.0
  %2709 = vmatmul.mubr.f32.gmra.mrb[0].mxu0 %v457
  %v2710 = vpop.f32.mrb[0].mxu0
  %v2711 = vadd.f32 0.0, %v2710
  %v2712 = vpop.f32.mrb[0].mxu0
  %2713 = vmatprep.mubr.f32.mxu0 0.0
  %2714 = vmatmul.mubr.f32.gmra.mrb[0].mxu0 %v1702
  %v2715 = vpop.f32.mrb[0].mxu0
  %v2716 = vadd.f32 0.0, %v2715
  %v2717 = vpop.f32.mrb[0].mxu0
  %2718 = vmatprep.mubr.f32.mxu0 0.0
  %2719 = vmatmul.mubr.f32.gmra.mrb[0].mxu0 %v2535
  %v2720 = vpop.f32.mrb[0].mxu0
  %v2721 = vadd.f32 0.0, %v2720
  %v2722 = vpop.f32.mrb[0].mxu0
  %2723 = vmatprep.mubr.f32.mxu0 0.0
  %2724 = vmatmul.mubr.f32.gmra.mrb[0].mxu0 %v463
  %v2725 = vpop.f32.mrb[0].mxu0
  %v2726 = vadd.f32 0.0, %v2725
  %v2727 = vpop.f32.mrb[0].mxu0
  %2728 = vmatprep.mubr.f32.mxu0 0.0
  %2729 = vmatmul.mubr.f32.gmra.mrb[0].mxu0 %v465
  %v2730 = vpop.f32.mrb[0].mxu0
  %v2731 = vadd.f32 0.0, %v2730
  %v2732 = vpop.f32.mrb[0].mxu0
  %2733 = vmatprep.mubr.f32.mxu0 0.0
  %2734 = vmatmul.mubr.f32.gmra.mrb[0].mxu0 %v467
  %v2735 = vpop.f32.mrb[0].mxu0
  %v2736 = vadd.f32 0.0, %v2735
  %v2737 = vpop.f32.mrb[0].mxu0
  %2738 = vmatprep.mubr.f32.mxu0 0.0
  %2739 = vmatmul.mubr.f32.gmra.mrb[0].mxu0 %v469
  %v2740 = vpop.f32.mrb[0].mxu0
  %v2741 = vadd.f32 0.0, %v2740
  %v2742 = vpop.f32.mrb[0].mxu0
  %2743 = vmatprep.mubr.f32.mxu0 0.0
  %2744 = vmatmul.mubr.f32.gmra.mrb[0].mxu0 %v471
  %v2745 = vpop.f32.mrb[0].mxu0
  %v2746 = vadd.f32 0.0, %v2745
  %v2747 = vpop.f32.mrb[0].mxu0
  %2748 = vmatprep.mubr.f32.mxu0 0.0
  %2749 = vmatmul.mubr.f32.gmra.mrb[0].mxu0 %v473
  %v2750 = vpop.f32.mrb[0].mxu0
  %v2751 = vadd.f32 0.0, %v2750
  %v2752 = vpop.f32.mrb[0].mxu0
  %2753 = vmatprep.mubr.f32.mxu0 0.0
  %2754 = vmatmul.mubr.f32.gmra.mrb[0].mxu0 %v1704
  %v2755 = vpop.f32.mrb[0].mxu0
  %v2756 = vadd.f32 0.0, %v2755
  %v2757 = vpop.f32.mrb[0].mxu0
  %2758 = vmatprep.mubr.f32.mxu0 0.0
  %2759 = vmatmul.mubr.f32.gmra.mrb[0].mxu0 %v2537
  %v2760 = vpop.f32.mrb[0].mxu0
  %v2761 = vadd.f32 0.0, %v2760
  %v2762 = vpop.f32.mrb[0].mxu0
  %2763 = vdwg.mxu0
  %v2764 = vadd.f32 %v2481, %v2606
  %v2765 = vadd.f32 %v2482, %v2611
  %v2766 = vadd.f32 %v2483, %v2616
  %v2767 = vadd.f32 %v2484, %v2621
  %v2768 = vadd.f32 %v2485, %v2626
  %v2769 = vadd.f32 %v2486, %v2631
  %v2770 = vadd.f32 %v2487, %v2636
  %v2771 = vadd.f32 %v2488, %v2641
  %v2772 = vadd.f32 %v2489, %v2646
  %v2773 = vadd.f32 %v2490, %v2651
  %v2774 = vadd.f32 %v2491, %v2656
  %v2775 = vadd.f32 %v2492, %v2661
  %v2776 = vadd.f32 %v2493, %v2666
  %v2777 = vadd.f32 %v2494, %v2671
  %v2778 = vadd.f32 %v2495, %v2676
  %v2779 = vadd.f32 %v2496, %v2681
  %v2780 = vadd.f32 %v2497, %v2686
  %v2781 = vadd.f32 %v2498, %v2691
  %v2782 = vadd.f32 %v2499, %v2696
  %v2783 = vadd.f32 %v2500, %v2701
  %v2784 = vadd.f32 %v2501, %v2706
  %v2785 = vadd.f32 %v2502, %v2711
  %v2786 = vadd.f32 %v2503, %v2716
  %v2787 = vadd.f32 %v2504, %v2721
  %v2788 = vadd.f32 %v2505, %v2726
  %v2789 = vadd.f32 %v2506, %v2731
  %v2790 = vadd.f32 %v2507, %v2736
  %v2791 = vadd.f32 %v2508, %v2741
  %v2792 = vadd.f32 %v2509, %v2746
  %v2793 = vadd.f32 %v2510, %v2751
  %v2794 = vadd.f32 %v2511, %v2756
  %v2795 = vadd.f32 %v2512, %v2761
  %v2796 = vrot.slane %v185, 2
  %v2797 = vrot.slane %v186, 2
  %v2798 = vsel %vm989, %v2796, %v2797
  %v2799 = vrot.slane %v205, 2
  %v2800 = vrot.slane %v206, 2
  %v2801 = vsel %vm989, %v2799, %v2800
  %v2802 = vrot.slane %v225, 2
  %v2803 = vrot.slane %v226, 2
  %v2804 = vsel %vm989, %v2802, %v2803
  %v2805 = vrot.slane %v245, 2
  %v2806 = vrot.slane %v246, 2
  %v2807 = vsel %vm989, %v2805, %v2806
  %s2808 = scalar_lea.vmem %s2, 64
  %v2809 = vld [vmem:[%s2808] sm:$0xff]
  %v2810 = vsel %vm20, %v2798, 0
  %v2812 = vsel %vm20, %v2801, 0
  %v2814 = vsel %vm20, %v2804, 0
  %v2816 = vsel %vm20, %v2807, 0
  %2818 = vmatprep.subr.mxu0 0.0
  %2819 = vmatpush1.msra.mxu0 %v2809
  %2820 = vmatprep.subr.mxu0 0.0
  %2821 = vmatpush1.msra.mxu0 0.0
  %2822 = vmatprep.subr.mxu0 0.0
  %2823 = vmatpush1.msra.mxu0 0.0
  %2824 = vmatprep.subr.mxu0 0.0
  %2825 = vmatpush1.msra.mxu0 0.0
  %2826 = vmatprep.subr.mxu0 0.0
  %2827 = vmatpush1.msra.mxu0 0.0
  %2828 = vmatprep.subr.mxu0 0.0
  %2829 = vmatpush1.msra.mxu0 0.0
  %2830 = vmatprep.subr.mxu0 0.0
  %2831 = vmatpush1.msra.mxu0 0.0
  %2832 = vmatprep.subr.mxu0 0.0
  %2833 = vmatpush1.msra.mxu0 0.0
  %2834 = vmatprep.subr.mxu0 0.0
  %2835 = vmatpush1.msra.mxu0 0.0
  %2836 = vmatprep.subr.mxu0 0.0
  %2837 = vmatpush1.msra.mxu0 0.0
  %2838 = vmatprep.subr.mxu0 0.0
  %2839 = vmatpush1.msra.mxu0 0.0
  %2840 = vmatprep.subr.mxu0 0.0
  %2841 = vmatpush1.msra.mxu0 0.0
  %2842 = vmatprep.subr.mxu0 0.0
  %2843 = vmatpush1.msra.mxu0 0.0
  %2844 = vmatprep.subr.mxu0 0.0
  %2845 = vmatpush1.msra.mxu0 0.0
  %2846 = vmatprep.subr.mxu0 0.0
  %2847 = vmatpush1.msra.mxu0 0.0
  %2848 = vmatprep.subr.mxu0 0.0
  %2849 = vmatpush1.msra.mxu0 0.0
  %2850 = vmatprep.subr.mxu0 0.0
  %2851 = vmatpush1.msra.mxu0 0.0
  %2852 = vmatprep.subr.mxu0 0.0
  %2853 = vmatpush1.msra.mxu0 0.0
  %2854 = vmatprep.subr.mxu0 0.0
  %2855 = vmatpush1.msra.mxu0 0.0
  %2856 = vmatprep.subr.mxu0 0.0
  %2857 = vmatpush1.msra.mxu0 0.0
  %2858 = vmatprep.subr.mxu0 0.0
  %2859 = vmatpush1.msra.mxu0 0.0
  %2860 = vmatprep.subr.mxu0 0.0
  %2861 = vmatpush1.msra.mxu0 0.0
  %2862 = vmatprep.subr.mxu0 0.0
  %2863 = vmatpush1.msra.mxu0 0.0
  %2864 = vmatprep.subr.mxu0 0.0
  %2865 = vmatpush1.msra.mxu0 0.0
  %2866 = vmatprep.subr.mxu0 0.0
  %2867 = vmatpush1.msra.mxu0 0.0
  %2868 = vmatprep.subr.mxu0 0.0
  %2869 = vmatpush1.msra.mxu0 0.0
  %2870 = vmatprep.subr.mxu0 0.0
  %2871 = vmatpush1.msra.mxu0 0.0
  %2872 = vmatprep.subr.mxu0 0.0
  %2873 = vmatpush1.msra.mxu0 0.0
  %2874 = vmatprep.subr.mxu0 0.0
  %2875 = vmatpush1.msra.mxu0 0.0
  %2876 = vmatprep.subr.mxu0 0.0
  %2877 = vmatpush1.msra.mxu0 0.0
  %2878 = vmatprep.subr.mxu0 0.0
  %2879 = vmatpush1.msra.mxu0 0.0
  %2880 = vmatprep.subr.mxu0 0.0
  %2881 = vmatpush1.msra.mxu0 0.0
  %2882 = vmatprep.mubr.f32.mxu0 0.0
  %2883 = vmatmul.mubr.f32.gmra.mrb[0].mxu0 %v1092
  %v2884 = vpop.f32.mrb[0].mxu0
  %v2885 = vadd.f32 0.0, %v2884
  %v2886 = vpop.f32.mrb[0].mxu0
  %2887 = vmatprep.mubr.f32.mxu0 0.0
  %2888 = vmatmul.mubr.f32.gmra.mrb[0].mxu0 %v1094
  %v2889 = vpop.f32.mrb[0].mxu0
  %v2890 = vadd.f32 0.0, %v2889
  %v2891 = vpop.f32.mrb[0].mxu0
  %2892 = vmatprep.mubr.f32.mxu0 0.0
  %2893 = vmatmul.mubr.f32.gmra.mrb[0].mxu0 %v1096
  %v2894 = vpop.f32.mrb[0].mxu0
  %v2895 = vadd.f32 0.0, %v2894
  %v2896 = vpop.f32.mrb[0].mxu0
  %2897 = vmatprep.mubr.f32.mxu0 0.0
  %2898 = vmatmul.mubr.f32.gmra.mrb[0].mxu0 %v1098
  %v2899 = vpop.f32.mrb[0].mxu0
  %v2900 = vadd.f32 0.0, %v2899
  %v2901 = vpop.f32.mrb[0].mxu0
  %2902 = vmatprep.mubr.f32.mxu0 0.0
  %2903 = vmatmul.mubr.f32.gmra.mrb[0].mxu0 %v1100
  %v2904 = vpop.f32.mrb[0].mxu0
  %v2905 = vadd.f32 0.0, %v2904
  %v2906 = vpop.f32.mrb[0].mxu0
  %2907 = vmatprep.mubr.f32.mxu0 0.0
  %2908 = vmatmul.mubr.f32.gmra.mrb[0].mxu0 %v1102
  %v2909 = vpop.f32.mrb[0].mxu0
  %v2910 = vadd.f32 0.0, %v2909
  %v2911 = vpop.f32.mrb[0].mxu0
  %2912 = vmatprep.mubr.f32.mxu0 0.0
  %2913 = vmatmul.mubr.f32.gmra.mrb[0].mxu0 %v1977
  %v2914 = vpop.f32.mrb[0].mxu0
  %v2915 = vadd.f32 0.0, %v2914
  %v2916 = vpop.f32.mrb[0].mxu0
  %2917 = vmatprep.mubr.f32.mxu0 0.0
  %2918 = vmatmul.mubr.f32.gmra.mrb[0].mxu0 %v2810
  %v2919 = vpop.f32.mrb[0].mxu0
  %v2920 = vadd.f32 0.0, %v2919
  %v2921 = vpop.f32.mrb[0].mxu0
  %2922 = vmatprep.mubr.f32.mxu0 0.0
  %2923 = vmatmul.mubr.f32.gmra.mrb[0].mxu0 %v1108
  %v2924 = vpop.f32.mrb[0].mxu0
  %v2925 = vadd.f32 0.0, %v2924
  %v2926 = vpop.f32.mrb[0].mxu0
  %2927 = vmatprep.mubr.f32.mxu0 0.0
  %2928 = vmatmul.mubr.f32.gmra.mrb[0].mxu0 %v1110
  %v2929 = vpop.f32.mrb[0].mxu0
  %v2930 = vadd.f32 0.0, %v2929
  %v2931 = vpop.f32.mrb[0].mxu0
  %2932 = vmatprep.mubr.f32.mxu0 0.0
  %2933 = vmatmul.mubr.f32.gmra.mrb[0].mxu0 %v1112
  %v2934 = vpop.f32.mrb[0].mxu0
  %v2935 = vadd.f32 0.0, %v2934
  %v2936 = vpop.f32.mrb[0].mxu0
  %2937 = vmatprep.mubr.f32.mxu0 0.0
  %2938 = vmatmul.mubr.f32.gmra.mrb[0].mxu0 %v1114
  %v2939 = vpop.f32.mrb[0].mxu0
  %v2940 = vadd.f32 0.0, %v2939
  %v2941 = vpop.f32.mrb[0].mxu0
  %2942 = vmatprep.mubr.f32.mxu0 0.0
  %2943 = vmatmul.mubr.f32.gmra.mrb[0].mxu0 %v1116
  %v2944 = vpop.f32.mrb[0].mxu0
  %v2945 = vadd.f32 0.0, %v2944
  %v2946 = vpop.f32.mrb[0].mxu0
  %2947 = vmatprep.mubr.f32.mxu0 0.0
  %2948 = vmatmul.mubr.f32.gmra.mrb[0].mxu0 %v1118
  %v2949 = vpop.f32.mrb[0].mxu0
  %v2950 = vadd.f32 0.0, %v2949
  %v2951 = vpop.f32.mrb[0].mxu0
  %2952 = vmatprep.mubr.f32.mxu0 0.0
  %2953 = vmatmul.mubr.f32.gmra.mrb[0].mxu0 %v1979
  %v2954 = vpop.f32.mrb[0].mxu0
  %v2955 = vadd.f32 0.0, %v2954
  %v2956 = vpop.f32.mrb[0].mxu0
  %2957 = vmatprep.mubr.f32.mxu0 0.0
  %2958 = vmatmul.mubr.f32.gmra.mrb[0].mxu0 %v2812
  %v2959 = vpop.f32.mrb[0].mxu0
  %v2960 = vadd.f32 0.0, %v2959
  %v2961 = vpop.f32.mrb[0].mxu0
  %2962 = vmatprep.mubr.f32.mxu0 0.0
  %2963 = vmatmul.mubr.f32.gmra.mrb[0].mxu0 %v1124
  %v2964 = vpop.f32.mrb[0].mxu0
  %v2965 = vadd.f32 0.0, %v2964
  %v2966 = vpop.f32.mrb[0].mxu0
  %2967 = vmatprep.mubr.f32.mxu0 0.0
  %2968 = vmatmul.mubr.f32.gmra.mrb[0].mxu0 %v1126
  %v2969 = vpop.f32.mrb[0].mxu0
  %v2970 = vadd.f32 0.0, %v2969
  %v2971 = vpop.f32.mrb[0].mxu0
  %2972 = vmatprep.mubr.f32.mxu0 0.0
  %2973 = vmatmul.mubr.f32.gmra.mrb[0].mxu0 %v1128
  %v2974 = vpop.f32.mrb[0].mxu0
  %v2975 = vadd.f32 0.0, %v2974
  %v2976 = vpop.f32.mrb[0].mxu0
  %2977 = vmatprep.mubr.f32.mxu0 0.0
  %2978 = vmatmul.mubr.f32.gmra.mrb[0].mxu0 %v1130
  %v2979 = vpop.f32.mrb[0].mxu0
  %v2980 = vadd.f32 0.0, %v2979
  %v2981 = vpop.f32.mrb[0].mxu0
  %2982 = vmatprep.mubr.f32.mxu0 0.0
  %2983 = vmatmul.mubr.f32.gmra.mrb[0].mxu0 %v1132
  %v2984 = vpop.f32.mrb[0].mxu0
  %v2985 = vadd.f32 0.0, %v2984
  %v2986 = vpop.f32.mrb[0].mxu0
  %2987 = vmatprep.mubr.f32.mxu0 0.0
  %2988 = vmatmul.mubr.f32.gmra.mrb[0].mxu0 %v1134
  %v2989 = vpop.f32.mrb[0].mxu0
  %v2990 = vadd.f32 0.0, %v2989
  %v2991 = vpop.f32.mrb[0].mxu0
  %2992 = vmatprep.mubr.f32.mxu0 0.0
  %2993 = vmatmul.mubr.f32.gmra.mrb[0].mxu0 %v1981
  %v2994 = vpop.f32.mrb[0].mxu0
  %v2995 = vadd.f32 0.0, %v2994
  %v2996 = vpop.f32.mrb[0].mxu0
  %2997 = vmatprep.mubr.f32.mxu0 0.0
  %2998 = vmatmul.mubr.f32.gmra.mrb[0].mxu0 %v2814
  %v2999 = vpop.f32.mrb[0].mxu0
  %v3000 = vadd.f32 0.0, %v2999
  %v3001 = vpop.f32.mrb[0].mxu0
  %3002 = vmatprep.mubr.f32.mxu0 0.0
  %3003 = vmatmul.mubr.f32.gmra.mrb[0].mxu0 %v1140
  %v3004 = vpop.f32.mrb[0].mxu0
  %v3005 = vadd.f32 0.0, %v3004
  %v3006 = vpop.f32.mrb[0].mxu0
  %3007 = vmatprep.mubr.f32.mxu0 0.0
  %3008 = vmatmul.mubr.f32.gmra.mrb[0].mxu0 %v1142
  %v3009 = vpop.f32.mrb[0].mxu0
  %v3010 = vadd.f32 0.0, %v3009
  %v3011 = vpop.f32.mrb[0].mxu0
  %3012 = vmatprep.mubr.f32.mxu0 0.0
  %3013 = vmatmul.mubr.f32.gmra.mrb[0].mxu0 %v1144
  %v3014 = vpop.f32.mrb[0].mxu0
  %v3015 = vadd.f32 0.0, %v3014
  %v3016 = vpop.f32.mrb[0].mxu0
  %3017 = vmatprep.mubr.f32.mxu0 0.0
  %3018 = vmatmul.mubr.f32.gmra.mrb[0].mxu0 %v1146
  %v3019 = vpop.f32.mrb[0].mxu0
  %v3020 = vadd.f32 0.0, %v3019
  %v3021 = vpop.f32.mrb[0].mxu0
  %3022 = vmatprep.mubr.f32.mxu0 0.0
  %3023 = vmatmul.mubr.f32.gmra.mrb[0].mxu0 %v1148
  %v3024 = vpop.f32.mrb[0].mxu0
  %v3025 = vadd.f32 0.0, %v3024
  %v3026 = vpop.f32.mrb[0].mxu0
  %3027 = vmatprep.mubr.f32.mxu0 0.0
  %3028 = vmatmul.mubr.f32.gmra.mrb[0].mxu0 %v1150
  %v3029 = vpop.f32.mrb[0].mxu0
  %v3030 = vadd.f32 0.0, %v3029
  %v3031 = vpop.f32.mrb[0].mxu0
  %3032 = vmatprep.mubr.f32.mxu0 0.0
  %3033 = vmatmul.mubr.f32.gmra.mrb[0].mxu0 %v1983
  %v3034 = vpop.f32.mrb[0].mxu0
  %v3035 = vadd.f32 0.0, %v3034
  %v3036 = vpop.f32.mrb[0].mxu0
  %3037 = vmatprep.mubr.f32.mxu0 0.0
  %3038 = vmatmul.mubr.f32.gmra.mrb[0].mxu0 %v2816
  %v3039 = vpop.f32.mrb[0].mxu0
  %v3040 = vadd.f32 0.0, %v3039
  %v3041 = vpop.f32.mrb[0].mxu0
  %3042 = vdwg.mxu0
  %v3043 = vadd.f32 %v2764, %v2885
  %v3044 = vadd.f32 %v2765, %v2890
  %v3045 = vadd.f32 %v2766, %v2895
  %v3046 = vadd.f32 %v2767, %v2900
  %v3047 = vadd.f32 %v2768, %v2905
  %v3048 = vadd.f32 %v2769, %v2910
  %v3049 = vadd.f32 %v2770, %v2915
  %v3050 = vadd.f32 %v2771, %v2920
  %v3051 = vadd.f32 %v2772, %v2925
  %v3052 = vadd.f32 %v2773, %v2930
  %v3053 = vadd.f32 %v2774, %v2935
  %v3054 = vadd.f32 %v2775, %v2940
  %v3055 = vadd.f32 %v2776, %v2945
  %v3056 = vadd.f32 %v2777, %v2950
  %v3057 = vadd.f32 %v2778, %v2955
  %v3058 = vadd.f32 %v2779, %v2960
  %v3059 = vadd.f32 %v2780, %v2965
  %v3060 = vadd.f32 %v2781, %v2970
  %v3061 = vadd.f32 %v2782, %v2975
  %v3062 = vadd.f32 %v2783, %v2980
  %v3063 = vadd.f32 %v2784, %v2985
  %v3064 = vadd.f32 %v2785, %v2990
  %v3065 = vadd.f32 %v2786, %v2995
  %v3066 = vadd.f32 %v2787, %v3000
  %v3067 = vadd.f32 %v2788, %v3005
  %v3068 = vadd.f32 %v2789, %v3010
  %v3069 = vadd.f32 %v2790, %v3015
  %v3070 = vadd.f32 %v2791, %v3020
  %v3071 = vadd.f32 %v2792, %v3025
  %v3072 = vadd.f32 %v2793, %v3030
  %v3073 = vadd.f32 %v2794, %v3035
  %v3074 = vadd.f32 %v2795, %v3040
  %v3075 = vld [vmem:[%s1] sm:$0xf]
  %v3078 = vunpack.c.l.s4 1966171168
  %v3079 = vunpack.c.0.s8 %v3078
  %v3080 = vlaneseq
  %v3081 = vshrl.u32 %v3080, 7
  %v3082 = vsub.s32 %v3079, %v3081
  %v3083 = vrot.slane %v3075, %v3082
  %v3084 = vcombine.high %v3083, %v3083
  %v3086 = vunpack.c.l.s4 1966171168
  %v3087 = vunpack.c.0.s8 %v3086
  %v3088 = vlaneseq
  %v3089 = vshrl.u32 %v3088, 7
  %v3090 = vsub.s32 %v3087, %v3089
  %v3091 = vrot.slane %v3083, %v3090
  %v3093 = vunpack.c.l.s4 1966171168
  %v3094 = vunpack.c.0.s8 %v3093
  %v3095 = vlaneseq
  %v3096 = vshrl.u32 %v3095, 7
  %v3097 = vsub.s32 %v3094, %v3096
  %v3098 = vrot.slane %v3084, %v3097
  %v3099 = vcombine.high %v3091, %v3091
  %v3100 = vcombine.high %v3098, %v3098
  %v3101 = vld [vmem:[%s3] sm:$0xff]
  %v3102 = vld [vmem:[%s3 + $0x8] sm:$0xff]
  %v3103 = vld [vmem:[%s3 + $0x10] sm:$0xff]
  %v3104 = vld [vmem:[%s3 + $0x18] sm:$0xff]
  %v3105 = vld [vmem:[%s3 + $0x20] sm:$0xff]
  %v3106 = vld [vmem:[%s3 + $0x28] sm:$0xff]
  %v3107 = vld [vmem:[%s3 + $0x30] sm:$0xff]
  %v3108 = vld [vmem:[%s3 + $0x38] sm:$0xff]
  %v3109 = vlaneseq
  %v3110 = vshrl.u32 %v3109, 7
  %v3111 = vsub.s32 0, %v3110
  %v3112 = vrot.slane %v3091, %v3111
  %v3113 = vlaneseq
  %v3114 = vshrl.u32 %v3113, 7
  %v3115 = vsub.s32 0, %v3114
  %v3116 = vrot.slane %v3098, %v3115
  %v3117 = vlaneseq
  %v3118 = vshrl.u32 %v3117, 7
  %v3119 = vsub.s32 0, %v3118
  %v3120 = vrot.slane %v3099, %v3119
  %v3121 = vlaneseq
  %v3122 = vshrl.u32 %v3121, 7
  %v3123 = vsub.s32 0, %v3122
  %v3124 = vrot.slane %v3100, %v3123
  %3125 = vset.pattern.permute.xlu0 0
  %3126 = vperm.xlu0 %3125, %v3112
  %v3127 = vpop.permute.xlu0 %3126
  %3129 = vset.pattern.permute.xlu0 0
  %3130 = vperm.xlu0 %3129, %v3116
  %v3131 = vpop.permute.xlu0 %3130
  %3133 = vset.pattern.permute.xlu0 0
  %3134 = vperm.xlu0 %3133, %v3120
  %v3135 = vpop.permute.xlu0 %3134
  %3137 = vset.pattern.permute.xlu0 0
  %3138 = vperm.xlu0 %3137, %v3124
  %v3139 = vpop.permute.xlu0 %3138
  %v3141 = vmul.f32 %v3127, %v3101
  %v3142 = vmul.f32 %v3127, %v3102
  %v3143 = vmul.f32 %v3127, %v3103
  %v3144 = vmul.f32 %v3127, %v3104
  %v3145 = vmul.f32 %v3127, %v3105
  %v3146 = vmul.f32 %v3127, %v3106
  %v3147 = vmul.f32 %v3127, %v3107
  %v3148 = vmul.f32 %v3127, %v3108
  %v3149 = vmul.f32 %v3131, %v3101
  %v3150 = vmul.f32 %v3131, %v3102
  %v3151 = vmul.f32 %v3131, %v3103
  %v3152 = vmul.f32 %v3131, %v3104
  %v3153 = vmul.f32 %v3131, %v3105
  %v3154 = vmul.f32 %v3131, %v3106
  %v3155 = vmul.f32 %v3131, %v3107
  %v3156 = vmul.f32 %v3131, %v3108
  %v3157 = vmul.f32 %v3135, %v3101
  %v3158 = vmul.f32 %v3135, %v3102
  %v3159 = vmul.f32 %v3135, %v3103
  %v3160 = vmul.f32 %v3135, %v3104
  %v3161 = vmul.f32 %v3135, %v3105
  %v3162 = vmul.f32 %v3135, %v3106
  %v3163 = vmul.f32 %v3135, %v3107
  %v3164 = vmul.f32 %v3135, %v3108
  %v3165 = vmul.f32 %v3139, %v3101
  %v3166 = vmul.f32 %v3139, %v3102
  %v3167 = vmul.f32 %v3139, %v3103
  %v3168 = vmul.f32 %v3139, %v3104
  %v3169 = vmul.f32 %v3139, %v3105
  %v3170 = vmul.f32 %v3139, %v3106
  %v3171 = vmul.f32 %v3139, %v3107
  %v3172 = vmul.f32 %v3139, %v3108
  %v3173 = vadd.f32 %v3043, %v3141
  %v3174 = vadd.f32 %v3044, %v3142
  %v3175 = vadd.f32 %v3045, %v3143
  %v3176 = vadd.f32 %v3046, %v3144
  %v3177 = vadd.f32 %v3047, %v3145
  %v3178 = vadd.f32 %v3048, %v3146
  %v3179 = vadd.f32 %v3049, %v3147
  %v3180 = vadd.f32 %v3050, %v3148
  %v3181 = vadd.f32 %v3051, %v3149
  %v3182 = vadd.f32 %v3052, %v3150
  %v3183 = vadd.f32 %v3053, %v3151
  %v3184 = vadd.f32 %v3054, %v3152
  %v3185 = vadd.f32 %v3055, %v3153
  %v3186 = vadd.f32 %v3056, %v3154
  %v3187 = vadd.f32 %v3057, %v3155
  %v3188 = vadd.f32 %v3058, %v3156
  %v3189 = vadd.f32 %v3059, %v3157
  %v3190 = vadd.f32 %v3060, %v3158
  %v3191 = vadd.f32 %v3061, %v3159
  %v3192 = vadd.f32 %v3062, %v3160
  %v3193 = vadd.f32 %v3063, %v3161
  %v3194 = vadd.f32 %v3064, %v3162
  %v3195 = vadd.f32 %v3065, %v3163
  %v3196 = vadd.f32 %v3066, %v3164
  %v3197 = vadd.f32 %v3067, %v3165
  %v3198 = vadd.f32 %v3068, %v3166
  %v3199 = vadd.f32 %v3069, %v3167
  %v3200 = vadd.f32 %v3070, %v3168
  %v3201 = vadd.f32 %v3071, %v3169
  %v3202 = vadd.f32 %v3072, %v3170
  %v3203 = vadd.f32 %v3073, %v3171
  %v3204 = vadd.f32 %v3074, %v3172
  %v3205 = vmul.f32 %v3173, 0.11111111
  %v3206 = vmul.f32 %v3174, 0.11111111
  %v3207 = vmul.f32 %v3175, 0.11111111
  %v3208 = vmul.f32 %v3176, 0.11111111
  %v3209 = vmul.f32 %v3177, 0.11111111
  %v3210 = vmul.f32 %v3178, 0.11111111
  %v3211 = vmul.f32 %v3179, 0.11111111
  %v3212 = vmul.f32 %v3180, 0.11111111
  %v3213 = vmul.f32 %v3181, 0.11111111
  %v3214 = vmul.f32 %v3182, 0.11111111
  %v3215 = vmul.f32 %v3183, 0.11111111
  %v3216 = vmul.f32 %v3184, 0.11111111
  %v3217 = vmul.f32 %v3185, 0.11111111
  %v3218 = vmul.f32 %v3186, 0.11111111
  %v3219 = vmul.f32 %v3187, 0.11111111
  %v3220 = vmul.f32 %v3188, 0.11111111
  %v3221 = vmul.f32 %v3189, 0.11111111
  %v3222 = vmul.f32 %v3190, 0.11111111
  %v3223 = vmul.f32 %v3191, 0.11111111
  %v3224 = vmul.f32 %v3192, 0.11111111
  %v3225 = vmul.f32 %v3193, 0.11111111
  %v3226 = vmul.f32 %v3194, 0.11111111
  %v3227 = vmul.f32 %v3195, 0.11111111
  %v3228 = vmul.f32 %v3196, 0.11111111
  %v3229 = vmul.f32 %v3197, 0.11111111
  %v3230 = vmul.f32 %v3198, 0.11111111
  %v3231 = vmul.f32 %v3199, 0.11111111
  %v3232 = vmul.f32 %v3200, 0.11111111
  %v3233 = vmul.f32 %v3201, 0.11111111
  %v3234 = vmul.f32 %v3202, 0.11111111
  %v3235 = vmul.f32 %v3203, 0.11111111
  %v3236 = vmul.f32 %v3204, 0.11111111
  %v3237 = vld [vmem:[%s4] sm:$0x1]
  %v3239 = vlaneseq
  %v3240 = vshrl.u32 %v3239, 7
  %v3241 = vsub.s32 0, %v3240
  %v3242 = vrot.slane %v3237, %v3241
  %v3244 = vadd.f32 %v3205, %v3242
  %v3245 = vadd.f32 %v3206, %v3242
  %v3246 = vadd.f32 %v3207, %v3242
  %v3247 = vadd.f32 %v3208, %v3242
  %v3248 = vadd.f32 %v3209, %v3242
  %v3249 = vadd.f32 %v3210, %v3242
  %v3250 = vadd.f32 %v3211, %v3242
  %v3251 = vadd.f32 %v3212, %v3242
  %v3252 = vadd.f32 %v3213, %v3242
  %v3253 = vadd.f32 %v3214, %v3242
  %v3254 = vadd.f32 %v3215, %v3242
  %v3255 = vadd.f32 %v3216, %v3242
  %v3256 = vadd.f32 %v3217, %v3242
  %v3257 = vadd.f32 %v3218, %v3242
  %v3258 = vadd.f32 %v3219, %v3242
  %v3259 = vadd.f32 %v3220, %v3242
  %v3260 = vadd.f32 %v3221, %v3242
  %v3261 = vadd.f32 %v3222, %v3242
  %v3262 = vadd.f32 %v3223, %v3242
  %v3263 = vadd.f32 %v3224, %v3242
  %v3264 = vadd.f32 %v3225, %v3242
  %v3265 = vadd.f32 %v3226, %v3242
  %v3266 = vadd.f32 %v3227, %v3242
  %v3267 = vadd.f32 %v3228, %v3242
  %v3268 = vadd.f32 %v3229, %v3242
  %v3269 = vadd.f32 %v3230, %v3242
  %v3270 = vadd.f32 %v3231, %v3242
  %v3271 = vadd.f32 %v3232, %v3242
  %v3272 = vadd.f32 %v3233, %v3242
  %v3273 = vadd.f32 %v3234, %v3242
  %v3274 = vadd.f32 %v3235, %v3242
  %v3275 = vadd.f32 %v3236, %v3242
  %vm3276 = vcmp.ge.f32.partialorder %v3244, 0.0
  %vm3277 = vcmp.ge.f32.partialorder %v3245, 0.0
  %vm3278 = vcmp.ge.f32.partialorder %v3246, 0.0
  %vm3279 = vcmp.ge.f32.partialorder %v3247, 0.0
  %vm3280 = vcmp.ge.f32.partialorder %v3248, 0.0
  %vm3281 = vcmp.ge.f32.partialorder %v3249, 0.0
  %vm3282 = vcmp.ge.f32.partialorder %v3250, 0.0
  %vm3283 = vcmp.ge.f32.partialorder %v3251, 0.0
  %vm3284 = vcmp.ge.f32.partialorder %v3252, 0.0
  %vm3285 = vcmp.ge.f32.partialorder %v3253, 0.0
  %vm3286 = vcmp.ge.f32.partialorder %v3254, 0.0
  %vm3287 = vcmp.ge.f32.partialorder %v3255, 0.0
  %vm3288 = vcmp.ge.f32.partialorder %v3256, 0.0
  %vm3289 = vcmp.ge.f32.partialorder %v3257, 0.0
  %vm3290 = vcmp.ge.f32.partialorder %v3258, 0.0
  %vm3291 = vcmp.ge.f32.partialorder %v3259, 0.0
  %vm3292 = vcmp.ge.f32.partialorder %v3260, 0.0
  %vm3293 = vcmp.ge.f32.partialorder %v3261, 0.0
  %vm3294 = vcmp.ge.f32.partialorder %v3262, 0.0
  %vm3295 = vcmp.ge.f32.partialorder %v3263, 0.0
  %vm3296 = vcmp.ge.f32.partialorder %v3264, 0.0
  %vm3297 = vcmp.ge.f32.partialorder %v3265, 0.0
  %vm3298 = vcmp.ge.f32.partialorder %v3266, 0.0
  %vm3299 = vcmp.ge.f32.partialorder %v3267, 0.0
  %vm3300 = vcmp.ge.f32.partialorder %v3268, 0.0
  %vm3301 = vcmp.ge.f32.partialorder %v3269, 0.0
  %vm3302 = vcmp.ge.f32.partialorder %v3270, 0.0
  %vm3303 = vcmp.ge.f32.partialorder %v3271, 0.0
  %vm3304 = vcmp.ge.f32.partialorder %v3272, 0.0
  %vm3305 = vcmp.ge.f32.partialorder %v3273, 0.0
  %vm3306 = vcmp.ge.f32.partialorder %v3274, 0.0
  %vm3307 = vcmp.ge.f32.partialorder %v3275, 0.0
  %v3308 = vmul.f32 %v3244, 0.2
  %v3309 = vmul.f32 %v3245, 0.2
  %v3310 = vmul.f32 %v3246, 0.2
  %v3311 = vmul.f32 %v3247, 0.2
  %v3312 = vmul.f32 %v3248, 0.2
  %v3313 = vmul.f32 %v3249, 0.2
  %v3314 = vmul.f32 %v3250, 0.2
  %v3315 = vmul.f32 %v3251, 0.2
  %v3316 = vmul.f32 %v3252, 0.2
  %v3317 = vmul.f32 %v3253, 0.2
  %v3318 = vmul.f32 %v3254, 0.2
  %v3319 = vmul.f32 %v3255, 0.2
  %v3320 = vmul.f32 %v3256, 0.2
  %v3321 = vmul.f32 %v3257, 0.2
  %v3322 = vmul.f32 %v3258, 0.2
  %v3323 = vmul.f32 %v3259, 0.2
  %v3324 = vmul.f32 %v3260, 0.2
  %v3325 = vmul.f32 %v3261, 0.2
  %v3326 = vmul.f32 %v3262, 0.2
  %v3327 = vmul.f32 %v3263, 0.2
  %v3328 = vmul.f32 %v3264, 0.2
  %v3329 = vmul.f32 %v3265, 0.2
  %v3330 = vmul.f32 %v3266, 0.2
  %v3331 = vmul.f32 %v3267, 0.2
  %v3332 = vmul.f32 %v3268, 0.2
  %v3333 = vmul.f32 %v3269, 0.2
  %v3334 = vmul.f32 %v3270, 0.2
  %v3335 = vmul.f32 %v3271, 0.2
  %v3336 = vmul.f32 %v3272, 0.2
  %v3337 = vmul.f32 %v3273, 0.2
  %v3338 = vmul.f32 %v3274, 0.2
  %v3339 = vmul.f32 %v3275, 0.2
  %v3340 = vsel %vm3276, %v3244, %v3308
  %v3341 = vsel %vm3277, %v3245, %v3309
  %v3342 = vsel %vm3278, %v3246, %v3310
  %v3343 = vsel %vm3279, %v3247, %v3311
  %v3344 = vsel %vm3280, %v3248, %v3312
  %v3345 = vsel %vm3281, %v3249, %v3313
  %v3346 = vsel %vm3282, %v3250, %v3314
  %v3347 = vsel %vm3283, %v3251, %v3315
  %v3348 = vsel %vm3284, %v3252, %v3316
  %v3349 = vsel %vm3285, %v3253, %v3317
  %v3350 = vsel %vm3286, %v3254, %v3318
  %v3351 = vsel %vm3287, %v3255, %v3319
  %v3352 = vsel %vm3288, %v3256, %v3320
  %v3353 = vsel %vm3289, %v3257, %v3321
  %v3354 = vsel %vm3290, %v3258, %v3322
  %v3355 = vsel %vm3291, %v3259, %v3323
  %v3356 = vsel %vm3292, %v3260, %v3324
  %v3357 = vsel %vm3293, %v3261, %v3325
  %v3358 = vsel %vm3294, %v3262, %v3326
  %v3359 = vsel %vm3295, %v3263, %v3327
  %v3360 = vsel %vm3296, %v3264, %v3328
  %v3361 = vsel %vm3297, %v3265, %v3329
  %v3362 = vsel %vm3298, %v3266, %v3330
  %v3363 = vsel %vm3299, %v3267, %v3331
  %v3364 = vsel %vm3300, %v3268, %v3332
  %v3365 = vsel %vm3301, %v3269, %v3333
  %v3366 = vsel %vm3302, %v3270, %v3334
  %v3367 = vsel %vm3303, %v3271, %v3335
  %v3368 = vsel %vm3304, %v3272, %v3336
  %v3369 = vsel %vm3305, %v3273, %v3337
  %v3370 = vsel %vm3306, %v3274, %v3338
  %v3371 = vsel %vm3307, %v3275, %v3339
  %v3372 = vmul.f32 %v3340, 1.4142135
  %v3373 = vmul.f32 %v3341, 1.4142135
  %v3374 = vmul.f32 %v3342, 1.4142135
  %v3375 = vmul.f32 %v3343, 1.4142135
  %v3376 = vmul.f32 %v3344, 1.4142135
  %v3377 = vmul.f32 %v3345, 1.4142135
  %v3378 = vmul.f32 %v3346, 1.4142135
  %v3379 = vmul.f32 %v3347, 1.4142135
  %v3380 = vmul.f32 %v3348, 1.4142135
  %v3381 = vmul.f32 %v3349, 1.4142135
  %v3382 = vmul.f32 %v3350, 1.4142135
  %v3383 = vmul.f32 %v3351, 1.4142135
  %v3384 = vmul.f32 %v3352, 1.4142135
  %v3385 = vmul.f32 %v3353, 1.4142135
  %v3386 = vmul.f32 %v3354, 1.4142135
  %v3387 = vmul.f32 %v3355, 1.4142135
  %v3388 = vmul.f32 %v3356, 1.4142135
  %v3389 = vmul.f32 %v3357, 1.4142135
  %v3390 = vmul.f32 %v3358, 1.4142135
  %v3391 = vmul.f32 %v3359, 1.4142135
  %v3392 = vmul.f32 %v3360, 1.4142135
  %v3393 = vmul.f32 %v3361, 1.4142135
  %v3394 = vmul.f32 %v3362, 1.4142135
  %v3395 = vmul.f32 %v3363, 1.4142135
  %v3396 = vmul.f32 %v3364, 1.4142135
  %v3397 = vmul.f32 %v3365, 1.4142135
  %v3398 = vmul.f32 %v3366, 1.4142135
  %v3399 = vmul.f32 %v3367, 1.4142135
  %v3400 = vmul.f32 %v3368, 1.4142135
  %v3401 = vmul.f32 %v3369, 1.4142135
  %v3402 = vmul.f32 %v3370, 1.4142135
  %v3403 = vmul.f32 %v3371, 1.4142135
  %3404 = vst.msk [vmem:[%s5] sm:$0xff] %vm20, %v3372
  %3405 = vst.msk [vmem:[%s5 + $0x8] sm:$0xff] %vm20, %v3373
  %3406 = vst.msk [vmem:[%s5 + $0x10] sm:$0xff] %vm20, %v3374
  %3407 = vst.msk [vmem:[%s5 + $0x18] sm:$0xff] %vm20, %v3375
  %3408 = vst.msk [vmem:[%s5 + $0x20] sm:$0xff] %vm20, %v3376
  %3409 = vst.msk [vmem:[%s5 + $0x28] sm:$0xff] %vm20, %v3377
  %3410 = vst.msk [vmem:[%s5 + $0x30] sm:$0xff] %vm20, %v3378
  %3411 = vst.msk [vmem:[%s5 + $0x38] sm:$0xff] %vm20, %v3379
  %3412 = vst.msk [vmem:[%s5 + $0x40] sm:$0xff] %vm20, %v3380
  %3413 = vst.msk [vmem:[%s5 + $0x48] sm:$0xff] %vm20, %v3381
  %3414 = vst.msk [vmem:[%s5 + $0x50] sm:$0xff] %vm20, %v3382
  %3415 = vst.msk [vmem:[%s5 + $0x58] sm:$0xff] %vm20, %v3383
  %3416 = vst.msk [vmem:[%s5 + $0x60] sm:$0xff] %vm20, %v3384
  %3417 = vst.msk [vmem:[%s5 + $0x68] sm:$0xff] %vm20, %v3385
  %3418 = vst.msk [vmem:[%s5 + $0x70] sm:$0xff] %vm20, %v3386
  %3419 = vst.msk [vmem:[%s5 + $0x78] sm:$0xff] %vm20, %v3387
  %3420 = vst.msk [vmem:[%s5 + $0x80] sm:$0xff] %vm20, %v3388
  %3421 = vst.msk [vmem:[%s5 + $0x88] sm:$0xff] %vm20, %v3389
  %3422 = vst.msk [vmem:[%s5 + $0x90] sm:$0xff] %vm20, %v3390
  %3423 = vst.msk [vmem:[%s5 + $0x98] sm:$0xff] %vm20, %v3391
  %3424 = vst.msk [vmem:[%s5 + $0xa0] sm:$0xff] %vm20, %v3392
  %3425 = vst.msk [vmem:[%s5 + $0xa8] sm:$0xff] %vm20, %v3393
  %3426 = vst.msk [vmem:[%s5 + $0xb0] sm:$0xff] %vm20, %v3394
  %3427 = vst.msk [vmem:[%s5 + $0xb8] sm:$0xff] %vm20, %v3395
  %3428 = vst.msk [vmem:[%s5 + $0xc0] sm:$0xff] %vm20, %v3396
  %3429 = vst.msk [vmem:[%s5 + $0xc8] sm:$0xff] %vm20, %v3397
  %3430 = vst.msk [vmem:[%s5 + $0xd0] sm:$0xff] %vm20, %v3398
  %3431 = vst.msk [vmem:[%s5 + $0xd8] sm:$0xff] %vm20, %v3399
  %3432 = vst.msk [vmem:[%s5 + $0xe0] sm:$0xff] %vm20, %v3400
  %3433 = vst.msk [vmem:[%s5 + $0xe8] sm:$0xff] %vm20, %v3401
  %3434 = vst.msk [vmem:[%s5 + $0xf0] sm:$0xff] %vm20, %v3402
  %3435 = vst.msk [vmem:[%s5 + $0xf8] sm:$0xff] %vm20, %v3403
  // Predicated region
  $region22: #{discriminator_epilogue.4} parent=0 // pred_check
    _
  $region23: #{discriminator_epilogue.4} parent=0 // pred_check_branch
    %3437 = sbr.rel (0) target = $region25
  $region24: #{discriminator_epilogue.4} parent=0 // pred_region
    _
  $region25: #{discriminator_epilogue.4} parent=0 // pred_fallthru
    _
  // Predicated region
  $region26: #{discriminator_epilogue.4} parent=0 // pred_check
    _
  $region27: #{discriminator_epilogue.4} parent=0 // pred_check_branch
    %3439 = sbr.rel (0) target = $region29
  $region28: #{discriminator_epilogue.4} parent=0 // pred_region
    _
  $region29: #{discriminator_epilogue.4} parent=0 // pred_fallthru
    _

</llo_original>
